<compile_context>
chip_gen: v5e
topology: v5e:2x2
jax: 0.10.0
libtpu: 0.0.40
codegen_flags: <defaults>
</compile_context>

<pallas_src>
import functools

import jax
import jax.numpy as jnp
from jax.experimental import pallas as pl
from jax.experimental.pallas import tpu as pltpu


# ---------------------------------------------------------------------------
# Hardware-awareness helpers (safe fallbacks if the query API is unavailable).
# ---------------------------------------------------------------------------
def _vmem_limit_bytes():
    default = 48 * 1024 * 1024          # safe on v5e/v6e (128 MiB) and v7x (64 MiB)
    try:
        info = pltpu.get_tpu_info()
        cap = getattr(info, "vmem_capacity_bytes", None)
        if cap:
            return int(0.75 * cap)
    except Exception:
        pass
    return default


def _num_tensorcores():
    try:
        kind = jax.devices()[0].device_kind.lower()
        if "v7" in kind or "7x" in kind:
            return 2
    except Exception:
        pass
    return 1


def _round_up(v, m):
    return ((v + m - 1) // m) * m


def _pad2d(a, rows, cols):
    pr, pc = rows - a.shape[0], cols - a.shape[1]
    if pr == 0 and pc == 0:
        return a
    return jnp.pad(a, ((0, pr), (0, pc)))


def _pick_tile(dim, preferred=512, min_blocks=1):
    """Largest power-of-two multiple-of-128 tile <= preferred dividing dim."""
    for t in (preferred, 512, 256, 128):
        if t <= preferred and t <= dim and dim % t == 0 and dim // t >= min_blocks:
            return t
    return min(dim, 128)


# ---------------------------------------------------------------------------
# Kernels.
# ---------------------------------------------------------------------------
def _transform_kernel(x_ref, w_ref, prev_ref, s0_ref):
    """support = x @ W ; emit f32 teleport term and mxu-dtype propagation operand."""
    acc = jnp.dot(x_ref[...], w_ref[...], preferred_element_type=jnp.float32)
    prev_ref[...] = acc
    s0_ref[...] = acc.astype(s0_ref.dtype)


def _propagate_step_kernel(adj_ref, s_ref, prev_ref, out_ref, acc_ref, *, alpha):
    """One propagation step: relu((adj @ s)*(1-alpha) + prev*alpha).

    Grid = (rows // tm ['parallel'], N // tk ['arbitrary' reduction]).
    """
    k = pl.program_id(1)
    a = adj_ref[...]
    s = s_ref[...]
    if a.dtype != s.dtype:            # opt-in fp8 adjacency: upcast on the VPU
        a = a.astype(s.dtype)
    contrib = jnp.dot(a, s, preferred_element_type=jnp.float32)

    @pl.when(k == 0)
    def _():
        acc_ref[...] = contrib        # direct assign: no zero-init store pass

    @pl.when(k > 0)
    def _():
        acc_ref[...] += contrib

    @pl.when(k == pl.num_programs(1) - 1)
    def _():
        out_ref[...] = jnp.maximum(
            acc_ref[...] * (1.0 - alpha) + prev_ref[...] * alpha, 0.0
        ).astype(out_ref.dtype)


def _propagate_fused_kernel(adj_ref, s0_ref, prev_ref, out_ref,
                            acc_ref, s_pp_ref, *, alpha, n_pad, tm, tk):
    """All K propagation iterations in one pallas_call (single-core path).

    Grid = (iterations, rows // tm, N // tk), all 'arbitrary' (sequential).
    Running support lives in a ping-pong VMEM scratch (mxu dtype); prev/s0
    are VMEM-resident; only adj tiles stream from HBM each iteration.
    """
    it = pl.program_id(0)
    i = pl.program_id(1)
    k = pl.program_id(2)

    # Seed slot 1 of the ping-pong scratch with the initial support (once).
    # Iteration `it` reads slot (it-1) % 2 == (it+1) % 2 and writes slot it % 2.
    @pl.when((it == 0) & (i == 0) & (k == 0))
    def _():
        pltpu.sync_copy(s0_ref, s_pp_ref.at[pl.ds(n_pad, n_pad), :])

    read_base = ((it + 1) % 2) * n_pad
    write_base = (it % 2) * n_pad

    a = adj_ref[...]
    s = s_pp_ref[pl.ds(pl.multiple_of(read_base + k * tk, tk), tk), :]
    if a.dtype != s.dtype:            # opt-in fp8 adjacency: upcast on the VPU
        a = a.astype(s.dtype)
    contrib = jnp.dot(a, s, preferred_element_type=jnp.float32)

    @pl.when(k == 0)
    def _():
        acc_ref[...] = contrib

    @pl.when(k > 0)
    def _():
        acc_ref[...] += contrib

    @pl.when(k == pl.num_programs(2) - 1)
    def _():
        prev_tile = prev_ref[pl.ds(pl.multiple_of(i * tm, tm), tm), :]
        new = jnp.maximum(acc_ref[...] * (1.0 - alpha) + prev_tile * alpha, 0.0)
        s_pp_ref[pl.ds(pl.multiple_of(write_base + i * tm, tm), tm), :] = (
            new.astype(s_pp_ref.dtype))
        out_ref[...] = new.astype(out_ref.dtype)


# ---------------------------------------------------------------------------
# Wrapper / dispatcher.
# ---------------------------------------------------------------------------
def appnp_forward(x, weight, adj, *, alpha, iterations,
                  mxu_dtype=jnp.bfloat16, adj_dtype=None, mode="auto"):
    """APPNP layer forward (eval mode). mode in {'auto','fused_iters','per_iter'}."""
    n, fin = x.shape
    fout = weight.shape[1]
    assert adj.shape == (n, n)

    vmem_limit = _vmem_limit_bytes()
    two_cores = _num_tensorcores() >= 2
    adj_dt = mxu_dtype if adj_dtype is None else adj_dtype
    op_bytes = jnp.dtype(mxu_dtype).itemsize
    adj_bytes = jnp.dtype(adj_dt).itemsize

    # Zero-pad to lane-friendly multiples of 128 (numerically inert).
    n_pad = _round_up(n, 128)
    fout_pad = _round_up(fout, 128)
    x_p = _pad2d(x, n_pad, fin).astype(mxu_dtype)
    w_p = _pad2d(weight, fin, fout_pad).astype(mxu_dtype)
    adj_p = _pad2d(adj, n_pad, n_pad).astype(adj_dt)

    # Tile selection (prefer 512; keep >= 2 row blocks on two-TC parts).
    min_row_blocks = 2 if (two_cores and n_pad >= 256) else 1
    tm = _pick_tile(n_pad, preferred=512, min_blocks=min_row_blocks)
    tk = _pick_tile(n_pad, preferred=512)

    def step_vmem(tm_, tk_):
        return (2 * tm_ * tk_ * adj_bytes            # adj (double-buffered)
                + 2 * tk_ * fout_pad * op_bytes      # support slab
                + 2 * tm_ * fout_pad * 4             # prev row tile
                + 2 * tm_ * fout_pad * 4             # out row tile
                + tm_ * fout_pad * 4)                # accumulator

    def fused_vmem(tm_, tk_):
        return (2 * tm_ * tk_ * adj_bytes            # adj (double-buffered)
                + n_pad * fout_pad * (op_bytes + 4)  # resident s0 + prev
                + 2 * n_pad * fout_pad * op_bytes    # ping-pong support scratch
                + 2 * tm_ * fout_pad * 4             # out row tile
                + tm_ * fout_pad * 4)                # accumulator

    if mode == "auto":
        mode = "per_iter" if (two_cores and n_pad // tm >= 2) else "fused_iters"
    if mode == "fused_iters" and fused_vmem(128, 128) > vmem_limit // 2:
        mode = "per_iter"        # resident state would not fit VMEM: stream it

    budget = vmem_limit // 2
    est = fused_vmem if mode == "fused_iters" else step_vmem
    while est(tm, tk) > budget and max(tm, tk) > 128:
        if tk >= tm and tk > 128:
            tk //= 2
        else:
            tm //= 2

    # ---- Feature transform: support = x @ W (prev in f32, s0 in mxu dtype) ----
    prev_f32, s0 = pl.pallas_call(
        _transform_kernel,
        out_shape=(jax.ShapeDtypeStruct((n_pad, fout_pad), jnp.float32),
                   jax.ShapeDtypeStruct((n_pad, fout_pad), mxu_dtype)),
        grid=(n_pad // tm,),
        in_specs=[pl.BlockSpec((tm, fin), lambda i: (i, 0)),
                  pl.BlockSpec((fin, fout_pad), lambda i: (0, 0))],
        out_specs=(pl.BlockSpec((tm, fout_pad), lambda i: (i, 0)),
                   pl.BlockSpec((tm, fout_pad), lambda i: (i, 0))),
        compiler_params=pltpu.CompilerParams(
            dimension_semantics=("parallel",),
            vmem_limit_bytes=vmem_limit),
    )(x_p, w_p)

    if iterations == 0:
        return prev_f32[:n, :fout]

    if mode == "fused_iters":
        kernel = functools.partial(_propagate_fused_kernel, alpha=float(alpha),
                                   n_pad=n_pad, tm=tm, tk=tk)
        out = pl.pallas_call(
            kernel,
            out_shape=jax.ShapeDtypeStruct((n_pad, fout_pad), jnp.float32),
            grid=(iterations, n_pad // tm, n_pad // tk),
            in_specs=[
                pl.BlockSpec((tm, tk), lambda it, i, k: (i, k)),           # adj stream
                pl.BlockSpec((n_pad, fout_pad), lambda it, i, k: (0, 0)),  # s0 resident
                pl.BlockSpec((n_pad, fout_pad), lambda it, i, k: (0, 0)),  # prev resident
            ],
            out_specs=pl.BlockSpec((tm, fout_pad), lambda it, i, k: (i, 0)),
            scratch_shapes=[
                pltpu.VMEM((tm, fout_pad), jnp.float32),        # accumulator
                pltpu.VMEM((2 * n_pad, fout_pad), mxu_dtype),   # ping-pong support
            ],
            compiler_params=pltpu.CompilerParams(
                dimension_semantics=("arbitrary", "arbitrary", "arbitrary"),
                vmem_limit_bytes=vmem_limit),
        )(adj_p, s0, prev_f32)
        return out[:n, :fout]

    # ---- per-iteration path (row-parallel; megacore-friendly) ----
    def make_step(out_dtype):
        return pl.pallas_call(
            functools.partial(_propagate_step_kernel, alpha=float(alpha)),
            out_shape=jax.ShapeDtypeStruct((n_pad, fout_pad), out_dtype),
            grid=(n_pad // tm, n_pad // tk),
            in_specs=[
                pl.BlockSpec((tm, tk), lambda i, k: (i, k)),       # adj tile
                pl.BlockSpec((tk, fout_pad), lambda i, k: (k, 0)),  # support slab
                pl.BlockSpec((tm, fout_pad), lambda i, k: (i, 0)),  # prev row tile
            ],
            out_specs=pl.BlockSpec((tm, fout_pad), lambda i, k: (i, 0)),
            scratch_shapes=[pltpu.VMEM((tm, fout_pad), jnp.float32)],
            compiler_params=pltpu.CompilerParams(
                dimension_semantics=("parallel", "arbitrary"),
                vmem_limit_bytes=vmem_limit),
        )

    step_last = make_step(jnp.float32)
    step_mid = step_last if mxu_dtype == jnp.float32 else make_step(mxu_dtype)

    support = s0
    for it in range(iterations):
        step = step_last if it == iterations - 1 else step_mid
        support = step(adj_p, support, prev_f32)
    return support[:n, :fout]


# ---------------------------------------------------------------------------
# Plain-JAX reference (matches the PyTorch forward in eval mode).
# ---------------------------------------------------------------------------
def _reference(x, weight, adj, alpha, iterations):
    support = x @ weight
    prev = support
    for _ in range(iterations):
        support = (adj @ support) * (1.0 - alpha) + prev * alpha
        support = jnp.maximum(support, 0.0)
    return support


def _make_problem(key, n, fin, fout):
    k_x, k_w, k_adj = jax.random.split(key, 3)
    x = jax.random.normal(k_x, (n, fin), dtype=jnp.float32)
    # Weight: xavier_uniform_ with gain=1.414.
    gain = 1.414
    bound = gain * (6.0 / (fin + fout)) ** 0.5
    weight = jax.random.uniform(k_w, (fin, fout), dtype=jnp.float32,
                                minval=-bound, maxval=bound)
    # Dense adjacency: random sparse-ish binary graph + self loops, row-normalized.
    raw = (jax.random.uniform(k_adj, (n, n)) < 0.05).astype(jnp.float32)
    raw = jnp.maximum(raw, raw.T)
    raw = raw + jnp.eye(n, dtype=jnp.float32)
    deg = jnp.sum(raw, axis=1, keepdims=True)
    adj = raw / deg
    return x, weight, adj


if __name__ == "__main__":
    ALPHA = 0.1
    ITERATIONS = 4
    key = jax.random.PRNGKey(0)
    k_main, k_odd = jax.random.split(key)

    # --- Main problem: 512 nodes, 64 -> 256 features. -----------------------
    N, FIN, FOUT = 512, 64, 256
    x, weight, adj = _make_problem(k_main, N, FIN, FOUT)
    ref = _reference(x, weight, adj, ALPHA, ITERATIONS)

    # f32, single-call fused-iterations path (strict check).
    fwd_fused_f32 = jax.jit(functools.partial(
        appnp_forward, alpha=ALPHA, iterations=ITERATIONS,
        mxu_dtype=jnp.float32, mode="fused_iters"))
    out = jax.block_until_ready(fwd_fused_f32(x, weight, adj))
    assert out.shape == (N, FOUT)
    assert jnp.allclose(out, ref, atol=2e-3, rtol=2e-3), "fused_iters f32 mismatch"

    # f32, per-iteration (megacore) path (strict check).
    fwd_step_f32 = jax.jit(functools.partial(
        appnp_forward, alpha=ALPHA, iterations=ITERATIONS,
        mxu_dtype=jnp.float32, mode="per_iter"))
    out = jax.block_until_ready(fwd_step_f32(x, weight, adj))
    assert jnp.allclose(out, ref, atol=2e-3, rtol=2e-3), "per_iter f32 mismatch"

    # Default (bf16 MXU operands, f32 accumulation), auto-dispatched path.
    fwd_default = jax.jit(functools.partial(
        appnp_forward, alpha=ALPHA, iterations=ITERATIONS, mode="auto"))
    out = jax.block_until_ready(fwd_default(x, weight, adj))
    assert out.shape == (N, FOUT)
    assert jnp.allclose(out, ref, atol=0.1, rtol=0.1), "bf16 auto mismatch"

    # --- Unaligned shapes exercise the padding machinery (f32, strict). -----
    N2, FIN2, FOUT2 = 200, 48, 96
    x2, w2, adj2 = _make_problem(k_odd, N2, FIN2, FOUT2)
    ref2 = _reference(x2, w2, adj2, ALPHA, 3)
    fwd_odd = jax.jit(functools.partial(
        appnp_forward, alpha=ALPHA, iterations=3,
        mxu_dtype=jnp.float32, mode="auto"))
    out2 = jax.block_until_ready(fwd_odd(x2, w2, adj2))
    assert out2.shape == (N2, FOUT2)
    assert jnp.allclose(out2, ref2, atol=2e-3, rtol=2e-3), "padded f32 mismatch"

    # --- iterations == 0 degenerates to the feature transform. --------------
    fwd_zero = jax.jit(functools.partial(
        appnp_forward, alpha=ALPHA, iterations=0, mxu_dtype=jnp.float32))
    out0 = jax.block_until_ready(fwd_zero(x, weight, adj))
    assert jnp.allclose(out0, x @ weight, atol=1e-3, rtol=1e-3), "iters=0 mismatch"

    print("KERNEL_OK")
</pallas_src>

<mosaic_0001>
module attributes {stable_mosaic.version = 11 : i64} {
  func.func @_transform_kernel(%arg0: i32, %arg1: memref<512x64xf32, #tpu.memory_space<vmem>>, %arg2: memref<64x256xf32, #tpu.memory_space<vmem>>, %arg3: memref<512x256xf32, #tpu.memory_space<vmem>>, %arg4: memref<512x256xf32, #tpu.memory_space<vmem>>) attributes {dimension_semantics = [#tpu.dimension_semantics<parallel>], iteration_bounds = array<i64: 1>, scalar_prefetch = 0 : i64, scratch_operands = 0 : i64, tpu.core_type = #tpu.core_type<tc>, window_params = [{transform_indices = @transform_0, window_bounds = array<i64: 512, 64>}, {pipeline_mode = #tpu.pipeline_mode<synchronous>, transform_indices = @transform_1, window_bounds = array<i64: 64, 256>}, {transform_indices = @transform_2, window_bounds = array<i64: 512, 256>}, {transform_indices = @transform_3, window_bounds = array<i64: 512, 256>}]} {
    %c0 = arith.constant 0 : index
    %c0_0 = arith.constant 0 : index
    %0 = vector.load %arg1[%c0, %c0_0] : memref<512x64xf32, #tpu.memory_space<vmem>>, vector<512x64xf32>
    %c0_1 = arith.constant 0 : index
    %c0_2 = arith.constant 0 : index
    %1 = vector.load %arg2[%c0_1, %c0_2] : memref<64x256xf32, #tpu.memory_space<vmem>>, vector<64x256xf32>
    %cst = arith.constant dense<0.000000e+00> : vector<512x256xf32>
    %2 = tpu.matmul %0, %1, %cst {dimension_numbers = #tpu.dot_dimension_numbers<[1], [0], [0], [1], [0, 0, 1, 1], [], []>} : vector<512x64xf32>, vector<64x256xf32>, vector<512x256xf32> -> vector<512x256xf32>
    %c0_3 = arith.constant 0 : index
    %c0_4 = arith.constant 0 : index
    %3 = vector.load %arg3[%c0_3, %c0_4] : memref<512x256xf32, #tpu.memory_space<vmem>>, vector<512x256xf32>
    tpu.vector_store %arg3[%c0_3, %c0_4], %2 {strides = array<i32>} : memref<512x256xf32, #tpu.memory_space<vmem>>, vector<512x256xf32>,
    %c0_5 = arith.constant 0 : index
    %c0_6 = arith.constant 0 : index
    %4 = vector.load %arg4[%c0_5, %c0_6] : memref<512x256xf32, #tpu.memory_space<vmem>>, vector<512x256xf32>
    tpu.vector_store %arg4[%c0_5, %c0_6], %2 {strides = array<i32>} : memref<512x256xf32, #tpu.memory_space<vmem>>, vector<512x256xf32>,
    return
  }
  func.func @transform_0(%arg0: i32) -> (i32, i32) {
    %c0_i32 = arith.constant 0 : i32
    %c0_i32_0 = arith.constant 0 : i32
    return %arg0, %c0_i32 : i32, i32
  }
  func.func @transform_1(%arg0: i32) -> (i32, i32) {
    %c0_i32 = arith.constant 0 : i32
    %c0_i32_0 = arith.constant 0 : i32
    %c0_i32_1 = arith.constant 0 : i32
    return %c0_i32, %c0_i32_0 : i32, i32
  }
  func.func @transform_2(%arg0: i32) -> (i32, i32) {
    %c0_i32 = arith.constant 0 : i32
    %c0_i32_0 = arith.constant 0 : i32
    return %arg0, %c0_i32 : i32, i32
  }
  func.func @transform_3(%arg0: i32) -> (i32, i32) {
    %c0_i32 = arith.constant 0 : i32
    %c0_i32_0 = arith.constant 0 : i32
    return %arg0, %c0_i32 : i32, i32
  }
}

module attributes {stable_mosaic.version = 11 : i64} {
  func.func @_propagate_fused_kernel(%arg0: i32, %arg1: i32, %arg2: i32, %arg3: memref<512x512xf32, #tpu.memory_space<vmem>>, %arg4: memref<512x256xf32, #tpu.memory_space<vmem>>, %arg5: memref<512x256xf32, #tpu.memory_space<vmem>>, %arg6: memref<512x256xf32, #tpu.memory_space<vmem>>, %arg7: memref<512x256xf32, #tpu.memory_space<vmem>>, %arg8: memref<1024x256xf32, #tpu.memory_space<vmem>>) attributes {dimension_semantics = [#tpu.dimension_semantics<arbitrary>, #tpu.dimension_semantics<arbitrary>, #tpu.dimension_semantics<arbitrary>], iteration_bounds = array<i64: 4, 1, 1>, scalar_prefetch = 0 : i64, scratch_operands = 2 : i64, tpu.core_type = #tpu.core_type<tc>, window_params = [{transform_indices = @transform_0, window_bounds = array<i64: 512, 512>}, {pipeline_mode = #tpu.pipeline_mode<synchronous>, transform_indices = @transform_1, window_bounds = array<i64: 512, 256>}, {pipeline_mode = #tpu.pipeline_mode<synchronous>, transform_indices = @transform_2, window_bounds = array<i64: 512, 256>}, {transform_indices = @transform_3, window_bounds = array<i64: 512, 256>}]} {
    %c0_i32 = arith.constant 0 : i32
    %0 = arith.cmpi eq, %arg0, %c0_i32 : i32
    %c0_i32_0 = arith.constant 0 : i32
    %1 = arith.cmpi eq, %arg1, %c0_i32_0 : i32
    %2 = arith.andi %0, %1 : i1
    %c0_i32_1 = arith.constant 0 : i32
    %3 = arith.cmpi eq, %arg2, %c0_i32_1 : i32
    %4 = arith.andi %2, %3 : i1
    %5 = arith.extui %4 : i1 to i32
    %c0_i32_2 = arith.constant 0 : i32
    %6 = arith.cmpi ne, %5, %c0_i32_2 : i32
    scf.if %6 {
      "tpu.region"() ({
        %46 = tpu.sem_alloc : memref<!tpu.dma_semaphore, #tpu.memory_space<semaphore_mem>>
        %c512_i32_24 = arith.constant 512 : i32
        %c0_i32_25 = arith.constant 0 : i32
        %47 = tpu.memref_slice %arg8[%c512_i32_24, %c0_i32_25] : memref<1024x256xf32, #tpu.memory_space<vmem>> -> memref<512x256xf32, #tpu.memory_space<vmem>>
        tpu.enqueue_dma source(%arg4 : memref<512x256xf32, #tpu.memory_space<vmem>>) target(%47 : memref<512x256xf32, #tpu.memory_space<vmem>>) target_semaphore(%46 : memref<!tpu.dma_semaphore, #tpu.memory_space<semaphore_mem>>)
        %c512_i32_26 = arith.constant 512 : i32
        %c0_i32_27 = arith.constant 0 : i32
        %48 = tpu.memref_slice %arg8[%c512_i32_26, %c0_i32_27] : memref<1024x256xf32, #tpu.memory_space<vmem>> -> memref<512x256xf32, #tpu.memory_space<vmem>>
        tpu.wait_dma2 semaphore(%46 : memref<!tpu.dma_semaphore, #tpu.memory_space<semaphore_mem>>) src(%arg4 : memref<512x256xf32, #tpu.memory_space<vmem>>) dst(%48 : memref<512x256xf32, #tpu.memory_space<vmem>>)
        tpu.yield
      }) : () -> ()
    } else {
    }
    %c1_i32 = arith.constant 1 : i32
    %7 = arith.addi %arg0, %c1_i32 : i32
    %c2_i32 = arith.constant 2 : i32
    %c0_i32_3 = arith.constant 0 : i32
    %8 = arith.cmpi eq, %c2_i32, %c0_i32_3 : i32
    %c1_i32_4 = arith.constant 1 : i32
    %9 = arith.select %8, %c1_i32_4, %c2_i32 : i32
    %10 = arith.remsi %7, %9 : i32
    %c0_i32_5 = arith.constant 0 : i32
    %11 = arith.cmpi ne, %10, %c0_i32_5 : i32
    %c0_i32_6 = arith.constant 0 : i32
    %12 = arith.cmpi slt, %10, %c0_i32_6 : i32
    %c0_i32_7 = arith.constant 0 : i32
    %13 = arith.cmpi slt, %9, %c0_i32_7 : i32
    %14 = arith.xori %12, %13 : i1
    %15 = arith.andi %14, %11 : i1
    %16 = arith.addi %10, %9 : i32
    %17 = arith.select %15, %16, %10 : i32
    %c512_i32 = arith.constant 512 : i32
    %18 = arith.muli %17, %c512_i32 : i32
    %c2_i32_8 = arith.constant 2 : i32
    %c0_i32_9 = arith.constant 0 : i32
    %19 = arith.cmpi eq, %c2_i32_8, %c0_i32_9 : i32
    %c1_i32_10 = arith.constant 1 : i32
    %20 = arith.select %19, %c1_i32_10, %c2_i32_8 : i32
    %21 = arith.remsi %arg0, %20 : i32
    %c0_i32_11 = arith.constant 0 : i32
    %22 = arith.cmpi ne, %21, %c0_i32_11 : i32
    %c0_i32_12 = arith.constant 0 : i32
    %23 = arith.cmpi slt, %21, %c0_i32_12 : i32
    %c0_i32_13 = arith.constant 0 : i32
    %24 = arith.cmpi slt, %20, %c0_i32_13 : i32
    %25 = arith.xori %23, %24 : i1
    %26 = arith.andi %25, %22 : i1
    %27 = arith.addi %21, %20 : i32
    %28 = arith.select %26, %27, %21 : i32
    %c512_i32_14 = arith.constant 512 : i32
    %29 = arith.muli %28, %c512_i32_14 : i32
    %c0 = arith.constant 0 : index
    %c0_15 = arith.constant 0 : index
    %30 = vector.load %arg3[%c0, %c0_15] : memref<512x512xf32, #tpu.memory_space<vmem>>, vector<512x512xf32>
    %c512_i32_16 = arith.constant 512 : i32
    %31 = arith.muli %arg2, %c512_i32_16 : i32
    %32 = arith.addi %18, %31 : i32
    %33 = tpu.assume_multiple %32, 512 : i32
    %34 = arith.index_cast %33 : i32 to index
    %c0_17 = arith.constant 0 : index
    %35 = vector.load %arg8[%34, %c0_17] : memref<1024x256xf32, #tpu.memory_space<vmem>>, vector<512x256xf32>
    %cst = arith.constant dense<0.000000e+00> : vector<512x256xf32>
    %36 = tpu.matmul %30, %35, %cst {dimension_numbers = #tpu.dot_dimension_numbers<[1], [0], [0], [1], [0, 0, 1, 1], [], []>} : vector<512x512xf32>, vector<512x256xf32>, vector<512x256xf32> -> vector<512x256xf32>
    %c0_i32_18 = arith.constant 0 : i32
    %37 = arith.cmpi eq, %arg2, %c0_i32_18 : i32
    %38 = arith.extui %37 : i1 to i32
    %c0_i32_19 = arith.constant 0 : i32
    %39 = arith.cmpi ne, %38, %c0_i32_19 : i32
    scf.if %39 {
      %c0_24 = arith.constant 0 : index
      %c0_25 = arith.constant 0 : index
      %46 = vector.load %arg7[%c0_24, %c0_25] : memref<512x256xf32, #tpu.memory_space<vmem>>, vector<512x256xf32>
      tpu.vector_store %arg7[%c0_24, %c0_25], %36 {strides = array<i32>} : memref<512x256xf32, #tpu.memory_space<vmem>>, vector<512x256xf32>,
    } else {
    }
    %c0_i32_20 = arith.constant 0 : i32
    %40 = arith.cmpi sgt, %arg2, %c0_i32_20 : i32
    %41 = arith.extui %40 : i1 to i32
    %c0_i32_21 = arith.constant 0 : i32
    %42 = arith.cmpi ne, %41, %c0_i32_21 : i32
    scf.if %42 {
      %c0_24 = arith.constant 0 : index
      %c0_25 = arith.constant 0 : index
      %46 = vector.load %arg7[%c0_24, %c0_25] : memref<512x256xf32, #tpu.memory_space<vmem>>, vector<512x256xf32>
      %47 = arith.addf %46, %36 : vector<512x256xf32>
      %c0_26 = arith.constant 0 : index
      %c0_27 = arith.constant 0 : index
      %48 = vector.load %arg7[%c0_26, %c0_27] : memref<512x256xf32, #tpu.memory_space<vmem>>, vector<512x256xf32>
      tpu.vector_store %arg7[%c0_26, %c0_27], %47 {strides = array<i32>} : memref<512x256xf32, #tpu.memory_space<vmem>>, vector<512x256xf32>,
    } else {
    }
    %c0_i32_22 = arith.constant 0 : i32
    %43 = arith.cmpi eq, %arg2, %c0_i32_22 : i32
    %44 = arith.extui %43 : i1 to i32
    %c0_i32_23 = arith.constant 0 : i32
    %45 = arith.cmpi ne, %44, %c0_i32_23 : i32
    scf.if %45 {
      %c512_i32_24 = arith.constant 512 : i32
      %46 = arith.muli %arg1, %c512_i32_24 : i32
      %47 = tpu.assume_multiple %46, 512 : i32
      %48 = arith.index_cast %47 : i32 to index
      %c0_25 = arith.constant 0 : index
      %49 = vector.load %arg5[%48, %c0_25] : memref<512x256xf32, #tpu.memory_space<vmem>>, vector<512x256xf32>
      %c0_26 = arith.constant 0 : index
      %c0_27 = arith.constant 0 : index
      %50 = vector.load %arg7[%c0_26, %c0_27] : memref<512x256xf32, #tpu.memory_space<vmem>>, vector<512x256xf32>
      %cst_28 = arith.constant 0.899999976 : f32
      %51 = vector.broadcast %cst_28 : f32 to vector<512x256xf32>
      %52 = arith.mulf %50, %51 : vector<512x256xf32>
      %cst_29 = arith.constant 1.000000e-01 : f32
      %53 = vector.broadcast %cst_29 : f32 to vector<512x256xf32>
      %54 = arith.mulf %49, %53 : vector<512x256xf32>
      %55 = arith.addf %52, %54 : vector<512x256xf32>
      %cst_30 = arith.constant 0.000000e+00 : f32
      %56 = vector.broadcast %cst_30 : f32 to vector<512x256xf32>
      %57 = arith.maximumf %55, %56 : vector<512x256xf32>
      %c512_i32_31 = arith.constant 512 : i32
      %58 = arith.muli %arg1, %c512_i32_31 : i32
      %59 = arith.addi %29, %58 : i32
      %60 = tpu.assume_multiple %59, 512 : i32
      %61 = arith.index_cast %60 : i32 to index
      %c0_32 = arith.constant 0 : index
      %62 = vector.load %arg8[%61, %c0_32] : memref<1024x256xf32, #tpu.memory_space<vmem>>, vector<512x256xf32>
      tpu.vector_store %arg8[%61, %c0_32], %57 {strides = array<i32>} : memref<1024x256xf32, #tpu.memory_space<vmem>>, vector<512x256xf32>,
      %c0_33 = arith.constant 0 : index
      %c0_34 = arith.constant 0 : index
      %63 = vector.load %arg6[%c0_33, %c0_34] : memref<512x256xf32, #tpu.memory_space<vmem>>, vector<512x256xf32>
      tpu.vector_store %arg6[%c0_33, %c0_34], %57 {strides = array<i32>} : memref<512x256xf32, #tpu.memory_space<vmem>>, vector<512x256xf32>,
    } else {
    }
    return
  }
  func.func @transform_0(%arg0: i32, %arg1: i32, %arg2: i32) -> (i32, i32) {
    %c0_i32 = arith.constant 0 : i32
    return %arg1, %arg2 : i32, i32
  }
  func.func @transform_1(%arg0: i32, %arg1: i32, %arg2: i32) -> (i32, i32) {
    %c0_i32 = arith.constant 0 : i32
    %c0_i32_0 = arith.constant 0 : i32
    %c0_i32_1 = arith.constant 0 : i32
    return %c0_i32, %c0_i32_0 : i32, i32
  }
  func.func @transform_2(%arg0: i32, %arg1: i32, %arg2: i32) -> (i32, i32) {
    %c0_i32 = arith.constant 0 : i32
    %c0_i32_0 = arith.constant 0 : i32
    %c0_i32_1 = arith.constant 0 : i32
    return %c0_i32, %c0_i32_0 : i32, i32
  }
  func.func @transform_3(%arg0: i32, %arg1: i32, %arg2: i32) -> (i32, i32) {
    %c0_i32 = arith.constant 0 : i32
    %c0_i32_0 = arith.constant 0 : i32
    return %arg1, %c0_i32 : i32, i32
  }
}

</mosaic_0001>

<llo_original>
// kernel: appnp_forward.2
$region0: #{appnp_forward.2}
  #allocation0 [shape = 'u32[]', space=smem, size = 0x4, offset = 0x4, fixed_abs, tag = 'smem constant byte address 0x4 - core index']
  #allocation1 [shape = 'u32[72,128]{1,0:T(1,128)}', space=vmem, size = 0x9000, scoped, tag = 'internal scratch']
  %s0 = inlined_call_operand.vmem [shape: f32[512,64], index: 0, kind: input, shape index: {}]
  %s1 = inlined_call_operand.vmem [shape: f32[64,256], index: 1, kind: input, shape index: {}]
  %s2 = inlined_call_operand.vmem [shape: f32[512,256], index: 2, kind: output, shape index: {0}]
  %s3 = inlined_call_operand.vmem [shape: f32[512,256], index: 3, kind: output, shape index: {1}]
  %4 = xla_tuple %s2, %s3
  %s5 = sld [smem:[#allocation0]]
  $region26: #{appnp_forward.2} parent=0
    _
  %s7 = ssub.s32 1, %s5
  %s8 = scalar_select 0, %s7, %s5
  // Predicated region
  $region2: #{appnp_forward.2} parent=0 // pred_check
    _
  $region3: #{appnp_forward.2} parent=0 // pred_check_branch
    %10 = sbr.rel (0) target = $region5
  $region4: #{appnp_forward.2} parent=0 // pred_region
    _
  $region5: #{appnp_forward.2} parent=0 // pred_fallthru
    _
  // Predicated region
  $region6: #{appnp_forward.2} parent=0 // pred_check
    _
  $region7: #{appnp_forward.2} parent=0 // pred_check_branch
    %12 = sbr.rel (0) target = $region9
  $region8: #{appnp_forward.2} parent=0 // pred_region
    _
  $region9: #{appnp_forward.2} parent=0 // pred_fallthru
    _
  %v13 = vld [vmem:[%s0] sm:$0xff]
  %v14 = vld [vmem:[%s0 + $0x8] sm:$0xff]
  %v15 = vld [vmem:[%s0 + $0x10] sm:$0xff]
  %v16 = vld [vmem:[%s0 + $0x18] sm:$0xff]
  %v17 = vld [vmem:[%s0 + $0x20] sm:$0xff]
  %v18 = vld [vmem:[%s0 + $0x28] sm:$0xff]
  %v19 = vld [vmem:[%s0 + $0x30] sm:$0xff]
  %v20 = vld [vmem:[%s0 + $0x38] sm:$0xff]
  %v21 = vld [vmem:[%s0 + $0x40] sm:$0xff]
  %v22 = vld [vmem:[%s0 + $0x48] sm:$0xff]
  %v23 = vld [vmem:[%s0 + $0x50] sm:$0xff]
  %v24 = vld [vmem:[%s0 + $0x58] sm:$0xff]
  %v25 = vld [vmem:[%s0 + $0x60] sm:$0xff]
  %v26 = vld [vmem:[%s0 + $0x68] sm:$0xff]
  %v27 = vld [vmem:[%s0 + $0x70] sm:$0xff]
  %v28 = vld [vmem:[%s0 + $0x78] sm:$0xff]
  %v29 = vld [vmem:[%s0 + $0x80] sm:$0xff]
  %v30 = vld [vmem:[%s0 + $0x88] sm:$0xff]
  %v31 = vld [vmem:[%s0 + $0x90] sm:$0xff]
  %v32 = vld [vmem:[%s0 + $0x98] sm:$0xff]
  %v33 = vld [vmem:[%s0 + $0xa0] sm:$0xff]
  %v34 = vld [vmem:[%s0 + $0xa8] sm:$0xff]
  %v35 = vld [vmem:[%s0 + $0xb0] sm:$0xff]
  %v36 = vld [vmem:[%s0 + $0xb8] sm:$0xff]
  %v37 = vld [vmem:[%s0 + $0xc0] sm:$0xff]
  %v38 = vld [vmem:[%s0 + $0xc8] sm:$0xff]
  %v39 = vld [vmem:[%s0 + $0xd0] sm:$0xff]
  %v40 = vld [vmem:[%s0 + $0xd8] sm:$0xff]
  %v41 = vld [vmem:[%s0 + $0xe0] sm:$0xff]
  %v42 = vld [vmem:[%s0 + $0xe8] sm:$0xff]
  %v43 = vld [vmem:[%s0 + $0xf0] sm:$0xff]
  %v44 = vld [vmem:[%s0 + $0xf8] sm:$0xff]
  %v45 = vld [vmem:[%s0 + $0x100] sm:$0xff]
  %v46 = vld [vmem:[%s0 + $0x108] sm:$0xff]
  %v47 = vld [vmem:[%s0 + $0x110] sm:$0xff]
  %v48 = vld [vmem:[%s0 + $0x118] sm:$0xff]
  %v49 = vld [vmem:[%s0 + $0x120] sm:$0xff]
  %v50 = vld [vmem:[%s0 + $0x128] sm:$0xff]
  %v51 = vld [vmem:[%s0 + $0x130] sm:$0xff]
  %v52 = vld [vmem:[%s0 + $0x138] sm:$0xff]
  %v53 = vld [vmem:[%s0 + $0x140] sm:$0xff]
  %v54 = vld [vmem:[%s0 + $0x148] sm:$0xff]
  %v55 = vld [vmem:[%s0 + $0x150] sm:$0xff]
  %v56 = vld [vmem:[%s0 + $0x158] sm:$0xff]
  %v57 = vld [vmem:[%s0 + $0x160] sm:$0xff]
  %v58 = vld [vmem:[%s0 + $0x168] sm:$0xff]
  %v59 = vld [vmem:[%s0 + $0x170] sm:$0xff]
  %v60 = vld [vmem:[%s0 + $0x178] sm:$0xff]
  %v61 = vld [vmem:[%s0 + $0x180] sm:$0xff]
  %v62 = vld [vmem:[%s0 + $0x188] sm:$0xff]
  %v63 = vld [vmem:[%s0 + $0x190] sm:$0xff]
  %v64 = vld [vmem:[%s0 + $0x198] sm:$0xff]
  %v65 = vld [vmem:[%s0 + $0x1a0] sm:$0xff]
  %v66 = vld [vmem:[%s0 + $0x1a8] sm:$0xff]
  %v67 = vld [vmem:[%s0 + $0x1b0] sm:$0xff]
  %v68 = vld [vmem:[%s0 + $0x1b8] sm:$0xff]
  %v69 = vld [vmem:[%s0 + $0x1c0] sm:$0xff]
  %v70 = vld [vmem:[%s0 + $0x1c8] sm:$0xff]
  %v71 = vld [vmem:[%s0 + $0x1d0] sm:$0xff]
  %v72 = vld [vmem:[%s0 + $0x1d8] sm:$0xff]
  %v73 = vld [vmem:[%s0 + $0x1e0] sm:$0xff]
  %v74 = vld [vmem:[%s0 + $0x1e8] sm:$0xff]
  %v75 = vld [vmem:[%s0 + $0x1f0] sm:$0xff]
  %v76 = vld [vmem:[%s0 + $0x1f8] sm:$0xff]
  %v77 = vld [vmem:[%s1] sm:$0xff]
  %v78 = vld [vmem:[%s1 + $0x8] sm:$0xff]
  %v79 = vld [vmem:[%s1 + $0x10] sm:$0xff]
  %v80 = vld [vmem:[%s1 + $0x18] sm:$0xff]
  %v81 = vld [vmem:[%s1 + $0x20] sm:$0xff]
  %v82 = vld [vmem:[%s1 + $0x28] sm:$0xff]
  %v83 = vld [vmem:[%s1 + $0x30] sm:$0xff]
  %v84 = vld [vmem:[%s1 + $0x38] sm:$0xff]
  %v85 = vld [vmem:[%s1 + $0x40] sm:$0xff]
  %v86 = vld [vmem:[%s1 + $0x48] sm:$0xff]
  %v87 = vld [vmem:[%s1 + $0x50] sm:$0xff]
  %v88 = vld [vmem:[%s1 + $0x58] sm:$0xff]
  %v89 = vld [vmem:[%s1 + $0x60] sm:$0xff]
  %v90 = vld [vmem:[%s1 + $0x68] sm:$0xff]
  %v91 = vld [vmem:[%s1 + $0x70] sm:$0xff]
  %v92 = vld [vmem:[%s1 + $0x78] sm:$0xff]
  %vm93 = vcmask 523264
  %v95 = vsel %vm93, %v13, 0
  %v98 = vsel %vm93, %v14, 0
  %v101 = vsel %vm93, %v15, 0
  %v104 = vsel %vm93, %v16, 0
  %v107 = vsel %vm93, %v17, 0
  %v110 = vsel %vm93, %v18, 0
  %v113 = vsel %vm93, %v19, 0
  %v116 = vsel %vm93, %v20, 0
  %v119 = vsel %vm93, %v21, 0
  %v122 = vsel %vm93, %v22, 0
  %v125 = vsel %vm93, %v23, 0
  %v128 = vsel %vm93, %v24, 0
  %v131 = vsel %vm93, %v25, 0
  %v134 = vsel %vm93, %v26, 0
  %v137 = vsel %vm93, %v27, 0
  %v140 = vsel %vm93, %v28, 0
  %v143 = vsel %vm93, %v29, 0
  %v146 = vsel %vm93, %v30, 0
  %v149 = vsel %vm93, %v31, 0
  %v152 = vsel %vm93, %v32, 0
  %v155 = vsel %vm93, %v33, 0
  %v158 = vsel %vm93, %v34, 0
  %v161 = vsel %vm93, %v35, 0
  %v164 = vsel %vm93, %v36, 0
  %v167 = vsel %vm93, %v37, 0
  %v170 = vsel %vm93, %v38, 0
  %v173 = vsel %vm93, %v39, 0
  %v176 = vsel %vm93, %v40, 0
  %v179 = vsel %vm93, %v41, 0
  %v182 = vsel %vm93, %v42, 0
  %v185 = vsel %vm93, %v43, 0
  %v188 = vsel %vm93, %v44, 0
  %v191 = vsel %vm93, %v45, 0
  %v194 = vsel %vm93, %v46, 0
  %v197 = vsel %vm93, %v47, 0
  %v200 = vsel %vm93, %v48, 0
  %v203 = vsel %vm93, %v49, 0
  %v206 = vsel %vm93, %v50, 0
  %v209 = vsel %vm93, %v51, 0
  %v212 = vsel %vm93, %v52, 0
  %v215 = vsel %vm93, %v53, 0
  %v218 = vsel %vm93, %v54, 0
  %v221 = vsel %vm93, %v55, 0
  %v224 = vsel %vm93, %v56, 0
  %v227 = vsel %vm93, %v57, 0
  %v230 = vsel %vm93, %v58, 0
  %v233 = vsel %vm93, %v59, 0
  %v236 = vsel %vm93, %v60, 0
  %v239 = vsel %vm93, %v61, 0
  %v242 = vsel %vm93, %v62, 0
  %v245 = vsel %vm93, %v63, 0
  %v248 = vsel %vm93, %v64, 0
  %v251 = vsel %vm93, %v65, 0
  %v254 = vsel %vm93, %v66, 0
  %v257 = vsel %vm93, %v67, 0
  %v260 = vsel %vm93, %v68, 0
  %v263 = vsel %vm93, %v69, 0
  %v266 = vsel %vm93, %v70, 0
  %v269 = vsel %vm93, %v71, 0
  %v272 = vsel %vm93, %v72, 0
  %v275 = vsel %vm93, %v73, 0
  %v278 = vsel %vm93, %v74, 0
  %v281 = vsel %vm93, %v75, 0
  %v284 = vsel %vm93, %v76, 0
  %286 = vmatpush.msra.mxu0 0.0
  %287 = vmatpush.msra.mxu0 0.0
  %288 = vmatpush.msra.mxu0 0.0
  %289 = vmatpush.msra.mxu0 0.0
  %290 = vmatpush.msra.mxu0 0.0
  %291 = vmatpush.msra.mxu0 0.0
  %292 = vmatpush.msra.mxu0 0.0
  %293 = vmatpush.msra.mxu0 0.0
  %294 = vmatpush.msra.mxu0 %v91
  %295 = vmatpush.msra.mxu0 %v89
  %296 = vmatpush.msra.mxu0 %v87
  %297 = vmatpush.msra.mxu0 %v85
  %298 = vmatpush.msra.mxu0 %v83
  %299 = vmatpush.msra.mxu0 %v81
  %300 = vmatpush.msra.mxu0 %v79
  %301 = vmatpush.msra.mxu0 %v77
  %302 = vmatmul.f32.gmra.mxu0 %v95
  %v303 = vpop.f32.mrf.mxu0
  %v304 = vadd.f32 0.0, %v303
  %305 = vmatmul.f32.gmra.mxu0 %v98
  %v306 = vpop.f32.mrf.mxu0
  %v307 = vadd.f32 0.0, %v306
  %308 = vmatmul.f32.gmra.mxu0 %v101
  %v309 = vpop.f32.mrf.mxu0
  %v310 = vadd.f32 0.0, %v309
  %311 = vmatmul.f32.gmra.mxu0 %v104
  %v312 = vpop.f32.mrf.mxu0
  %v313 = vadd.f32 0.0, %v312
  %314 = vmatmul.f32.gmra.mxu0 %v107
  %v315 = vpop.f32.mrf.mxu0
  %v316 = vadd.f32 0.0, %v315
  %317 = vmatmul.f32.gmra.mxu0 %v110
  %v318 = vpop.f32.mrf.mxu0
  %v319 = vadd.f32 0.0, %v318
  %320 = vmatmul.f32.gmra.mxu0 %v113
  %v321 = vpop.f32.mrf.mxu0
  %v322 = vadd.f32 0.0, %v321
  %323 = vmatmul.f32.gmra.mxu0 %v116
  %v324 = vpop.f32.mrf.mxu0
  %v325 = vadd.f32 0.0, %v324
  %326 = vmatmul.f32.gmra.mxu0 %v119
  %v327 = vpop.f32.mrf.mxu0
  %v328 = vadd.f32 0.0, %v327
  %329 = vmatmul.f32.gmra.mxu0 %v122
  %v330 = vpop.f32.mrf.mxu0
  %v331 = vadd.f32 0.0, %v330
  %332 = vmatmul.f32.gmra.mxu0 %v125
  %v333 = vpop.f32.mrf.mxu0
  %v334 = vadd.f32 0.0, %v333
  %335 = vmatmul.f32.gmra.mxu0 %v128
  %v336 = vpop.f32.mrf.mxu0
  %v337 = vadd.f32 0.0, %v336
  %338 = vmatmul.f32.gmra.mxu0 %v131
  %v339 = vpop.f32.mrf.mxu0
  %v340 = vadd.f32 0.0, %v339
  %341 = vmatmul.f32.gmra.mxu0 %v134
  %v342 = vpop.f32.mrf.mxu0
  %v343 = vadd.f32 0.0, %v342
  %344 = vmatmul.f32.gmra.mxu0 %v137
  %v345 = vpop.f32.mrf.mxu0
  %v346 = vadd.f32 0.0, %v345
  %347 = vmatmul.f32.gmra.mxu0 %v140
  %v348 = vpop.f32.mrf.mxu0
  %v349 = vadd.f32 0.0, %v348
  %350 = vmatmul.f32.gmra.mxu0 %v143
  %v351 = vpop.f32.mrf.mxu0
  %v352 = vadd.f32 0.0, %v351
  %353 = vmatmul.f32.gmra.mxu0 %v146
  %v354 = vpop.f32.mrf.mxu0
  %v355 = vadd.f32 0.0, %v354
  %356 = vmatmul.f32.gmra.mxu0 %v149
  %v357 = vpop.f32.mrf.mxu0
  %v358 = vadd.f32 0.0, %v357
  %359 = vmatmul.f32.gmra.mxu0 %v152
  %v360 = vpop.f32.mrf.mxu0
  %v361 = vadd.f32 0.0, %v360
  %362 = vmatmul.f32.gmra.mxu0 %v155
  %v363 = vpop.f32.mrf.mxu0
  %v364 = vadd.f32 0.0, %v363
  %365 = vmatmul.f32.gmra.mxu0 %v158
  %v366 = vpop.f32.mrf.mxu0
  %v367 = vadd.f32 0.0, %v366
  %368 = vmatmul.f32.gmra.mxu0 %v161
  %v369 = vpop.f32.mrf.mxu0
  %v370 = vadd.f32 0.0, %v369
  %371 = vmatmul.f32.gmra.mxu0 %v164
  %v372 = vpop.f32.mrf.mxu0
  %v373 = vadd.f32 0.0, %v372
  %374 = vmatmul.f32.gmra.mxu0 %v167
  %v375 = vpop.f32.mrf.mxu0
  %v376 = vadd.f32 0.0, %v375
  %377 = vmatmul.f32.gmra.mxu0 %v170
  %v378 = vpop.f32.mrf.mxu0
  %v379 = vadd.f32 0.0, %v378
  %380 = vmatmul.f32.gmra.mxu0 %v173
  %v381 = vpop.f32.mrf.mxu0
  %v382 = vadd.f32 0.0, %v381
  %383 = vmatmul.f32.gmra.mxu0 %v176
  %v384 = vpop.f32.mrf.mxu0
  %v385 = vadd.f32 0.0, %v384
  %386 = vmatmul.f32.gmra.mxu0 %v179
  %v387 = vpop.f32.mrf.mxu0
  %v388 = vadd.f32 0.0, %v387
  %389 = vmatmul.f32.gmra.mxu0 %v182
  %v390 = vpop.f32.mrf.mxu0
  %v391 = vadd.f32 0.0, %v390
  %392 = vmatmul.f32.gmra.mxu0 %v185
  %v393 = vpop.f32.mrf.mxu0
  %v394 = vadd.f32 0.0, %v393
  %395 = vmatmul.f32.gmra.mxu0 %v188
  %v396 = vpop.f32.mrf.mxu0
  %v397 = vadd.f32 0.0, %v396
  %398 = vmatmul.f32.gmra.mxu0 %v191
  %v399 = vpop.f32.mrf.mxu0
  %v400 = vadd.f32 0.0, %v399
  %401 = vmatmul.f32.gmra.mxu0 %v194
  %v402 = vpop.f32.mrf.mxu0
  %v403 = vadd.f32 0.0, %v402
  %404 = vmatmul.f32.gmra.mxu0 %v197
  %v405 = vpop.f32.mrf.mxu0
  %v406 = vadd.f32 0.0, %v405
  %407 = vmatmul.f32.gmra.mxu0 %v200
  %v408 = vpop.f32.mrf.mxu0
  %v409 = vadd.f32 0.0, %v408
  %410 = vmatmul.f32.gmra.mxu0 %v203
  %v411 = vpop.f32.mrf.mxu0
  %v412 = vadd.f32 0.0, %v411
  %413 = vmatmul.f32.gmra.mxu0 %v206
  %v414 = vpop.f32.mrf.mxu0
  %v415 = vadd.f32 0.0, %v414
  %416 = vmatmul.f32.gmra.mxu0 %v209
  %v417 = vpop.f32.mrf.mxu0
  %v418 = vadd.f32 0.0, %v417
  %419 = vmatmul.f32.gmra.mxu0 %v212
  %v420 = vpop.f32.mrf.mxu0
  %v421 = vadd.f32 0.0, %v420
  %422 = vmatmul.f32.gmra.mxu0 %v215
  %v423 = vpop.f32.mrf.mxu0
  %v424 = vadd.f32 0.0, %v423
  %425 = vmatmul.f32.gmra.mxu0 %v218
  %v426 = vpop.f32.mrf.mxu0
  %v427 = vadd.f32 0.0, %v426
  %428 = vmatmul.f32.gmra.mxu0 %v221
  %v429 = vpop.f32.mrf.mxu0
  %v430 = vadd.f32 0.0, %v429
  %431 = vmatmul.f32.gmra.mxu0 %v224
  %v432 = vpop.f32.mrf.mxu0
  %v433 = vadd.f32 0.0, %v432
  %434 = vmatmul.f32.gmra.mxu0 %v227
  %v435 = vpop.f32.mrf.mxu0
  %v436 = vadd.f32 0.0, %v435
  %437 = vmatmul.f32.gmra.mxu0 %v230
  %v438 = vpop.f32.mrf.mxu0
  %v439 = vadd.f32 0.0, %v438
  %440 = vmatmul.f32.gmra.mxu0 %v233
  %v441 = vpop.f32.mrf.mxu0
  %v442 = vadd.f32 0.0, %v441
  %443 = vmatmul.f32.gmra.mxu0 %v236
  %v444 = vpop.f32.mrf.mxu0
  %v445 = vadd.f32 0.0, %v444
  %446 = vmatmul.f32.gmra.mxu0 %v239
  %v447 = vpop.f32.mrf.mxu0
  %v448 = vadd.f32 0.0, %v447
  %449 = vmatmul.f32.gmra.mxu0 %v242
  %v450 = vpop.f32.mrf.mxu0
  %v451 = vadd.f32 0.0, %v450
  %452 = vmatmul.f32.gmra.mxu0 %v245
  %v453 = vpop.f32.mrf.mxu0
  %v454 = vadd.f32 0.0, %v453
  %455 = vmatmul.f32.gmra.mxu0 %v248
  %v456 = vpop.f32.mrf.mxu0
  %v457 = vadd.f32 0.0, %v456
  %458 = vmatmul.f32.gmra.mxu0 %v251
  %v459 = vpop.f32.mrf.mxu0
  %v460 = vadd.f32 0.0, %v459
  %461 = vmatmul.f32.gmra.mxu0 %v254
  %v462 = vpop.f32.mrf.mxu0
  %v463 = vadd.f32 0.0, %v462
  %464 = vmatmul.f32.gmra.mxu0 %v257
  %v465 = vpop.f32.mrf.mxu0
  %v466 = vadd.f32 0.0, %v465
  %467 = vmatmul.f32.gmra.mxu0 %v260
  %v468 = vpop.f32.mrf.mxu0
  %v469 = vadd.f32 0.0, %v468
  %470 = vmatmul.f32.gmra.mxu0 %v263
  %v471 = vpop.f32.mrf.mxu0
  %v472 = vadd.f32 0.0, %v471
  %473 = vmatmul.f32.gmra.mxu0 %v266
  %v474 = vpop.f32.mrf.mxu0
  %v475 = vadd.f32 0.0, %v474
  %476 = vmatmul.f32.gmra.mxu0 %v269
  %v477 = vpop.f32.mrf.mxu0
  %v478 = vadd.f32 0.0, %v477
  %479 = vmatmul.f32.gmra.mxu0 %v272
  %v480 = vpop.f32.mrf.mxu0
  %v481 = vadd.f32 0.0, %v480
  %482 = vmatmul.f32.gmra.mxu0 %v275
  %v483 = vpop.f32.mrf.mxu0
  %v484 = vadd.f32 0.0, %v483
  %485 = vmatmul.f32.gmra.mxu0 %v278
  %v486 = vpop.f32.mrf.mxu0
  %v487 = vadd.f32 0.0, %v486
  %488 = vmatmul.f32.gmra.mxu0 %v281
  %v489 = vpop.f32.mrf.mxu0
  %v490 = vadd.f32 0.0, %v489
  %491 = vmatmul.f32.gmra.mxu0 %v284
  %v492 = vpop.f32.mrf.mxu0
  %v493 = vadd.f32 0.0, %v492
  %494 = vdwg.mxu0
  %495 = vmatpush.msra.mxu0 0.0
  %496 = vmatpush.msra.mxu0 0.0
  %497 = vmatpush.msra.mxu0 0.0
  %498 = vmatpush.msra.mxu0 0.0
  %499 = vmatpush.msra.mxu0 0.0
  %500 = vmatpush.msra.mxu0 0.0
  %501 = vmatpush.msra.mxu0 0.0
  %502 = vmatpush.msra.mxu0 0.0
  %503 = vmatpush.msra.mxu0 %v92
  %504 = vmatpush.msra.mxu0 %v90
  %505 = vmatpush.msra.mxu0 %v88
  %506 = vmatpush.msra.mxu0 %v86
  %507 = vmatpush.msra.mxu0 %v84
  %508 = vmatpush.msra.mxu0 %v82
  %509 = vmatpush.msra.mxu0 %v80
  %510 = vmatpush.msra.mxu0 %v78
  %511 = vmatmul.f32.gmra.mxu0 %v95
  %v512 = vpop.f32.mrf.mxu0
  %v513 = vadd.f32 0.0, %v512
  %514 = vmatmul.f32.gmra.mxu0 %v98
  %v515 = vpop.f32.mrf.mxu0
  %v516 = vadd.f32 0.0, %v515
  %517 = vmatmul.f32.gmra.mxu0 %v101
  %v518 = vpop.f32.mrf.mxu0
  %v519 = vadd.f32 0.0, %v518
  %520 = vmatmul.f32.gmra.mxu0 %v104
  %v521 = vpop.f32.mrf.mxu0
  %v522 = vadd.f32 0.0, %v521
  %523 = vmatmul.f32.gmra.mxu0 %v107
  %v524 = vpop.f32.mrf.mxu0
  %v525 = vadd.f32 0.0, %v524
  %526 = vmatmul.f32.gmra.mxu0 %v110
  %v527 = vpop.f32.mrf.mxu0
  %v528 = vadd.f32 0.0, %v527
  %529 = vmatmul.f32.gmra.mxu0 %v113
  %v530 = vpop.f32.mrf.mxu0
  %v531 = vadd.f32 0.0, %v530
  %532 = vmatmul.f32.gmra.mxu0 %v116
  %v533 = vpop.f32.mrf.mxu0
  %v534 = vadd.f32 0.0, %v533
  %535 = vmatmul.f32.gmra.mxu0 %v119
  %v536 = vpop.f32.mrf.mxu0
  %v537 = vadd.f32 0.0, %v536
  %538 = vmatmul.f32.gmra.mxu0 %v122
  %v539 = vpop.f32.mrf.mxu0
  %v540 = vadd.f32 0.0, %v539
  %541 = vmatmul.f32.gmra.mxu0 %v125
  %v542 = vpop.f32.mrf.mxu0
  %v543 = vadd.f32 0.0, %v542
  %544 = vmatmul.f32.gmra.mxu0 %v128
  %v545 = vpop.f32.mrf.mxu0
  %v546 = vadd.f32 0.0, %v545
  %547 = vmatmul.f32.gmra.mxu0 %v131
  %v548 = vpop.f32.mrf.mxu0
  %v549 = vadd.f32 0.0, %v548
  %550 = vmatmul.f32.gmra.mxu0 %v134
  %v551 = vpop.f32.mrf.mxu0
  %v552 = vadd.f32 0.0, %v551
  %553 = vmatmul.f32.gmra.mxu0 %v137
  %v554 = vpop.f32.mrf.mxu0
  %v555 = vadd.f32 0.0, %v554
  %556 = vmatmul.f32.gmra.mxu0 %v140
  %v557 = vpop.f32.mrf.mxu0
  %v558 = vadd.f32 0.0, %v557
  %559 = vmatmul.f32.gmra.mxu0 %v143
  %v560 = vpop.f32.mrf.mxu0
  %v561 = vadd.f32 0.0, %v560
  %562 = vmatmul.f32.gmra.mxu0 %v146
  %v563 = vpop.f32.mrf.mxu0
  %v564 = vadd.f32 0.0, %v563
  %565 = vmatmul.f32.gmra.mxu0 %v149
  %v566 = vpop.f32.mrf.mxu0
  %v567 = vadd.f32 0.0, %v566
  %568 = vmatmul.f32.gmra.mxu0 %v152
  %v569 = vpop.f32.mrf.mxu0
  %v570 = vadd.f32 0.0, %v569
  %571 = vmatmul.f32.gmra.mxu0 %v155
  %v572 = vpop.f32.mrf.mxu0
  %v573 = vadd.f32 0.0, %v572
  %574 = vmatmul.f32.gmra.mxu0 %v158
  %v575 = vpop.f32.mrf.mxu0
  %v576 = vadd.f32 0.0, %v575
  %577 = vmatmul.f32.gmra.mxu0 %v161
  %v578 = vpop.f32.mrf.mxu0
  %v579 = vadd.f32 0.0, %v578
  %580 = vmatmul.f32.gmra.mxu0 %v164
  %v581 = vpop.f32.mrf.mxu0
  %v582 = vadd.f32 0.0, %v581
  %583 = vmatmul.f32.gmra.mxu0 %v167
  %v584 = vpop.f32.mrf.mxu0
  %v585 = vadd.f32 0.0, %v584
  %586 = vmatmul.f32.gmra.mxu0 %v170
  %v587 = vpop.f32.mrf.mxu0
  %v588 = vadd.f32 0.0, %v587
  %589 = vmatmul.f32.gmra.mxu0 %v173
  %v590 = vpop.f32.mrf.mxu0
  %v591 = vadd.f32 0.0, %v590
  %592 = vmatmul.f32.gmra.mxu0 %v176
  %v593 = vpop.f32.mrf.mxu0
  %v594 = vadd.f32 0.0, %v593
  %595 = vmatmul.f32.gmra.mxu0 %v179
  %v596 = vpop.f32.mrf.mxu0
  %v597 = vadd.f32 0.0, %v596
  %598 = vmatmul.f32.gmra.mxu0 %v182
  %v599 = vpop.f32.mrf.mxu0
  %v600 = vadd.f32 0.0, %v599
  %601 = vmatmul.f32.gmra.mxu0 %v185
  %v602 = vpop.f32.mrf.mxu0
  %v603 = vadd.f32 0.0, %v602
  %604 = vmatmul.f32.gmra.mxu0 %v188
  %v605 = vpop.f32.mrf.mxu0
  %v606 = vadd.f32 0.0, %v605
  %607 = vmatmul.f32.gmra.mxu0 %v191
  %v608 = vpop.f32.mrf.mxu0
  %v609 = vadd.f32 0.0, %v608
  %610 = vmatmul.f32.gmra.mxu0 %v194
  %v611 = vpop.f32.mrf.mxu0
  %v612 = vadd.f32 0.0, %v611
  %613 = vmatmul.f32.gmra.mxu0 %v197
  %v614 = vpop.f32.mrf.mxu0
  %v615 = vadd.f32 0.0, %v614
  %616 = vmatmul.f32.gmra.mxu0 %v200
  %v617 = vpop.f32.mrf.mxu0
  %v618 = vadd.f32 0.0, %v617
  %619 = vmatmul.f32.gmra.mxu0 %v203
  %v620 = vpop.f32.mrf.mxu0
  %v621 = vadd.f32 0.0, %v620
  %622 = vmatmul.f32.gmra.mxu0 %v206
  %v623 = vpop.f32.mrf.mxu0
  %v624 = vadd.f32 0.0, %v623
  %625 = vmatmul.f32.gmra.mxu0 %v209
  %v626 = vpop.f32.mrf.mxu0
  %v627 = vadd.f32 0.0, %v626
  %628 = vmatmul.f32.gmra.mxu0 %v212
  %v629 = vpop.f32.mrf.mxu0
  %v630 = vadd.f32 0.0, %v629
  %631 = vmatmul.f32.gmra.mxu0 %v215
  %v632 = vpop.f32.mrf.mxu0
  %v633 = vadd.f32 0.0, %v632
  %634 = vmatmul.f32.gmra.mxu0 %v218
  %v635 = vpop.f32.mrf.mxu0
  %v636 = vadd.f32 0.0, %v635
  %637 = vmatmul.f32.gmra.mxu0 %v221
  %v638 = vpop.f32.mrf.mxu0
  %v639 = vadd.f32 0.0, %v638
  %640 = vmatmul.f32.gmra.mxu0 %v224
  %v641 = vpop.f32.mrf.mxu0
  %v642 = vadd.f32 0.0, %v641
  %643 = vmatmul.f32.gmra.mxu0 %v227
  %v644 = vpop.f32.mrf.mxu0
  %v645 = vadd.f32 0.0, %v644
  %646 = vmatmul.f32.gmra.mxu0 %v230
  %v647 = vpop.f32.mrf.mxu0
  %v648 = vadd.f32 0.0, %v647
  %649 = vmatmul.f32.gmra.mxu0 %v233
  %v650 = vpop.f32.mrf.mxu0
  %v651 = vadd.f32 0.0, %v650
  %652 = vmatmul.f32.gmra.mxu0 %v236
  %v653 = vpop.f32.mrf.mxu0
  %v654 = vadd.f32 0.0, %v653
  %655 = vmatmul.f32.gmra.mxu0 %v239
  %v656 = vpop.f32.mrf.mxu0
  %v657 = vadd.f32 0.0, %v656
  %658 = vmatmul.f32.gmra.mxu0 %v242
  %v659 = vpop.f32.mrf.mxu0
  %v660 = vadd.f32 0.0, %v659
  %661 = vmatmul.f32.gmra.mxu0 %v245
  %v662 = vpop.f32.mrf.mxu0
  %v663 = vadd.f32 0.0, %v662
  %664 = vmatmul.f32.gmra.mxu0 %v248
  %v665 = vpop.f32.mrf.mxu0
  %v666 = vadd.f32 0.0, %v665
  %667 = vmatmul.f32.gmra.mxu0 %v251
  %v668 = vpop.f32.mrf.mxu0
  %v669 = vadd.f32 0.0, %v668
  %670 = vmatmul.f32.gmra.mxu0 %v254
  %v671 = vpop.f32.mrf.mxu0
  %v672 = vadd.f32 0.0, %v671
  %673 = vmatmul.f32.gmra.mxu0 %v257
  %v674 = vpop.f32.mrf.mxu0
  %v675 = vadd.f32 0.0, %v674
  %676 = vmatmul.f32.gmra.mxu0 %v260
  %v677 = vpop.f32.mrf.mxu0
  %v678 = vadd.f32 0.0, %v677
  %679 = vmatmul.f32.gmra.mxu0 %v263
  %v680 = vpop.f32.mrf.mxu0
  %v681 = vadd.f32 0.0, %v680
  %682 = vmatmul.f32.gmra.mxu0 %v266
  %v683 = vpop.f32.mrf.mxu0
  %v684 = vadd.f32 0.0, %v683
  %685 = vmatmul.f32.gmra.mxu0 %v269
  %v686 = vpop.f32.mrf.mxu0
  %v687 = vadd.f32 0.0, %v686
  %688 = vmatmul.f32.gmra.mxu0 %v272
  %v689 = vpop.f32.mrf.mxu0
  %v690 = vadd.f32 0.0, %v689
  %691 = vmatmul.f32.gmra.mxu0 %v275
  %v692 = vpop.f32.mrf.mxu0
  %v693 = vadd.f32 0.0, %v692
  %694 = vmatmul.f32.gmra.mxu0 %v278
  %v695 = vpop.f32.mrf.mxu0
  %v696 = vadd.f32 0.0, %v695
  %697 = vmatmul.f32.gmra.mxu0 %v281
  %v698 = vpop.f32.mrf.mxu0
  %v699 = vadd.f32 0.0, %v698
  %700 = vmatmul.f32.gmra.mxu0 %v284
  %v701 = vpop.f32.mrf.mxu0
  %v702 = vadd.f32 0.0, %v701
  %703 = vdwg.mxu0
  %704 = vst [vmem:[%s2] sm:$0xff] %v304
  %705 = vst [vmem:[%s2 + $0x8] sm:$0xff] %v513
  %706 = vst [vmem:[%s2 + $0x10] sm:$0xff] %v307
  %707 = vst [vmem:[%s2 + $0x18] sm:$0xff] %v516
  %708 = vst [vmem:[%s2 + $0x20] sm:$0xff] %v310
  %709 = vst [vmem:[%s2 + $0x28] sm:$0xff] %v519
  %710 = vst [vmem:[%s2 + $0x30] sm:$0xff] %v313
  %711 = vst [vmem:[%s2 + $0x38] sm:$0xff] %v522
  %712 = vst [vmem:[%s2 + $0x40] sm:$0xff] %v316
  %713 = vst [vmem:[%s2 + $0x48] sm:$0xff] %v525
  %714 = vst [vmem:[%s2 + $0x50] sm:$0xff] %v319
  %715 = vst [vmem:[%s2 + $0x58] sm:$0xff] %v528
  %716 = vst [vmem:[%s2 + $0x60] sm:$0xff] %v322
  %717 = vst [vmem:[%s2 + $0x68] sm:$0xff] %v531
  %718 = vst [vmem:[%s2 + $0x70] sm:$0xff] %v325
  %719 = vst [vmem:[%s2 + $0x78] sm:$0xff] %v534
  %720 = vst [vmem:[%s2 + $0x80] sm:$0xff] %v328
  %721 = vst [vmem:[%s2 + $0x88] sm:$0xff] %v537
  %722 = vst [vmem:[%s2 + $0x90] sm:$0xff] %v331
  %723 = vst [vmem:[%s2 + $0x98] sm:$0xff] %v540
  %724 = vst [vmem:[%s2 + $0xa0] sm:$0xff] %v334
  %725 = vst [vmem:[%s2 + $0xa8] sm:$0xff] %v543
  %726 = vst [vmem:[%s2 + $0xb0] sm:$0xff] %v337
  %727 = vst [vmem:[%s2 + $0xb8] sm:$0xff] %v546
  %728 = vst [vmem:[%s2 + $0xc0] sm:$0xff] %v340
  %729 = vst [vmem:[%s2 + $0xc8] sm:$0xff] %v549
  %730 = vst [vmem:[%s2 + $0xd0] sm:$0xff] %v343
  %731 = vst [vmem:[%s2 + $0xd8] sm:$0xff] %v552
  %732 = vst [vmem:[%s2 + $0xe0] sm:$0xff] %v346
  %733 = vst [vmem:[%s2 + $0xe8] sm:$0xff] %v555
  %734 = vst [vmem:[%s2 + $0xf0] sm:$0xff] %v349
  %735 = vst [vmem:[%s2 + $0xf8] sm:$0xff] %v558
  %736 = vst [vmem:[%s2 + $0x100] sm:$0xff] %v352
  %737 = vst [vmem:[%s2 + $0x108] sm:$0xff] %v561
  %738 = vst [vmem:[%s2 + $0x110] sm:$0xff] %v355
  %739 = vst [vmem:[%s2 + $0x118] sm:$0xff] %v564
  %740 = vst [vmem:[%s2 + $0x120] sm:$0xff] %v358
  %741 = vst [vmem:[%s2 + $0x128] sm:$0xff] %v567
  %742 = vst [vmem:[%s2 + $0x130] sm:$0xff] %v361
  %743 = vst [vmem:[%s2 + $0x138] sm:$0xff] %v570
  %744 = vst [vmem:[%s2 + $0x140] sm:$0xff] %v364
  %745 = vst [vmem:[%s2 + $0x148] sm:$0xff] %v573
  %746 = vst [vmem:[%s2 + $0x150] sm:$0xff] %v367
  %747 = vst [vmem:[%s2 + $0x158] sm:$0xff] %v576
  %748 = vst [vmem:[%s2 + $0x160] sm:$0xff] %v370
  %749 = vst [vmem:[%s2 + $0x168] sm:$0xff] %v579
  %750 = vst [vmem:[%s2 + $0x170] sm:$0xff] %v373
  %751 = vst [vmem:[%s2 + $0x178] sm:$0xff] %v582
  %752 = vst [vmem:[%s2 + $0x180] sm:$0xff] %v376
  %753 = vst [vmem:[%s2 + $0x188] sm:$0xff] %v585
  %754 = vst [vmem:[%s2 + $0x190] sm:$0xff] %v379
  %755 = vst [vmem:[%s2 + $0x198] sm:$0xff] %v588
  %756 = vst [vmem:[%s2 + $0x1a0] sm:$0xff] %v382
  %757 = vst [vmem:[%s2 + $0x1a8] sm:$0xff] %v591
  %758 = vst [vmem:[%s2 + $0x1b0] sm:$0xff] %v385
  %759 = vst [vmem:[%s2 + $0x1b8] sm:$0xff] %v594
  %760 = vst [vmem:[%s2 + $0x1c0] sm:$0xff] %v388
  %761 = vst [vmem:[%s2 + $0x1c8] sm:$0xff] %v597
  %762 = vst [vmem:[%s2 + $0x1d0] sm:$0xff] %v391
  %763 = vst [vmem:[%s2 + $0x1d8] sm:$0xff] %v600
  %764 = vst [vmem:[%s2 + $0x1e0] sm:$0xff] %v394
  %765 = vst [vmem:[%s2 + $0x1e8] sm:$0xff] %v603
  %766 = vst [vmem:[%s2 + $0x1f0] sm:$0xff] %v397
  %767 = vst [vmem:[%s2 + $0x1f8] sm:$0xff] %v606
  %768 = vst [vmem:[%s2 + $0x200] sm:$0xff] %v400
  %769 = vst [vmem:[%s2 + $0x208] sm:$0xff] %v609
  %770 = vst [vmem:[%s2 + $0x210] sm:$0xff] %v403
  %771 = vst [vmem:[%s2 + $0x218] sm:$0xff] %v612
  %772 = vst [vmem:[%s2 + $0x220] sm:$0xff] %v406
  %773 = vst [vmem:[%s2 + $0x228] sm:$0xff] %v615
  %774 = vst [vmem:[%s2 + $0x230] sm:$0xff] %v409
  %775 = vst [vmem:[%s2 + $0x238] sm:$0xff] %v618
  %776 = vst [vmem:[%s2 + $0x240] sm:$0xff] %v412
  %777 = vst [vmem:[%s2 + $0x248] sm:$0xff] %v621
  %778 = vst [vmem:[%s2 + $0x250] sm:$0xff] %v415
  %779 = vst [vmem:[%s2 + $0x258] sm:$0xff] %v624
  %780 = vst [vmem:[%s2 + $0x260] sm:$0xff] %v418
  %781 = vst [vmem:[%s2 + $0x268] sm:$0xff] %v627
  %782 = vst [vmem:[%s2 + $0x270] sm:$0xff] %v421
  %783 = vst [vmem:[%s2 + $0x278] sm:$0xff] %v630
  %784 = vst [vmem:[%s2 + $0x280] sm:$0xff] %v424
  %785 = vst [vmem:[%s2 + $0x288] sm:$0xff] %v633
  %786 = vst [vmem:[%s2 + $0x290] sm:$0xff] %v427
  %787 = vst [vmem:[%s2 + $0x298] sm:$0xff] %v636
  %788 = vst [vmem:[%s2 + $0x2a0] sm:$0xff] %v430
  %789 = vst [vmem:[%s2 + $0x2a8] sm:$0xff] %v639
  %790 = vst [vmem:[%s2 + $0x2b0] sm:$0xff] %v433
  %791 = vst [vmem:[%s2 + $0x2b8] sm:$0xff] %v642
  %792 = vst [vmem:[%s2 + $0x2c0] sm:$0xff] %v436
  %793 = vst [vmem:[%s2 + $0x2c8] sm:$0xff] %v645
  %794 = vst [vmem:[%s2 + $0x2d0] sm:$0xff] %v439
  %795 = vst [vmem:[%s2 + $0x2d8] sm:$0xff] %v648
  %796 = vst [vmem:[%s2 + $0x2e0] sm:$0xff] %v442
  %797 = vst [vmem:[%s2 + $0x2e8] sm:$0xff] %v651
  %798 = vst [vmem:[%s2 + $0x2f0] sm:$0xff] %v445
  %799 = vst [vmem:[%s2 + $0x2f8] sm:$0xff] %v654
  %800 = vst [vmem:[%s2 + $0x300] sm:$0xff] %v448
  %801 = vst [vmem:[%s2 + $0x308] sm:$0xff] %v657
  %802 = vst [vmem:[%s2 + $0x310] sm:$0xff] %v451
  %803 = vst [vmem:[%s2 + $0x318] sm:$0xff] %v660
  %804 = vst [vmem:[%s2 + $0x320] sm:$0xff] %v454
  %805 = vst [vmem:[%s2 + $0x328] sm:$0xff] %v663
  %806 = vst [vmem:[%s2 + $0x330] sm:$0xff] %v457
  %807 = vst [vmem:[%s2 + $0x338] sm:$0xff] %v666
  %808 = vst [vmem:[%s2 + $0x340] sm:$0xff] %v460
  %809 = vst [vmem:[%s2 + $0x348] sm:$0xff] %v669
  %810 = vst [vmem:[%s2 + $0x350] sm:$0xff] %v463
  %811 = vst [vmem:[%s2 + $0x358] sm:$0xff] %v672
  %812 = vst [vmem:[%s2 + $0x360] sm:$0xff] %v466
  %813 = vst [vmem:[%s2 + $0x368] sm:$0xff] %v675
  %814 = vst [vmem:[%s2 + $0x370] sm:$0xff] %v469
  %815 = vst [vmem:[%s2 + $0x378] sm:$0xff] %v678
  %816 = vst [vmem:[%s2 + $0x380] sm:$0xff] %v472
  %817 = vst [vmem:[%s2 + $0x388] sm:$0xff] %v681
  %818 = vst [vmem:[%s2 + $0x390] sm:$0xff] %v475
  %819 = vst [vmem:[%s2 + $0x398] sm:$0xff] %v684
  %820 = vst [vmem:[%s2 + $0x3a0] sm:$0xff] %v478
  %821 = vst [vmem:[%s2 + $0x3a8] sm:$0xff] %v687
  %822 = vst [vmem:[%s2 + $0x3b0] sm:$0xff] %v481
  %823 = vst [vmem:[%s2 + $0x3b8] sm:$0xff] %v690
  %824 = vst [vmem:[%s2 + $0x3c0] sm:$0xff] %v484
  %825 = vst [vmem:[%s2 + $0x3c8] sm:$0xff] %v693
  %826 = vst [vmem:[%s2 + $0x3d0] sm:$0xff] %v487
  %827 = vst [vmem:[%s2 + $0x3d8] sm:$0xff] %v696
  %828 = vst [vmem:[%s2 + $0x3e0] sm:$0xff] %v490
  %829 = vst [vmem:[%s2 + $0x3e8] sm:$0xff] %v699
  %830 = vst [vmem:[%s2 + $0x3f0] sm:$0xff] %v493
  %831 = vst [vmem:[%s2 + $0x3f8] sm:$0xff] %v702
  %832 = vst [vmem:[%s3] sm:$0xff] %v304
  %833 = vst [vmem:[%s3 + $0x8] sm:$0xff] %v513
  %834 = vst [vmem:[%s3 + $0x10] sm:$0xff] %v307
  %835 = vst [vmem:[%s3 + $0x18] sm:$0xff] %v516
  %836 = vst [vmem:[%s3 + $0x20] sm:$0xff] %v310
  %837 = vst [vmem:[%s3 + $0x28] sm:$0xff] %v519
  %838 = vst [vmem:[%s3 + $0x30] sm:$0xff] %v313
  %839 = vst [vmem:[%s3 + $0x38] sm:$0xff] %v522
  %840 = vst [vmem:[%s3 + $0x40] sm:$0xff] %v316
  %841 = vst [vmem:[%s3 + $0x48] sm:$0xff] %v525
  %842 = vst [vmem:[%s3 + $0x50] sm:$0xff] %v319
  %843 = vst [vmem:[%s3 + $0x58] sm:$0xff] %v528
  %844 = vst [vmem:[%s3 + $0x60] sm:$0xff] %v322
  %845 = vst [vmem:[%s3 + $0x68] sm:$0xff] %v531
  %846 = vst [vmem:[%s3 + $0x70] sm:$0xff] %v325
  %847 = vst [vmem:[%s3 + $0x78] sm:$0xff] %v534
  %848 = vst [vmem:[%s3 + $0x80] sm:$0xff] %v328
  %849 = vst [vmem:[%s3 + $0x88] sm:$0xff] %v537
  %850 = vst [vmem:[%s3 + $0x90] sm:$0xff] %v331
  %851 = vst [vmem:[%s3 + $0x98] sm:$0xff] %v540
  %852 = vst [vmem:[%s3 + $0xa0] sm:$0xff] %v334
  %853 = vst [vmem:[%s3 + $0xa8] sm:$0xff] %v543
  %854 = vst [vmem:[%s3 + $0xb0] sm:$0xff] %v337
  %855 = vst [vmem:[%s3 + $0xb8] sm:$0xff] %v546
  %856 = vst [vmem:[%s3 + $0xc0] sm:$0xff] %v340
  %857 = vst [vmem:[%s3 + $0xc8] sm:$0xff] %v549
  %858 = vst [vmem:[%s3 + $0xd0] sm:$0xff] %v343
  %859 = vst [vmem:[%s3 + $0xd8] sm:$0xff] %v552
  %860 = vst [vmem:[%s3 + $0xe0] sm:$0xff] %v346
  %861 = vst [vmem:[%s3 + $0xe8] sm:$0xff] %v555
  %862 = vst [vmem:[%s3 + $0xf0] sm:$0xff] %v349
  %863 = vst [vmem:[%s3 + $0xf8] sm:$0xff] %v558
  %864 = vst [vmem:[%s3 + $0x100] sm:$0xff] %v352
  %865 = vst [vmem:[%s3 + $0x108] sm:$0xff] %v561
  %866 = vst [vmem:[%s3 + $0x110] sm:$0xff] %v355
  %867 = vst [vmem:[%s3 + $0x118] sm:$0xff] %v564
  %868 = vst [vmem:[%s3 + $0x120] sm:$0xff] %v358
  %869 = vst [vmem:[%s3 + $0x128] sm:$0xff] %v567
  %870 = vst [vmem:[%s3 + $0x130] sm:$0xff] %v361
  %871 = vst [vmem:[%s3 + $0x138] sm:$0xff] %v570
  %872 = vst [vmem:[%s3 + $0x140] sm:$0xff] %v364
  %873 = vst [vmem:[%s3 + $0x148] sm:$0xff] %v573
  %874 = vst [vmem:[%s3 + $0x150] sm:$0xff] %v367
  %875 = vst [vmem:[%s3 + $0x158] sm:$0xff] %v576
  %876 = vst [vmem:[%s3 + $0x160] sm:$0xff] %v370
  %877 = vst [vmem:[%s3 + $0x168] sm:$0xff] %v579
  %878 = vst [vmem:[%s3 + $0x170] sm:$0xff] %v373
  %879 = vst [vmem:[%s3 + $0x178] sm:$0xff] %v582
  %880 = vst [vmem:[%s3 + $0x180] sm:$0xff] %v376
  %881 = vst [vmem:[%s3 + $0x188] sm:$0xff] %v585
  %882 = vst [vmem:[%s3 + $0x190] sm:$0xff] %v379
  %883 = vst [vmem:[%s3 + $0x198] sm:$0xff] %v588
  %884 = vst [vmem:[%s3 + $0x1a0] sm:$0xff] %v382
  %885 = vst [vmem:[%s3 + $0x1a8] sm:$0xff] %v591
  %886 = vst [vmem:[%s3 + $0x1b0] sm:$0xff] %v385
  %887 = vst [vmem:[%s3 + $0x1b8] sm:$0xff] %v594
  %888 = vst [vmem:[%s3 + $0x1c0] sm:$0xff] %v388
  %889 = vst [vmem:[%s3 + $0x1c8] sm:$0xff] %v597
  %890 = vst [vmem:[%s3 + $0x1d0] sm:$0xff] %v391
  %891 = vst [vmem:[%s3 + $0x1d8] sm:$0xff] %v600
  %892 = vst [vmem:[%s3 + $0x1e0] sm:$0xff] %v394
  %893 = vst [vmem:[%s3 + $0x1e8] sm:$0xff] %v603
  %894 = vst [vmem:[%s3 + $0x1f0] sm:$0xff] %v397
  %895 = vst [vmem:[%s3 + $0x1f8] sm:$0xff] %v606
  %896 = vst [vmem:[%s3 + $0x200] sm:$0xff] %v400
  %897 = vst [vmem:[%s3 + $0x208] sm:$0xff] %v609
  %898 = vst [vmem:[%s3 + $0x210] sm:$0xff] %v403
  %899 = vst [vmem:[%s3 + $0x218] sm:$0xff] %v612
  %900 = vst [vmem:[%s3 + $0x220] sm:$0xff] %v406
  %901 = vst [vmem:[%s3 + $0x228] sm:$0xff] %v615
  %902 = vst [vmem:[%s3 + $0x230] sm:$0xff] %v409
  %903 = vst [vmem:[%s3 + $0x238] sm:$0xff] %v618
  %904 = vst [vmem:[%s3 + $0x240] sm:$0xff] %v412
  %905 = vst [vmem:[%s3 + $0x248] sm:$0xff] %v621
  %906 = vst [vmem:[%s3 + $0x250] sm:$0xff] %v415
  %907 = vst [vmem:[%s3 + $0x258] sm:$0xff] %v624
  %908 = vst [vmem:[%s3 + $0x260] sm:$0xff] %v418
  %909 = vst [vmem:[%s3 + $0x268] sm:$0xff] %v627
  %910 = vst [vmem:[%s3 + $0x270] sm:$0xff] %v421
  %911 = vst [vmem:[%s3 + $0x278] sm:$0xff] %v630
  %912 = vst [vmem:[%s3 + $0x280] sm:$0xff] %v424
  %913 = vst [vmem:[%s3 + $0x288] sm:$0xff] %v633
  %914 = vst [vmem:[%s3 + $0x290] sm:$0xff] %v427
  %915 = vst [vmem:[%s3 + $0x298] sm:$0xff] %v636
  %916 = vst [vmem:[%s3 + $0x2a0] sm:$0xff] %v430
  %917 = vst [vmem:[%s3 + $0x2a8] sm:$0xff] %v639
  %918 = vst [vmem:[%s3 + $0x2b0] sm:$0xff] %v433
  %919 = vst [vmem:[%s3 + $0x2b8] sm:$0xff] %v642
  %920 = vst [vmem:[%s3 + $0x2c0] sm:$0xff] %v436
  %921 = vst [vmem:[%s3 + $0x2c8] sm:$0xff] %v645
  %922 = vst [vmem:[%s3 + $0x2d0] sm:$0xff] %v439
  %923 = vst [vmem:[%s3 + $0x2d8] sm:$0xff] %v648
  %924 = vst [vmem:[%s3 + $0x2e0] sm:$0xff] %v442
  %925 = vst [vmem:[%s3 + $0x2e8] sm:$0xff] %v651
  %926 = vst [vmem:[%s3 + $0x2f0] sm:$0xff] %v445
  %927 = vst [vmem:[%s3 + $0x2f8] sm:$0xff] %v654
  %928 = vst [vmem:[%s3 + $0x300] sm:$0xff] %v448
  %929 = vst [vmem:[%s3 + $0x308] sm:$0xff] %v657
  %930 = vst [vmem:[%s3 + $0x310] sm:$0xff] %v451
  %931 = vst [vmem:[%s3 + $0x318] sm:$0xff] %v660
  %932 = vst [vmem:[%s3 + $0x320] sm:$0xff] %v454
  %933 = vst [vmem:[%s3 + $0x328] sm:$0xff] %v663
  %934 = vst [vmem:[%s3 + $0x330] sm:$0xff] %v457
  %935 = vst [vmem:[%s3 + $0x338] sm:$0xff] %v666
  %936 = vst [vmem:[%s3 + $0x340] sm:$0xff] %v460
  %937 = vst [vmem:[%s3 + $0x348] sm:$0xff] %v669
  %938 = vst [vmem:[%s3 + $0x350] sm:$0xff] %v463
  %939 = vst [vmem:[%s3 + $0x358] sm:$0xff] %v672
  %940 = vst [vmem:[%s3 + $0x360] sm:$0xff] %v466
  %941 = vst [vmem:[%s3 + $0x368] sm:$0xff] %v675
  %942 = vst [vmem:[%s3 + $0x370] sm:$0xff] %v469
  %943 = vst [vmem:[%s3 + $0x378] sm:$0xff] %v678
  %944 = vst [vmem:[%s3 + $0x380] sm:$0xff] %v472
  %945 = vst [vmem:[%s3 + $0x388] sm:$0xff] %v681
  %946 = vst [vmem:[%s3 + $0x390] sm:$0xff] %v475
  %947 = vst [vmem:[%s3 + $0x398] sm:$0xff] %v684
  %948 = vst [vmem:[%s3 + $0x3a0] sm:$0xff] %v478
  %949 = vst [vmem:[%s3 + $0x3a8] sm:$0xff] %v687
  %950 = vst [vmem:[%s3 + $0x3b0] sm:$0xff] %v481
  %951 = vst [vmem:[%s3 + $0x3b8] sm:$0xff] %v690
  %952 = vst [vmem:[%s3 + $0x3c0] sm:$0xff] %v484
  %953 = vst [vmem:[%s3 + $0x3c8] sm:$0xff] %v693
  %954 = vst [vmem:[%s3 + $0x3d0] sm:$0xff] %v487
  %955 = vst [vmem:[%s3 + $0x3d8] sm:$0xff] %v696
  %956 = vst [vmem:[%s3 + $0x3e0] sm:$0xff] %v490
  %957 = vst [vmem:[%s3 + $0x3e8] sm:$0xff] %v699
  %958 = vst [vmem:[%s3 + $0x3f0] sm:$0xff] %v493
  %959 = vst [vmem:[%s3 + $0x3f8] sm:$0xff] %v702
  // Predicated region
  $region10: #{appnp_forward.2} parent=0 // pred_check
    _
  $region11: #{appnp_forward.2} parent=0 // pred_check_branch
    %961 = sbr.rel (0) target = $region13
  $region12: #{appnp_forward.2} parent=0 // pred_region
    _
  $region13: #{appnp_forward.2} parent=0 // pred_fallthru
    _
  // Predicated region
  $region14: #{appnp_forward.2} parent=0 // pred_check
    _
  $region15: #{appnp_forward.2} parent=0 // pred_check_branch
    %963 = sbr.rel (0) target = $region17
  $region16: #{appnp_forward.2} parent=0 // pred_region
    _
  $region17: #{appnp_forward.2} parent=0 // pred_fallthru
    _
  // Predicated region
  $region18: #{appnp_forward.2} parent=0 // pred_check
    _
  $region19: #{appnp_forward.2} parent=0 // pred_check_branch
    %965 = sbr.rel (0) target = $region21
  $region20: #{appnp_forward.2} parent=0 // pred_region
    _
  $region21: #{appnp_forward.2} parent=0 // pred_fallthru
    _
  // Predicated region
  $region22: #{appnp_forward.2} parent=0 // pred_check
    _
  $region23: #{appnp_forward.2} parent=0 // pred_check_branch
    %967 = sbr.rel (0) target = $region25
  $region24: #{appnp_forward.2} parent=0 // pred_region
    _
  $region25: #{appnp_forward.2} parent=0 // pred_fallthru
    _

// kernel: appnp_forward.3
$region0: #{appnp_forward.3}
  #allocation0 [shape = 'u32[]', space=smem, size = 0x4, offset = 0x4, fixed_abs, tag = 'smem constant byte address 0x4 - core index']
  #allocation1 [shape = 'u32[72,128]{1,0:T(1,128)}', space=vmem, size = 0x9000, scoped, tag = 'internal scratch']
  #allocation2 [shape = 'f32[512,256]{1,0:T(8,128)}', space=vmem, size = 0x80000, scoped, tag = 'scratch operand']
  #allocation3 [shape = 'f32[1024,256]{1,0:T(8,128)}', space=vmem, size = 0x100000, scoped, tag = 'scratch operand']
  #allocation9 [shape = 's32[]', space=sflag, size = 0x4, offset = 0, fixed_abs, tag = 'sflag constant byte address 0x0 - dummy sync flag']
  %s0 = inlined_call_operand.hbm [shape: f32[512,512], index: 0, kind: input, shape index: {}]
  %s1 = inlined_call_operand.vmem [shape: f32[512,256], index: 1, kind: input, shape index: {}]
  %s2 = inlined_call_operand.vmem [shape: f32[512,256], index: 2, kind: input, shape index: {}]
  %s3 = inlined_call_operand.hbm [shape: f32[512,256], index: 3, kind: output, shape index: {}]
  %s4 = sld [smem:[#allocation0]]
  $region85: #{appnp_forward.3} parent=0
    _
  %s6 = ssub.s32 1, %s4
  %s7 = scalar_select 0, %s6, %s4
  $region1: #{appnp_forward.3} parent=0
    #allocation4 [shape = 'u8[1048576]{0}', space=vmem, size = 0x100000, scoped, tag = 'input window, operand 0, single buffered']
    #allocation5 [shape = 's32[2]{0}', space=sflag, size = 0x8, scoped, tag = 'scoped memory for appnp_forward.3']
    #allocation6 [shape = 's32[2]{0}', space=sflag, size = 0x8, scoped, tag = 'scoped memory for appnp_forward.3']
    #allocation7 [shape = 'u8[524288]{0}', space=vmem, size = 0x80000, scoped, tag = 'output window, operand 0, single buffered']
    %8 = vsyncpa [#allocation5], 0
    %9 = vsyncpa [#allocation6], 0
    loop: start=0, step=1, limit=6
    $region2: #{appnp_forward.3} parent=1 // loop_pre_header
      _
    $region3: #{appnp_forward.3} parent=1 // loop_header
      %s11 = sphi 0, %s15
      %p12 = scmp.ge.s32.totalorder %s11, 6
      %s18 = sphi 0, %s37
      %s19 = sphi 0, %s33
      %s20 = sphi 0, %s29
      %s21 = sphi 0, %s18
      %s22 = sphi 0, %s19
      %s23 = sphi 0, %s20
      %s24 = sphi 0, %s21
      %s25 = sphi 0, %s22
      %s26 = sphi 0, %s23
      %s42 = sphi 0, %s44
      %s45 = sphi 0, %s42
      %s46 = sphi 0, %s45
      %s62 = sphi 0, %s46
      %s66 = sphi 0, %s66
      %s68 = sphi 0, %s66
      %s69 = sphi 0, %s68
      %s83 = sphi 0, %s69
      %s87 = sphi 0, %s87
      %s89 = sphi 0, %s87
      %s90 = sphi 0, %s89
      %s104 = sphi 0, %s90
      %s110 = sphi 0, %s112
      %s113 = sphi 0, %s110
      %s114 = sphi 0, %s113
      %s130 = sphi 0, %s114
    $region4: #{appnp_forward.3} parent=1 // loop_header_branch
      %14 = sbr.rel (%p12) target = $region8
    $region5: #{appnp_forward.3} parent=1 // loop_body
      %s16 = ssub.s32 %s11, 1
      %s17 = ssub.s32 %s11, 2
      %s27 = sadd.s32 1, %s20
      %p28 = scmp.ge.s32.totalorder %s27, 1
      %s29 = scalar_select %p28, 0, %s27
      %s30 = sadd.s32 1, %s19
      %s31 = scalar_select %p28, %s30, %s19
      %p32 = scmp.ge.s32.totalorder %s31, 1
      %s33 = scalar_select %p32, 0, %s31
      %s34 = sadd.s32 1, %s18
      %s35 = scalar_select %p32, %s34, %s18
      %p36 = scmp.ge.s32.totalorder %s35, 4
      %s37 = scalar_select %p36, 0, %s35
      %s38 = ssub.s32 %s19, %s33
      %s39 = ssub.s32 %s20, %s29
      %s40 = sor.u32 %s38, %s39
      %p41 = scmp.eq.s32.totalorder %s40, 0
      %s43 = sadd.s32 %s42, 1
      %s44 = scalar_select %p41, %s42, %s43
      %p47 = pneg %p41
      %p48 = scmp.eq.s32.totalorder %s11, 3
      %p49 = por %p47, %p48
      %p50 = scmp.ne.s32.totalorder %s42, %s45
      %p51 = scmp.eq.s32.totalorder %s11, 0
      %p52 = por %p50, %p51
      %p53 = scmp.ne.s32.totalorder %s42, %s45
      %p54 = scmp.eq.s32.totalorder %s16, 3
      %p55 = por %p53, %p54
      %p56 = scmp.ne.s32.totalorder %s45, %s46
      %p57 = scmp.eq.s32.totalorder %s16, 0
      %p58 = por %p56, %p57
      %p59 = scmp.ne.s32.totalorder %s45, %s46
      %p60 = scmp.eq.s32.totalorder %s17, 3
      %p61 = por %p59, %p60
      %p63 = scmp.ne.s32.totalorder %s46, %s62
      %p64 = scmp.eq.s32.totalorder %s17, 0
      %p65 = por %p63, %p64
      %s67 = sadd.s32 %s66, 1
      %p70 = scmp.eq.s32.totalorder %s11, 3
      %p71 = scmp.ne.s32.totalorder %s66, %s68
      %p72 = scmp.eq.s32.totalorder %s11, 0
      %p73 = por %p71, %p72
      %p74 = scmp.ne.s32.totalorder %s66, %s68
      %p75 = scmp.eq.s32.totalorder %s16, 3
      %p76 = por %p74, %p75
      %p77 = scmp.ne.s32.totalorder %s68, %s69
      %p78 = scmp.eq.s32.totalorder %s16, 0
      %p79 = por %p77, %p78
      %p80 = scmp.ne.s32.totalorder %s68, %s69
      %p81 = scmp.eq.s32.totalorder %s17, 3
      %p82 = por %p80, %p81
      %p84 = scmp.ne.s32.totalorder %s69, %s83
      %p85 = scmp.eq.s32.totalorder %s17, 0
      %p86 = por %p84, %p85
      %s88 = sadd.s32 %s87, 1
      %p91 = scmp.eq.s32.totalorder %s11, 3
      %p92 = scmp.ne.s32.totalorder %s87, %s89
      %p93 = scmp.eq.s32.totalorder %s11, 0
      %p94 = por %p92, %p93
      %p95 = scmp.ne.s32.totalorder %s87, %s89
      %p96 = scmp.eq.s32.totalorder %s16, 3
      %p97 = por %p95, %p96
      %p98 = scmp.ne.s32.totalorder %s89, %s90
      %p99 = scmp.eq.s32.totalorder %s16, 0
      %p100 = por %p98, %p99
      %p101 = scmp.ne.s32.totalorder %s89, %s90
      %p102 = scmp.eq.s32.totalorder %s17, 3
      %p103 = por %p101, %p102
      %p105 = scmp.ne.s32.totalorder %s90, %s104
      %p106 = scmp.eq.s32.totalorder %s17, 0
      %p107 = por %p105, %p106
      %s108 = ssub.s32 %s19, %s33
      %p109 = scmp.eq.s32.totalorder %s108, 0
      %s111 = sadd.s32 %s110, 1
      %s112 = scalar_select %p109, %s110, %s111
      %p115 = pneg %p109
      %p116 = scmp.eq.s32.totalorder %s11, 3
      %p117 = por %p115, %p116
      %p118 = scmp.ne.s32.totalorder %s110, %s113
      %p119 = scmp.eq.s32.totalorder %s11, 0
      %p120 = por %p118, %p119
      %p121 = scmp.ne.s32.totalorder %s110, %s113
      %p122 = scmp.eq.s32.totalorder %s16, 3
      %p123 = por %p121, %p122
      %p124 = scmp.ne.s32.totalorder %s113, %s114
      %p125 = scmp.eq.s32.totalorder %s16, 0
      %p126 = por %p124, %p125
      %p127 = scmp.ne.s32.totalorder %s113, %s114
      %p128 = scmp.eq.s32.totalorder %s17, 3
      %p129 = por %p127, %p128
      %p131 = scmp.ne.s32.totalorder %s114, %s130
      %p132 = scmp.eq.s32.totalorder %s17, 0
      %p133 = por %p131, %p132
      %p134 = scmp.le.s32.totalorder 1, %s11
      %p135 = scmp.lt.s32.totalorder %s11, 5
      %p136 = pnand %p134, %p135
      %p137 = pneg %p136
      // Predicated region
      $region9: #{appnp_forward.3} parent=5 // pred_check
        _
      $region10: #{appnp_forward.3} parent=5 // pred_check_branch
        %139 = sbr.rel (%p136) target = $region12
      $region11: #{appnp_forward.3} parent=5 // pred_region
        %s140 = ssub.s32 %s11, 1
        // Predicated region
        $region13: #{appnp_forward.3} parent=11 // pred_check
          %p141 = pneg %p58
        $region14: #{appnp_forward.3} parent=11 // pred_check_branch
          %143 = sbr.rel (%p141) target = $region16
        $region15: #{appnp_forward.3} parent=11 // pred_region
          %s144 = smul.u32 64, %s22
          %s145 = smul.u32 4, %s23
          %147 = vsyncadd [#allocation5], 0
          %s148 = smul.addr %s144, 4
          %s149 = sadd.s32 %s145, %s148
          %s150 = smul.addr %s149, 8
          %s151 = scalar_lea.hbm %s0, %s150
          %s152 = sshll.u32 %s151, 4
          %s153 = int_to_ptr.hbm [resolvable:$true] %s152
          %s154 = sshll.u32 [#allocation4], 4
          %s155 = int_to_ptr.vmem [resolvable:$true] %s154
          %160 = dma.hbm_to_vmem [thread:$0]  %s153, 32768, %s155, [#allocation5], 512, 512, 32
        $region16: #{appnp_forward.3} parent=11 // pred_fallthru
          _
        // Predicated region
        $region17: #{appnp_forward.3} parent=11 // pred_check
          %p161 = pneg %p79
        $region18: #{appnp_forward.3} parent=11 // pred_check_branch
          %163 = sbr.rel (%p161) target = $region20
        $region19: #{appnp_forward.3} parent=11 // pred_region
          _
        $region20: #{appnp_forward.3} parent=11 // pred_fallthru
          _
        // Predicated region
        $region21: #{appnp_forward.3} parent=11 // pred_check
          %p164 = pneg %p100
        $region22: #{appnp_forward.3} parent=11 // pred_check_branch
          %166 = sbr.rel (%p164) target = $region24
        $region23: #{appnp_forward.3} parent=11 // pred_region
          _
        $region24: #{appnp_forward.3} parent=11 // pred_fallthru
          _
      $region12: #{appnp_forward.3} parent=5 // pred_fallthru
        _
      %p167 = scmp.lt.s32.totalorder %s11, 4
      // Predicated region
      $region25: #{appnp_forward.3} parent=5 // pred_check
        %p168 = pneg %p167
      $region26: #{appnp_forward.3} parent=5 // pred_check_branch
        %170 = sbr.rel (%p168) target = $region28
      $region27: #{appnp_forward.3} parent=5 // pred_region
        _
      $region28: #{appnp_forward.3} parent=5 // pred_fallthru
        _
      %p171 = scmp.le.s32.totalorder 1, %s11
      %p172 = scmp.lt.s32.totalorder %s11, 5
      %p173 = pnand %p171, %p172
      %p174 = pneg %p173
      // Predicated region
      $region29: #{appnp_forward.3} parent=5 // pred_check
        _
      $region30: #{appnp_forward.3} parent=5 // pred_check_branch
        %176 = sbr.rel (%p173) target = $region32
      $region31: #{appnp_forward.3} parent=5 // pred_region
        %s177 = ssub.s32 %s11, 1
        // Predicated region
        $region33: #{appnp_forward.3} parent=31 // pred_check
          %p178 = pneg %p58
        $region34: #{appnp_forward.3} parent=31 // pred_check_branch
          %180 = sbr.rel (%p178) target = $region36
        $region35: #{appnp_forward.3} parent=31 // pred_region
          %182 = dma.done [#allocation5], 32768
        $region36: #{appnp_forward.3} parent=31 // pred_fallthru
          _
        %p183 = pneg %p58
        %p184 = pneg %p55
        %p185 = pneg %p79
        %p186 = pneg %p76
        %p187 = pneg %p100
        %p188 = pneg %p97
        %p189 = pneg %p126
        %p190 = pneg %p123
        %s191 = smul.u32 64, %s22
        %s192 = smul.u32 4, %s23
        %s193 = smul.u32 64, %s22
        %p194 = scmp.eq.s32.totalorder %s21, 0
        %p195 = scmp.eq.s32.totalorder %s22, 0
        %p196 = pnand %p194, %p195
        %p197 = pneg %p196
        %p198 = scmp.eq.s32.totalorder %s23, 0
        %p199 = pnand %p197, %p198
        %p200 = pneg %p199
        // Predicated region
        $region37: #{appnp_forward.3} parent=31 // pred_check
          _
        $region38: #{appnp_forward.3} parent=31 // pred_check_branch
          %202 = sbr.rel (%p199) target = $region40
        $region39: #{appnp_forward.3} parent=31 // pred_region
          $region41: #{appnp_forward.3} parent=39
            #allocation8 [shape = 's32[1]{0}', space=sflag, size = 0x4, scoped, tag = 'scoped memory for appnp_forward.3']
            %s203 = scalar_lea.vmem [#allocation3], 1024
            // Predicated region
            $region42: #{appnp_forward.3} parent=41 // pred_check
              _
            $region43: #{appnp_forward.3} parent=41 // pred_check_branch
              %205 = sbr.rel (0) target = $region45
            $region44: #{appnp_forward.3} parent=41 // pred_region
              loop: start=0, step=1, limit=1
              $region46: #{appnp_forward.3} parent=44 // loop_pre_header
                _
              $region47: #{appnp_forward.3} parent=44 // loop_header
                %s207 = sphi 0, %s211
                %p208 = scmp.ge.s32.totalorder %s207, 1
                %s212 = sphi %s1, %s1
                %s213 = sphi %s203, %s203
              $region48: #{appnp_forward.3} parent=44 // loop_header_branch
                %210 = sbr.rel (%p208) target = $region52
              $region49: #{appnp_forward.3} parent=44 // loop_body
                %v214 = vld [vmem:[%s212] sm:$0xff]
                %215 = vst [vmem:[%s213] sm:$0xff] %v214
                %v216 = vld [vmem:[%s212 + $0x8] sm:$0xff]
                %217 = vst [vmem:[%s213 + $0x8] sm:$0xff] %v216
                %v218 = vld [vmem:[%s212 + $0x10] sm:$0xff]
                %219 = vst [vmem:[%s213 + $0x10] sm:$0xff] %v218
                %v220 = vld [vmem:[%s212 + $0x18] sm:$0xff]
                %221 = vst [vmem:[%s213 + $0x18] sm:$0xff] %v220
                %v222 = vld [vmem:[%s212 + $0x20] sm:$0xff]
                %223 = vst [vmem:[%s213 + $0x20] sm:$0xff] %v222
                %v224 = vld [vmem:[%s212 + $0x28] sm:$0xff]
                %225 = vst [vmem:[%s213 + $0x28] sm:$0xff] %v224
                %v226 = vld [vmem:[%s212 + $0x30] sm:$0xff]
                %227 = vst [vmem:[%s213 + $0x30] sm:$0xff] %v226
                %v228 = vld [vmem:[%s212 + $0x38] sm:$0xff]
                %229 = vst [vmem:[%s213 + $0x38] sm:$0xff] %v228
                %v230 = vld [vmem:[%s212 + $0x40] sm:$0xff]
                %231 = vst [vmem:[%s213 + $0x40] sm:$0xff] %v230
                %v232 = vld [vmem:[%s212 + $0x48] sm:$0xff]
                %233 = vst [vmem:[%s213 + $0x48] sm:$0xff] %v232
                %v234 = vld [vmem:[%s212 + $0x50] sm:$0xff]
                %235 = vst [vmem:[%s213 + $0x50] sm:$0xff] %v234
                %v236 = vld [vmem:[%s212 + $0x58] sm:$0xff]
                %237 = vst [vmem:[%s213 + $0x58] sm:$0xff] %v236
                %v238 = vld [vmem:[%s212 + $0x60] sm:$0xff]
                %239 = vst [vmem:[%s213 + $0x60] sm:$0xff] %v238
                %v240 = vld [vmem:[%s212 + $0x68] sm:$0xff]
                %241 = vst [vmem:[%s213 + $0x68] sm:$0xff] %v240
                %v242 = vld [vmem:[%s212 + $0x70] sm:$0xff]
                %243 = vst [vmem:[%s213 + $0x70] sm:$0xff] %v242
                %v244 = vld [vmem:[%s212 + $0x78] sm:$0xff]
                %245 = vst [vmem:[%s213 + $0x78] sm:$0xff] %v244
                %v246 = vld [vmem:[%s212 + $0x80] sm:$0xff]
                %247 = vst [vmem:[%s213 + $0x80] sm:$0xff] %v246
                %v248 = vld [vmem:[%s212 + $0x88] sm:$0xff]
                %249 = vst [vmem:[%s213 + $0x88] sm:$0xff] %v248
                %v250 = vld [vmem:[%s212 + $0x90] sm:$0xff]
                %251 = vst [vmem:[%s213 + $0x90] sm:$0xff] %v250
                %v252 = vld [vmem:[%s212 + $0x98] sm:$0xff]
                %253 = vst [vmem:[%s213 + $0x98] sm:$0xff] %v252
                %v254 = vld [vmem:[%s212 + $0xa0] sm:$0xff]
                %255 = vst [vmem:[%s213 + $0xa0] sm:$0xff] %v254
                %v256 = vld [vmem:[%s212 + $0xa8] sm:$0xff]
                %257 = vst [vmem:[%s213 + $0xa8] sm:$0xff] %v256
                %v258 = vld [vmem:[%s212 + $0xb0] sm:$0xff]
                %259 = vst [vmem:[%s213 + $0xb0] sm:$0xff] %v258
                %v260 = vld [vmem:[%s212 + $0xb8] sm:$0xff]
                %261 = vst [vmem:[%s213 + $0xb8] sm:$0xff] %v260
                %v262 = vld [vmem:[%s212 + $0xc0] sm:$0xff]
                %263 = vst [vmem:[%s213 + $0xc0] sm:$0xff] %v262
                %v264 = vld [vmem:[%s212 + $0xc8] sm:$0xff]
                %265 = vst [vmem:[%s213 + $0xc8] sm:$0xff] %v264
                %v266 = vld [vmem:[%s212 + $0xd0] sm:$0xff]
                %267 = vst [vmem:[%s213 + $0xd0] sm:$0xff] %v266
                %v268 = vld [vmem:[%s212 + $0xd8] sm:$0xff]
                %269 = vst [vmem:[%s213 + $0xd8] sm:$0xff] %v268
                %v270 = vld [vmem:[%s212 + $0xe0] sm:$0xff]
                %271 = vst [vmem:[%s213 + $0xe0] sm:$0xff] %v270
                %v272 = vld [vmem:[%s212 + $0xe8] sm:$0xff]
                %273 = vst [vmem:[%s213 + $0xe8] sm:$0xff] %v272
                %v274 = vld [vmem:[%s212 + $0xf0] sm:$0xff]
                %275 = vst [vmem:[%s213 + $0xf0] sm:$0xff] %v274
                %v276 = vld [vmem:[%s212 + $0xf8] sm:$0xff]
                %277 = vst [vmem:[%s213 + $0xf8] sm:$0xff] %v276
                %v278 = vld [vmem:[%s212 + $0x100] sm:$0xff]
                %279 = vst [vmem:[%s213 + $0x100] sm:$0xff] %v278
                %v280 = vld [vmem:[%s212 + $0x108] sm:$0xff]
                %281 = vst [vmem:[%s213 + $0x108] sm:$0xff] %v280
                %v282 = vld [vmem:[%s212 + $0x110] sm:$0xff]
                %283 = vst [vmem:[%s213 + $0x110] sm:$0xff] %v282
                %v284 = vld [vmem:[%s212 + $0x118] sm:$0xff]
                %285 = vst [vmem:[%s213 + $0x118] sm:$0xff] %v284
                %v286 = vld [vmem:[%s212 + $0x120] sm:$0xff]
                %287 = vst [vmem:[%s213 + $0x120] sm:$0xff] %v286
                %v288 = vld [vmem:[%s212 + $0x128] sm:$0xff]
                %289 = vst [vmem:[%s213 + $0x128] sm:$0xff] %v288
                %v290 = vld [vmem:[%s212 + $0x130] sm:$0xff]
                %291 = vst [vmem:[%s213 + $0x130] sm:$0xff] %v290
                %v292 = vld [vmem:[%s212 + $0x138] sm:$0xff]
                %293 = vst [vmem:[%s213 + $0x138] sm:$0xff] %v292
                %v294 = vld [vmem:[%s212 + $0x140] sm:$0xff]
                %295 = vst [vmem:[%s213 + $0x140] sm:$0xff] %v294
                %v296 = vld [vmem:[%s212 + $0x148] sm:$0xff]
                %297 = vst [vmem:[%s213 + $0x148] sm:$0xff] %v296
                %v298 = vld [vmem:[%s212 + $0x150] sm:$0xff]
                %299 = vst [vmem:[%s213 + $0x150] sm:$0xff] %v298
                %v300 = vld [vmem:[%s212 + $0x158] sm:$0xff]
                %301 = vst [vmem:[%s213 + $0x158] sm:$0xff] %v300
                %v302 = vld [vmem:[%s212 + $0x160] sm:$0xff]
                %303 = vst [vmem:[%s213 + $0x160] sm:$0xff] %v302
                %v304 = vld [vmem:[%s212 + $0x168] sm:$0xff]
                %305 = vst [vmem:[%s213 + $0x168] sm:$0xff] %v304
                %v306 = vld [vmem:[%s212 + $0x170] sm:$0xff]
                %307 = vst [vmem:[%s213 + $0x170] sm:$0xff] %v306
                %v308 = vld [vmem:[%s212 + $0x178] sm:$0xff]
                %309 = vst [vmem:[%s213 + $0x178] sm:$0xff] %v308
                %v310 = vld [vmem:[%s212 + $0x180] sm:$0xff]
                %311 = vst [vmem:[%s213 + $0x180] sm:$0xff] %v310
                %v312 = vld [vmem:[%s212 + $0x188] sm:$0xff]
                %313 = vst [vmem:[%s213 + $0x188] sm:$0xff] %v312
                %v314 = vld [vmem:[%s212 + $0x190] sm:$0xff]
                %315 = vst [vmem:[%s213 + $0x190] sm:$0xff] %v314
                %v316 = vld [vmem:[%s212 + $0x198] sm:$0xff]
                %317 = vst [vmem:[%s213 + $0x198] sm:$0xff] %v316
                %v318 = vld [vmem:[%s212 + $0x1a0] sm:$0xff]
                %319 = vst [vmem:[%s213 + $0x1a0] sm:$0xff] %v318
                %v320 = vld [vmem:[%s212 + $0x1a8] sm:$0xff]
                %321 = vst [vmem:[%s213 + $0x1a8] sm:$0xff] %v320
                %v322 = vld [vmem:[%s212 + $0x1b0] sm:$0xff]
                %323 = vst [vmem:[%s213 + $0x1b0] sm:$0xff] %v322
                %v324 = vld [vmem:[%s212 + $0x1b8] sm:$0xff]
                %325 = vst [vmem:[%s213 + $0x1b8] sm:$0xff] %v324
                %v326 = vld [vmem:[%s212 + $0x1c0] sm:$0xff]
                %327 = vst [vmem:[%s213 + $0x1c0] sm:$0xff] %v326
                %v328 = vld [vmem:[%s212 + $0x1c8] sm:$0xff]
                %329 = vst [vmem:[%s213 + $0x1c8] sm:$0xff] %v328
                %v330 = vld [vmem:[%s212 + $0x1d0] sm:$0xff]
                %331 = vst [vmem:[%s213 + $0x1d0] sm:$0xff] %v330
                %v332 = vld [vmem:[%s212 + $0x1d8] sm:$0xff]
                %333 = vst [vmem:[%s213 + $0x1d8] sm:$0xff] %v332
                %v334 = vld [vmem:[%s212 + $0x1e0] sm:$0xff]
                %335 = vst [vmem:[%s213 + $0x1e0] sm:$0xff] %v334
                %v336 = vld [vmem:[%s212 + $0x1e8] sm:$0xff]
                %337 = vst [vmem:[%s213 + $0x1e8] sm:$0xff] %v336
                %v338 = vld [vmem:[%s212 + $0x1f0] sm:$0xff]
                %339 = vst [vmem:[%s213 + $0x1f0] sm:$0xff] %v338
                %v340 = vld [vmem:[%s212 + $0x1f8] sm:$0xff]
                %341 = vst [vmem:[%s213 + $0x1f8] sm:$0xff] %v340
                %v342 = vld [vmem:[%s212 + $0x200] sm:$0xff]
                %343 = vst [vmem:[%s213 + $0x200] sm:$0xff] %v342
                %v344 = vld [vmem:[%s212 + $0x208] sm:$0xff]
                %345 = vst [vmem:[%s213 + $0x208] sm:$0xff] %v344
                %v346 = vld [vmem:[%s212 + $0x210] sm:$0xff]
                %347 = vst [vmem:[%s213 + $0x210] sm:$0xff] %v346
                %v348 = vld [vmem:[%s212 + $0x218] sm:$0xff]
                %349 = vst [vmem:[%s213 + $0x218] sm:$0xff] %v348
                %v350 = vld [vmem:[%s212 + $0x220] sm:$0xff]
                %351 = vst [vmem:[%s213 + $0x220] sm:$0xff] %v350
                %v352 = vld [vmem:[%s212 + $0x228] sm:$0xff]
                %353 = vst [vmem:[%s213 + $0x228] sm:$0xff] %v352
                %v354 = vld [vmem:[%s212 + $0x230] sm:$0xff]
                %355 = vst [vmem:[%s213 + $0x230] sm:$0xff] %v354
                %v356 = vld [vmem:[%s212 + $0x238] sm:$0xff]
                %357 = vst [vmem:[%s213 + $0x238] sm:$0xff] %v356
                %v358 = vld [vmem:[%s212 + $0x240] sm:$0xff]
                %359 = vst [vmem:[%s213 + $0x240] sm:$0xff] %v358
                %v360 = vld [vmem:[%s212 + $0x248] sm:$0xff]
                %361 = vst [vmem:[%s213 + $0x248] sm:$0xff] %v360
                %v362 = vld [vmem:[%s212 + $0x250] sm:$0xff]
                %363 = vst [vmem:[%s213 + $0x250] sm:$0xff] %v362
                %v364 = vld [vmem:[%s212 + $0x258] sm:$0xff]
                %365 = vst [vmem:[%s213 + $0x258] sm:$0xff] %v364
                %v366 = vld [vmem:[%s212 + $0x260] sm:$0xff]
                %367 = vst [vmem:[%s213 + $0x260] sm:$0xff] %v366
                %v368 = vld [vmem:[%s212 + $0x268] sm:$0xff]
                %369 = vst [vmem:[%s213 + $0x268] sm:$0xff] %v368
                %v370 = vld [vmem:[%s212 + $0x270] sm:$0xff]
                %371 = vst [vmem:[%s213 + $0x270] sm:$0xff] %v370
                %v372 = vld [vmem:[%s212 + $0x278] sm:$0xff]
                %373 = vst [vmem:[%s213 + $0x278] sm:$0xff] %v372
                %v374 = vld [vmem:[%s212 + $0x280] sm:$0xff]
                %375 = vst [vmem:[%s213 + $0x280] sm:$0xff] %v374
                %v376 = vld [vmem:[%s212 + $0x288] sm:$0xff]
                %377 = vst [vmem:[%s213 + $0x288] sm:$0xff] %v376
                %v378 = vld [vmem:[%s212 + $0x290] sm:$0xff]
                %379 = vst [vmem:[%s213 + $0x290] sm:$0xff] %v378
                %v380 = vld [vmem:[%s212 + $0x298] sm:$0xff]
                %381 = vst [vmem:[%s213 + $0x298] sm:$0xff] %v380
                %v382 = vld [vmem:[%s212 + $0x2a0] sm:$0xff]
                %383 = vst [vmem:[%s213 + $0x2a0] sm:$0xff] %v382
                %v384 = vld [vmem:[%s212 + $0x2a8] sm:$0xff]
                %385 = vst [vmem:[%s213 + $0x2a8] sm:$0xff] %v384
                %v386 = vld [vmem:[%s212 + $0x2b0] sm:$0xff]
                %387 = vst [vmem:[%s213 + $0x2b0] sm:$0xff] %v386
                %v388 = vld [vmem:[%s212 + $0x2b8] sm:$0xff]
                %389 = vst [vmem:[%s213 + $0x2b8] sm:$0xff] %v388
                %v390 = vld [vmem:[%s212 + $0x2c0] sm:$0xff]
                %391 = vst [vmem:[%s213 + $0x2c0] sm:$0xff] %v390
                %v392 = vld [vmem:[%s212 + $0x2c8] sm:$0xff]
                %393 = vst [vmem:[%s213 + $0x2c8] sm:$0xff] %v392
                %v394 = vld [vmem:[%s212 + $0x2d0] sm:$0xff]
                %395 = vst [vmem:[%s213 + $0x2d0] sm:$0xff] %v394
                %v396 = vld [vmem:[%s212 + $0x2d8] sm:$0xff]
                %397 = vst [vmem:[%s213 + $0x2d8] sm:$0xff] %v396
                %v398 = vld [vmem:[%s212 + $0x2e0] sm:$0xff]
                %399 = vst [vmem:[%s213 + $0x2e0] sm:$0xff] %v398
                %v400 = vld [vmem:[%s212 + $0x2e8] sm:$0xff]
                %401 = vst [vmem:[%s213 + $0x2e8] sm:$0xff] %v400
                %v402 = vld [vmem:[%s212 + $0x2f0] sm:$0xff]
                %403 = vst [vmem:[%s213 + $0x2f0] sm:$0xff] %v402
                %v404 = vld [vmem:[%s212 + $0x2f8] sm:$0xff]
                %405 = vst [vmem:[%s213 + $0x2f8] sm:$0xff] %v404
                %v406 = vld [vmem:[%s212 + $0x300] sm:$0xff]
                %407 = vst [vmem:[%s213 + $0x300] sm:$0xff] %v406
                %v408 = vld [vmem:[%s212 + $0x308] sm:$0xff]
                %409 = vst [vmem:[%s213 + $0x308] sm:$0xff] %v408
                %v410 = vld [vmem:[%s212 + $0x310] sm:$0xff]
                %411 = vst [vmem:[%s213 + $0x310] sm:$0xff] %v410
                %v412 = vld [vmem:[%s212 + $0x318] sm:$0xff]
                %413 = vst [vmem:[%s213 + $0x318] sm:$0xff] %v412
                %v414 = vld [vmem:[%s212 + $0x320] sm:$0xff]
                %415 = vst [vmem:[%s213 + $0x320] sm:$0xff] %v414
                %v416 = vld [vmem:[%s212 + $0x328] sm:$0xff]
                %417 = vst [vmem:[%s213 + $0x328] sm:$0xff] %v416
                %v418 = vld [vmem:[%s212 + $0x330] sm:$0xff]
                %419 = vst [vmem:[%s213 + $0x330] sm:$0xff] %v418
                %v420 = vld [vmem:[%s212 + $0x338] sm:$0xff]
                %421 = vst [vmem:[%s213 + $0x338] sm:$0xff] %v420
                %v422 = vld [vmem:[%s212 + $0x340] sm:$0xff]
                %423 = vst [vmem:[%s213 + $0x340] sm:$0xff] %v422
                %v424 = vld [vmem:[%s212 + $0x348] sm:$0xff]
                %425 = vst [vmem:[%s213 + $0x348] sm:$0xff] %v424
                %v426 = vld [vmem:[%s212 + $0x350] sm:$0xff]
                %427 = vst [vmem:[%s213 + $0x350] sm:$0xff] %v426
                %v428 = vld [vmem:[%s212 + $0x358] sm:$0xff]
                %429 = vst [vmem:[%s213 + $0x358] sm:$0xff] %v428
                %v430 = vld [vmem:[%s212 + $0x360] sm:$0xff]
                %431 = vst [vmem:[%s213 + $0x360] sm:$0xff] %v430
                %v432 = vld [vmem:[%s212 + $0x368] sm:$0xff]
                %433 = vst [vmem:[%s213 + $0x368] sm:$0xff] %v432
                %v434 = vld [vmem:[%s212 + $0x370] sm:$0xff]
                %435 = vst [vmem:[%s213 + $0x370] sm:$0xff] %v434
                %v436 = vld [vmem:[%s212 + $0x378] sm:$0xff]
                %437 = vst [vmem:[%s213 + $0x378] sm:$0xff] %v436
                %v438 = vld [vmem:[%s212 + $0x380] sm:$0xff]
                %439 = vst [vmem:[%s213 + $0x380] sm:$0xff] %v438
                %v440 = vld [vmem:[%s212 + $0x388] sm:$0xff]
                %441 = vst [vmem:[%s213 + $0x388] sm:$0xff] %v440
                %v442 = vld [vmem:[%s212 + $0x390] sm:$0xff]
                %443 = vst [vmem:[%s213 + $0x390] sm:$0xff] %v442
                %v444 = vld [vmem:[%s212 + $0x398] sm:$0xff]
                %445 = vst [vmem:[%s213 + $0x398] sm:$0xff] %v444
                %v446 = vld [vmem:[%s212 + $0x3a0] sm:$0xff]
                %447 = vst [vmem:[%s213 + $0x3a0] sm:$0xff] %v446
                %v448 = vld [vmem:[%s212 + $0x3a8] sm:$0xff]
                %449 = vst [vmem:[%s213 + $0x3a8] sm:$0xff] %v448
                %v450 = vld [vmem:[%s212 + $0x3b0] sm:$0xff]
                %451 = vst [vmem:[%s213 + $0x3b0] sm:$0xff] %v450
                %v452 = vld [vmem:[%s212 + $0x3b8] sm:$0xff]
                %453 = vst [vmem:[%s213 + $0x3b8] sm:$0xff] %v452
                %v454 = vld [vmem:[%s212 + $0x3c0] sm:$0xff]
                %455 = vst [vmem:[%s213 + $0x3c0] sm:$0xff] %v454
                %v456 = vld [vmem:[%s212 + $0x3c8] sm:$0xff]
                %457 = vst [vmem:[%s213 + $0x3c8] sm:$0xff] %v456
                %v458 = vld [vmem:[%s212 + $0x3d0] sm:$0xff]
                %459 = vst [vmem:[%s213 + $0x3d0] sm:$0xff] %v458
                %v460 = vld [vmem:[%s212 + $0x3d8] sm:$0xff]
                %461 = vst [vmem:[%s213 + $0x3d8] sm:$0xff] %v460
                %v462 = vld [vmem:[%s212 + $0x3e0] sm:$0xff]
                %463 = vst [vmem:[%s213 + $0x3e0] sm:$0xff] %v462
                %v464 = vld [vmem:[%s212 + $0x3e8] sm:$0xff]
                %465 = vst [vmem:[%s213 + $0x3e8] sm:$0xff] %v464
                %v466 = vld [vmem:[%s212 + $0x3f0] sm:$0xff]
                %467 = vst [vmem:[%s213 + $0x3f0] sm:$0xff] %v466
                %v468 = vld [vmem:[%s212 + $0x3f8] sm:$0xff]
                %469 = vst [vmem:[%s213 + $0x3f8] sm:$0xff] %v468
              $region50: #{appnp_forward.3} parent=44 // loop_footer
                %s211 = sadd.s32 1, %s207
              $region51: #{appnp_forward.3} parent=44 // loop_footer_branch
                %206 = sbr.rel target = $region47
              $region52: #{appnp_forward.3} parent=44 // loop_exit
                _
            $region45: #{appnp_forward.3} parent=41 // pred_fallthru
              _
            // Predicated region
            $region53: #{appnp_forward.3} parent=41 // pred_check
              _
            $region54: #{appnp_forward.3} parent=41 // pred_check_branch
              %471 = sbr.rel target = $region56
            $region55: #{appnp_forward.3} parent=41 // pred_region
              _
            $region56: #{appnp_forward.3} parent=41 // pred_fallthru
              _
            // Predicated region
            $region57: #{appnp_forward.3} parent=41 // pred_check
              _
            $region58: #{appnp_forward.3} parent=41 // pred_check_branch
              %474 = sbr.rel (0) target = $region60
            $region59: #{appnp_forward.3} parent=41 // pred_region
              %475 = vsyncadd [#allocation8], 16384
            $region60: #{appnp_forward.3} parent=41 // pred_fallthru
              _
            %s476 = smul.u32 8, 64
            %s477 = smul.u32 %s476, 2
            %s478 = sshll.u32 %s477, 4
            %479 = dma.done [#allocation8], %s478
        $region40: #{appnp_forward.3} parent=31 // pred_fallthru
          _
        %s480 = sadd.s32 %s21, 1
        %p481 = scmp.lt.s32.totalorder %s480, 0
        %s482 = ssub.s32 0, %s480
        %s483 = scalar_select %p481, %s482, %s480
        %s484 = sand.u32 %s483, 1
        %s485 = ssub.s32 0, %s484
        %s486 = scalar_select %p481, %s485, %s484
        %p487 = scmp.ne.s32.totalorder %s486, 0
        %p488 = scmp.lt.s32.totalorder %s486, 0
        %p489 = pnand %p488, %p487
        %p490 = pneg %p489
        %s491 = sadd.s32 %s486, 2
        %s492 = scalar_select %p490, %s491, %s486
        %s493 = smul.u32 %s492, 512
        %p494 = scmp.lt.s32.totalorder %s21, 0
        %s495 = ssub.s32 0, %s21
        %s496 = scalar_select %p494, %s495, %s21
        %s497 = sand.u32 %s496, 1
        %s498 = ssub.s32 0, %s497
        %s499 = scalar_select %p494, %s498, %s497
        %p500 = scmp.ne.s32.totalorder %s499, 0
        %p501 = scmp.lt.s32.totalorder %s499, 0
        %p502 = pnand %p501, %p500
        %p503 = pneg %p502
        %s504 = sadd.s32 %s499, 2
        %s505 = scalar_select %p503, %s504, %s499
        %s506 = smul.u32 %s505, 512
        %v507 = vld [vmem:[#allocation4] sm:$0xff]
        %v508 = vld [vmem:[#allocation4 + $0x8] sm:$0xff]
        %v509 = vld [vmem:[#allocation4 + $0x10] sm:$0xff]
        %v510 = vld [vmem:[#allocation4 + $0x18] sm:$0xff]
        %v511 = vld [vmem:[#allocation4 + $0x20] sm:$0xff]
        %v512 = vld [vmem:[#allocation4 + $0x28] sm:$0xff]
        %v513 = vld [vmem:[#allocation4 + $0x30] sm:$0xff]
        %v514 = vld [vmem:[#allocation4 + $0x38] sm:$0xff]
        %v515 = vld [vmem:[#allocation4 + $0x40] sm:$0xff]
        %v516 = vld [vmem:[#allocation4 + $0x48] sm:$0xff]
        %v517 = vld [vmem:[#allocation4 + $0x50] sm:$0xff]
        %v518 = vld [vmem:[#allocation4 + $0x58] sm:$0xff]
        %v519 = vld [vmem:[#allocation4 + $0x60] sm:$0xff]
        %v520 = vld [vmem:[#allocation4 + $0x68] sm:$0xff]
        %v521 = vld [vmem:[#allocation4 + $0x70] sm:$0xff]
        %v522 = vld [vmem:[#allocation4 + $0x78] sm:$0xff]
        %v523 = vld [vmem:[#allocation4 + $0x80] sm:$0xff]
        %v524 = vld [vmem:[#allocation4 + $0x88] sm:$0xff]
        %v525 = vld [vmem:[#allocation4 + $0x90] sm:$0xff]
        %v526 = vld [vmem:[#allocation4 + $0x98] sm:$0xff]
        %v527 = vld [vmem:[#allocation4 + $0xa0] sm:$0xff]
        %v528 = vld [vmem:[#allocation4 + $0xa8] sm:$0xff]
        %v529 = vld [vmem:[#allocation4 + $0xb0] sm:$0xff]
        %v530 = vld [vmem:[#allocation4 + $0xb8] sm:$0xff]
        %v531 = vld [vmem:[#allocation4 + $0xc0] sm:$0xff]
        %v532 = vld [vmem:[#allocation4 + $0xc8] sm:$0xff]
        %v533 = vld [vmem:[#allocation4 + $0xd0] sm:$0xff]
        %v534 = vld [vmem:[#allocation4 + $0xd8] sm:$0xff]
        %v535 = vld [vmem:[#allocation4 + $0xe0] sm:$0xff]
        %v536 = vld [vmem:[#allocation4 + $0xe8] sm:$0xff]
        %v537 = vld [vmem:[#allocation4 + $0xf0] sm:$0xff]
        %v538 = vld [vmem:[#allocation4 + $0xf8] sm:$0xff]
        %v539 = vld [vmem:[#allocation4 + $0x100] sm:$0xff]
        %v540 = vld [vmem:[#allocation4 + $0x108] sm:$0xff]
        %v541 = vld [vmem:[#allocation4 + $0x110] sm:$0xff]
        %v542 = vld [vmem:[#allocation4 + $0x118] sm:$0xff]
        %v543 = vld [vmem:[#allocation4 + $0x120] sm:$0xff]
        %v544 = vld [vmem:[#allocation4 + $0x128] sm:$0xff]
        %v545 = vld [vmem:[#allocation4 + $0x130] sm:$0xff]
        %v546 = vld [vmem:[#allocation4 + $0x138] sm:$0xff]
        %v547 = vld [vmem:[#allocation4 + $0x140] sm:$0xff]
        %v548 = vld [vmem:[#allocation4 + $0x148] sm:$0xff]
        %v549 = vld [vmem:[#allocation4 + $0x150] sm:$0xff]
        %v550 = vld [vmem:[#allocation4 + $0x158] sm:$0xff]
        %v551 = vld [vmem:[#allocation4 + $0x160] sm:$0xff]
        %v552 = vld [vmem:[#allocation4 + $0x168] sm:$0xff]
        %v553 = vld [vmem:[#allocation4 + $0x170] sm:$0xff]
        %v554 = vld [vmem:[#allocation4 + $0x178] sm:$0xff]
        %v555 = vld [vmem:[#allocation4 + $0x180] sm:$0xff]
        %v556 = vld [vmem:[#allocation4 + $0x188] sm:$0xff]
        %v557 = vld [vmem:[#allocation4 + $0x190] sm:$0xff]
        %v558 = vld [vmem:[#allocation4 + $0x198] sm:$0xff]
        %v559 = vld [vmem:[#allocation4 + $0x1a0] sm:$0xff]
        %v560 = vld [vmem:[#allocation4 + $0x1a8] sm:$0xff]
        %v561 = vld [vmem:[#allocation4 + $0x1b0] sm:$0xff]
        %v562 = vld [vmem:[#allocation4 + $0x1b8] sm:$0xff]
        %v563 = vld [vmem:[#allocation4 + $0x1c0] sm:$0xff]
        %v564 = vld [vmem:[#allocation4 + $0x1c8] sm:$0xff]
        %v565 = vld [vmem:[#allocation4 + $0x1d0] sm:$0xff]
        %v566 = vld [vmem:[#allocation4 + $0x1d8] sm:$0xff]
        %v567 = vld [vmem:[#allocation4 + $0x1e0] sm:$0xff]
        %v568 = vld [vmem:[#allocation4 + $0x1e8] sm:$0xff]
        %v569 = vld [vmem:[#allocation4 + $0x1f0] sm:$0xff]
        %v570 = vld [vmem:[#allocation4 + $0x1f8] sm:$0xff]
        %v571 = vld [vmem:[#allocation4 + $0x200] sm:$0xff]
        %v572 = vld [vmem:[#allocation4 + $0x208] sm:$0xff]
        %v573 = vld [vmem:[#allocation4 + $0x210] sm:$0xff]
        %v574 = vld [vmem:[#allocation4 + $0x218] sm:$0xff]
        %v575 = vld [vmem:[#allocation4 + $0x220] sm:$0xff]
        %v576 = vld [vmem:[#allocation4 + $0x228] sm:$0xff]
        %v577 = vld [vmem:[#allocation4 + $0x230] sm:$0xff]
        %v578 = vld [vmem:[#allocation4 + $0x238] sm:$0xff]
        %v579 = vld [vmem:[#allocation4 + $0x240] sm:$0xff]
        %v580 = vld [vmem:[#allocation4 + $0x248] sm:$0xff]
        %v581 = vld [vmem:[#allocation4 + $0x250] sm:$0xff]
        %v582 = vld [vmem:[#allocation4 + $0x258] sm:$0xff]
        %v583 = vld [vmem:[#allocation4 + $0x260] sm:$0xff]
        %v584 = vld [vmem:[#allocation4 + $0x268] sm:$0xff]
        %v585 = vld [vmem:[#allocation4 + $0x270] sm:$0xff]
        %v586 = vld [vmem:[#allocation4 + $0x278] sm:$0xff]
        %v587 = vld [vmem:[#allocation4 + $0x280] sm:$0xff]
        %v588 = vld [vmem:[#allocation4 + $0x288] sm:$0xff]
        %v589 = vld [vmem:[#allocation4 + $0x290] sm:$0xff]
        %v590 = vld [vmem:[#allocation4 + $0x298] sm:$0xff]
        %v591 = vld [vmem:[#allocation4 + $0x2a0] sm:$0xff]
        %v592 = vld [vmem:[#allocation4 + $0x2a8] sm:$0xff]
        %v593 = vld [vmem:[#allocation4 + $0x2b0] sm:$0xff]
        %v594 = vld [vmem:[#allocation4 + $0x2b8] sm:$0xff]
        %v595 = vld [vmem:[#allocation4 + $0x2c0] sm:$0xff]
        %v596 = vld [vmem:[#allocation4 + $0x2c8] sm:$0xff]
        %v597 = vld [vmem:[#allocation4 + $0x2d0] sm:$0xff]
        %v598 = vld [vmem:[#allocation4 + $0x2d8] sm:$0xff]
        %v599 = vld [vmem:[#allocation4 + $0x2e0] sm:$0xff]
        %v600 = vld [vmem:[#allocation4 + $0x2e8] sm:$0xff]
        %v601 = vld [vmem:[#allocation4 + $0x2f0] sm:$0xff]
        %v602 = vld [vmem:[#allocation4 + $0x2f8] sm:$0xff]
        %v603 = vld [vmem:[#allocation4 + $0x300] sm:$0xff]
        %v604 = vld [vmem:[#allocation4 + $0x308] sm:$0xff]
        %v605 = vld [vmem:[#allocation4 + $0x310] sm:$0xff]
        %v606 = vld [vmem:[#allocation4 + $0x318] sm:$0xff]
        %v607 = vld [vmem:[#allocation4 + $0x320] sm:$0xff]
        %v608 = vld [vmem:[#allocation4 + $0x328] sm:$0xff]
        %v609 = vld [vmem:[#allocation4 + $0x330] sm:$0xff]
        %v610 = vld [vmem:[#allocation4 + $0x338] sm:$0xff]
        %v611 = vld [vmem:[#allocation4 + $0x340] sm:$0xff]
        %v612 = vld [vmem:[#allocation4 + $0x348] sm:$0xff]
        %v613 = vld [vmem:[#allocation4 + $0x350] sm:$0xff]
        %v614 = vld [vmem:[#allocation4 + $0x358] sm:$0xff]
        %v615 = vld [vmem:[#allocation4 + $0x360] sm:$0xff]
        %v616 = vld [vmem:[#allocation4 + $0x368] sm:$0xff]
        %v617 = vld [vmem:[#allocation4 + $0x370] sm:$0xff]
        %v618 = vld [vmem:[#allocation4 + $0x378] sm:$0xff]
        %v619 = vld [vmem:[#allocation4 + $0x380] sm:$0xff]
        %v620 = vld [vmem:[#allocation4 + $0x388] sm:$0xff]
        %v621 = vld [vmem:[#allocation4 + $0x390] sm:$0xff]
        %v622 = vld [vmem:[#allocation4 + $0x398] sm:$0xff]
        %v623 = vld [vmem:[#allocation4 + $0x3a0] sm:$0xff]
        %v624 = vld [vmem:[#allocation4 + $0x3a8] sm:$0xff]
        %v625 = vld [vmem:[#allocation4 + $0x3b0] sm:$0xff]
        %v626 = vld [vmem:[#allocation4 + $0x3b8] sm:$0xff]
        %v627 = vld [vmem:[#allocation4 + $0x3c0] sm:$0xff]
        %v628 = vld [vmem:[#allocation4 + $0x3c8] sm:$0xff]
        %v629 = vld [vmem:[#allocation4 + $0x3d0] sm:$0xff]
        %v630 = vld [vmem:[#allocation4 + $0x3d8] sm:$0xff]
        %v631 = vld [vmem:[#allocation4 + $0x3e0] sm:$0xff]
        %v632 = vld [vmem:[#allocation4 + $0x3e8] sm:$0xff]
        %v633 = vld [vmem:[#allocation4 + $0x3f0] sm:$0xff]
        %v634 = vld [vmem:[#allocation4 + $0x3f8] sm:$0xff]
        %v635 = vld [vmem:[#allocation4 + $0x400] sm:$0xff]
        %v636 = vld [vmem:[#allocation4 + $0x408] sm:$0xff]
        %v637 = vld [vmem:[#allocation4 + $0x410] sm:$0xff]
        %v638 = vld [vmem:[#allocation4 + $0x418] sm:$0xff]
        %v639 = vld [vmem:[#allocation4 + $0x420] sm:$0xff]
        %v640 = vld [vmem:[#allocation4 + $0x428] sm:$0xff]
        %v641 = vld [vmem:[#allocation4 + $0x430] sm:$0xff]
        %v642 = vld [vmem:[#allocation4 + $0x438] sm:$0xff]
        %v643 = vld [vmem:[#allocation4 + $0x440] sm:$0xff]
        %v644 = vld [vmem:[#allocation4 + $0x448] sm:$0xff]
        %v645 = vld [vmem:[#allocation4 + $0x450] sm:$0xff]
        %v646 = vld [vmem:[#allocation4 + $0x458] sm:$0xff]
        %v647 = vld [vmem:[#allocation4 + $0x460] sm:$0xff]
        %v648 = vld [vmem:[#allocation4 + $0x468] sm:$0xff]
        %v649 = vld [vmem:[#allocation4 + $0x470] sm:$0xff]
        %v650 = vld [vmem:[#allocation4 + $0x478] sm:$0xff]
        %v651 = vld [vmem:[#allocation4 + $0x480] sm:$0xff]
        %v652 = vld [vmem:[#allocation4 + $0x488] sm:$0xff]
        %v653 = vld [vmem:[#allocation4 + $0x490] sm:$0xff]
        %v654 = vld [vmem:[#allocation4 + $0x498] sm:$0xff]
        %v655 = vld [vmem:[#allocation4 + $0x4a0] sm:$0xff]
        %v656 = vld [vmem:[#allocation4 + $0x4a8] sm:$0xff]
        %v657 = vld [vmem:[#allocation4 + $0x4b0] sm:$0xff]
        %v658 = vld [vmem:[#allocation4 + $0x4b8] sm:$0xff]
        %v659 = vld [vmem:[#allocation4 + $0x4c0] sm:$0xff]
        %v660 = vld [vmem:[#allocation4 + $0x4c8] sm:$0xff]
        %v661 = vld [vmem:[#allocation4 + $0x4d0] sm:$0xff]
        %v662 = vld [vmem:[#allocation4 + $0x4d8] sm:$0xff]
        %v663 = vld [vmem:[#allocation4 + $0x4e0] sm:$0xff]
        %v664 = vld [vmem:[#allocation4 + $0x4e8] sm:$0xff]
        %v665 = vld [vmem:[#allocation4 + $0x4f0] sm:$0xff]
        %v666 = vld [vmem:[#allocation4 + $0x4f8] sm:$0xff]
        %v667 = vld [vmem:[#allocation4 + $0x500] sm:$0xff]
        %v668 = vld [vmem:[#allocation4 + $0x508] sm:$0xff]
        %v669 = vld [vmem:[#allocation4 + $0x510] sm:$0xff]
        %v670 = vld [vmem:[#allocation4 + $0x518] sm:$0xff]
        %v671 = vld [vmem:[#allocation4 + $0x520] sm:$0xff]
        %v672 = vld [vmem:[#allocation4 + $0x528] sm:$0xff]
        %v673 = vld [vmem:[#allocation4 + $0x530] sm:$0xff]
        %v674 = vld [vmem:[#allocation4 + $0x538] sm:$0xff]
        %v675 = vld [vmem:[#allocation4 + $0x540] sm:$0xff]
        %v676 = vld [vmem:[#allocation4 + $0x548] sm:$0xff]
        %v677 = vld [vmem:[#allocation4 + $0x550] sm:$0xff]
        %v678 = vld [vmem:[#allocation4 + $0x558] sm:$0xff]
        %v679 = vld [vmem:[#allocation4 + $0x560] sm:$0xff]
        %v680 = vld [vmem:[#allocation4 + $0x568] sm:$0xff]
        %v681 = vld [vmem:[#allocation4 + $0x570] sm:$0xff]
        %v682 = vld [vmem:[#allocation4 + $0x578] sm:$0xff]
        %v683 = vld [vmem:[#allocation4 + $0x580] sm:$0xff]
        %v684 = vld [vmem:[#allocation4 + $0x588] sm:$0xff]
        %v685 = vld [vmem:[#allocation4 + $0x590] sm:$0xff]
        %v686 = vld [vmem:[#allocation4 + $0x598] sm:$0xff]
        %v687 = vld [vmem:[#allocation4 + $0x5a0] sm:$0xff]
        %v688 = vld [vmem:[#allocation4 + $0x5a8] sm:$0xff]
        %v689 = vld [vmem:[#allocation4 + $0x5b0] sm:$0xff]
        %v690 = vld [vmem:[#allocation4 + $0x5b8] sm:$0xff]
        %v691 = vld [vmem:[#allocation4 + $0x5c0] sm:$0xff]
        %v692 = vld [vmem:[#allocation4 + $0x5c8] sm:$0xff]
        %v693 = vld [vmem:[#allocation4 + $0x5d0] sm:$0xff]
        %v694 = vld [vmem:[#allocation4 + $0x5d8] sm:$0xff]
        %v695 = vld [vmem:[#allocation4 + $0x5e0] sm:$0xff]
        %v696 = vld [vmem:[#allocation4 + $0x5e8] sm:$0xff]
        %v697 = vld [vmem:[#allocation4 + $0x5f0] sm:$0xff]
        %v698 = vld [vmem:[#allocation4 + $0x5f8] sm:$0xff]
        %v699 = vld [vmem:[#allocation4 + $0x600] sm:$0xff]
        %v700 = vld [vmem:[#allocation4 + $0x608] sm:$0xff]
        %v701 = vld [vmem:[#allocation4 + $0x610] sm:$0xff]
        %v702 = vld [vmem:[#allocation4 + $0x618] sm:$0xff]
        %v703 = vld [vmem:[#allocation4 + $0x620] sm:$0xff]
        %v704 = vld [vmem:[#allocation4 + $0x628] sm:$0xff]
        %v705 = vld [vmem:[#allocation4 + $0x630] sm:$0xff]
        %v706 = vld [vmem:[#allocation4 + $0x638] sm:$0xff]
        %v707 = vld [vmem:[#allocation4 + $0x640] sm:$0xff]
        %v708 = vld [vmem:[#allocation4 + $0x648] sm:$0xff]
        %v709 = vld [vmem:[#allocation4 + $0x650] sm:$0xff]
        %v710 = vld [vmem:[#allocation4 + $0x658] sm:$0xff]
        %v711 = vld [vmem:[#allocation4 + $0x660] sm:$0xff]
        %v712 = vld [vmem:[#allocation4 + $0x668] sm:$0xff]
        %v713 = vld [vmem:[#allocation4 + $0x670] sm:$0xff]
        %v714 = vld [vmem:[#allocation4 + $0x678] sm:$0xff]
        %v715 = vld [vmem:[#allocation4 + $0x680] sm:$0xff]
        %v716 = vld [vmem:[#allocation4 + $0x688] sm:$0xff]
        %v717 = vld [vmem:[#allocation4 + $0x690] sm:$0xff]
        %v718 = vld [vmem:[#allocation4 + $0x698] sm:$0xff]
        %v719 = vld [vmem:[#allocation4 + $0x6a0] sm:$0xff]
        %v720 = vld [vmem:[#allocation4 + $0x6a8] sm:$0xff]
        %v721 = vld [vmem:[#allocation4 + $0x6b0] sm:$0xff]
        %v722 = vld [vmem:[#allocation4 + $0x6b8] sm:$0xff]
        %v723 = vld [vmem:[#allocation4 + $0x6c0] sm:$0xff]
        %v724 = vld [vmem:[#allocation4 + $0x6c8] sm:$0xff]
        %v725 = vld [vmem:[#allocation4 + $0x6d0] sm:$0xff]
        %v726 = vld [vmem:[#allocation4 + $0x6d8] sm:$0xff]
        %v727 = vld [vmem:[#allocation4 + $0x6e0] sm:$0xff]
        %v728 = vld [vmem:[#allocation4 + $0x6e8] sm:$0xff]
        %v729 = vld [vmem:[#allocation4 + $0x6f0] sm:$0xff]
        %v730 = vld [vmem:[#allocation4 + $0x6f8] sm:$0xff]
        %v731 = vld [vmem:[#allocation4 + $0x700] sm:$0xff]
        %v732 = vld [vmem:[#allocation4 + $0x708] sm:$0xff]
        %v733 = vld [vmem:[#allocation4 + $0x710] sm:$0xff]
        %v734 = vld [vmem:[#allocation4 + $0x718] sm:$0xff]
        %v735 = vld [vmem:[#allocation4 + $0x720] sm:$0xff]
        %v736 = vld [vmem:[#allocation4 + $0x728] sm:$0xff]
        %v737 = vld [vmem:[#allocation4 + $0x730] sm:$0xff]
        %v738 = vld [vmem:[#allocation4 + $0x738] sm:$0xff]
        %v739 = vld [vmem:[#allocation4 + $0x740] sm:$0xff]
        %v740 = vld [vmem:[#allocation4 + $0x748] sm:$0xff]
        %v741 = vld [vmem:[#allocation4 + $0x750] sm:$0xff]
        %v742 = vld [vmem:[#allocation4 + $0x758] sm:$0xff]
        %v743 = vld [vmem:[#allocation4 + $0x760] sm:$0xff]
        %v744 = vld [vmem:[#allocation4 + $0x768] sm:$0xff]
        %v745 = vld [vmem:[#allocation4 + $0x770] sm:$0xff]
        %v746 = vld [vmem:[#allocation4 + $0x778] sm:$0xff]
        %v747 = vld [vmem:[#allocation4 + $0x780] sm:$0xff]
        %v748 = vld [vmem:[#allocation4 + $0x788] sm:$0xff]
        %v749 = vld [vmem:[#allocation4 + $0x790] sm:$0xff]
        %v750 = vld [vmem:[#allocation4 + $0x798] sm:$0xff]
        %v751 = vld [vmem:[#allocation4 + $0x7a0] sm:$0xff]
        %v752 = vld [vmem:[#allocation4 + $0x7a8] sm:$0xff]
        %v753 = vld [vmem:[#allocation4 + $0x7b0] sm:$0xff]
        %v754 = vld [vmem:[#allocation4 + $0x7b8] sm:$0xff]
        %v755 = vld [vmem:[#allocation4 + $0x7c0] sm:$0xff]
        %v756 = vld [vmem:[#allocation4 + $0x7c8] sm:$0xff]
        %v757 = vld [vmem:[#allocation4 + $0x7d0] sm:$0xff]
        %v758 = vld [vmem:[#allocation4 + $0x7d8] sm:$0xff]
        %v759 = vld [vmem:[#allocation4 + $0x7e0] sm:$0xff]
        %v760 = vld [vmem:[#allocation4 + $0x7e8] sm:$0xff]
        %v761 = vld [vmem:[#allocation4 + $0x7f0] sm:$0xff]
        %v762 = vld [vmem:[#allocation4 + $0x7f8] sm:$0xff]
        %s763 = smul.u32 %s23, 512
        %s764 = sadd.s32 %s493, %s763
        %s765 = sshra.s32 %s764, 3
        %s766 = sand.u32 %s764, 7
        %s767 = smul.u32 %s765, 2
        %s768 = smul.addr %s767, 8
        %s769 = scalar_lea.vmem [#allocation3], %s768
        %v770 = vld [vmem:[%s769] sm:$0xff]
        %v771 = vld [vmem:[%s769 + $0x8] sm:$0xff]
        %v772 = vld [vmem:[%s769 + $0x10] sm:$0xff]
        %v773 = vld [vmem:[%s769 + $0x18] sm:$0xff]
        %v774 = vld [vmem:[%s769 + $0x20] sm:$0xff]
        %v775 = vld [vmem:[%s769 + $0x28] sm:$0xff]
        %v776 = vld [vmem:[%s769 + $0x30] sm:$0xff]
        %v777 = vld [vmem:[%s769 + $0x38] sm:$0xff]
        %v778 = vld [vmem:[%s769 + $0x40] sm:$0xff]
        %v779 = vld [vmem:[%s769 + $0x48] sm:$0xff]
        %v780 = vld [vmem:[%s769 + $0x50] sm:$0xff]
        %v781 = vld [vmem:[%s769 + $0x58] sm:$0xff]
        %v782 = vld [vmem:[%s769 + $0x60] sm:$0xff]
        %v783 = vld [vmem:[%s769 + $0x68] sm:$0xff]
        %v784 = vld [vmem:[%s769 + $0x70] sm:$0xff]
        %v785 = vld [vmem:[%s769 + $0x78] sm:$0xff]
        %v786 = vld [vmem:[%s769 + $0x80] sm:$0xff]
        %v787 = vld [vmem:[%s769 + $0x88] sm:$0xff]
        %v788 = vld [vmem:[%s769 + $0x90] sm:$0xff]
        %v789 = vld [vmem:[%s769 + $0x98] sm:$0xff]
        %v790 = vld [vmem:[%s769 + $0xa0] sm:$0xff]
        %v791 = vld [vmem:[%s769 + $0xa8] sm:$0xff]
        %v792 = vld [vmem:[%s769 + $0xb0] sm:$0xff]
        %v793 = vld [vmem:[%s769 + $0xb8] sm:$0xff]
        %v794 = vld [vmem:[%s769 + $0xc0] sm:$0xff]
        %v795 = vld [vmem:[%s769 + $0xc8] sm:$0xff]
        %v796 = vld [vmem:[%s769 + $0xd0] sm:$0xff]
        %v797 = vld [vmem:[%s769 + $0xd8] sm:$0xff]
        %v798 = vld [vmem:[%s769 + $0xe0] sm:$0xff]
        %v799 = vld [vmem:[%s769 + $0xe8] sm:$0xff]
        %v800 = vld [vmem:[%s769 + $0xf0] sm:$0xff]
        %v801 = vld [vmem:[%s769 + $0xf8] sm:$0xff]
        %v802 = vld [vmem:[%s769 + $0x100] sm:$0xff]
        %v803 = vld [vmem:[%s769 + $0x108] sm:$0xff]
        %v804 = vld [vmem:[%s769 + $0x110] sm:$0xff]
        %v805 = vld [vmem:[%s769 + $0x118] sm:$0xff]
        %v806 = vld [vmem:[%s769 + $0x120] sm:$0xff]
        %v807 = vld [vmem:[%s769 + $0x128] sm:$0xff]
        %v808 = vld [vmem:[%s769 + $0x130] sm:$0xff]
        %v809 = vld [vmem:[%s769 + $0x138] sm:$0xff]
        %v810 = vld [vmem:[%s769 + $0x140] sm:$0xff]
        %v811 = vld [vmem:[%s769 + $0x148] sm:$0xff]
        %v812 = vld [vmem:[%s769 + $0x150] sm:$0xff]
        %v813 = vld [vmem:[%s769 + $0x158] sm:$0xff]
        %v814 = vld [vmem:[%s769 + $0x160] sm:$0xff]
        %v815 = vld [vmem:[%s769 + $0x168] sm:$0xff]
        %v816 = vld [vmem:[%s769 + $0x170] sm:$0xff]
        %v817 = vld [vmem:[%s769 + $0x178] sm:$0xff]
        %v818 = vld [vmem:[%s769 + $0x180] sm:$0xff]
        %v819 = vld [vmem:[%s769 + $0x188] sm:$0xff]
        %v820 = vld [vmem:[%s769 + $0x190] sm:$0xff]
        %v821 = vld [vmem:[%s769 + $0x198] sm:$0xff]
        %v822 = vld [vmem:[%s769 + $0x1a0] sm:$0xff]
        %v823 = vld [vmem:[%s769 + $0x1a8] sm:$0xff]
        %v824 = vld [vmem:[%s769 + $0x1b0] sm:$0xff]
        %v825 = vld [vmem:[%s769 + $0x1b8] sm:$0xff]
        %v826 = vld [vmem:[%s769 + $0x1c0] sm:$0xff]
        %v827 = vld [vmem:[%s769 + $0x1c8] sm:$0xff]
        %v828 = vld [vmem:[%s769 + $0x1d0] sm:$0xff]
        %v829 = vld [vmem:[%s769 + $0x1d8] sm:$0xff]
        %v830 = vld [vmem:[%s769 + $0x1e0] sm:$0xff]
        %v831 = vld [vmem:[%s769 + $0x1e8] sm:$0xff]
        %v832 = vld [vmem:[%s769 + $0x1f0] sm:$0xff]
        %v833 = vld [vmem:[%s769 + $0x1f8] sm:$0xff]
        %v834 = vld [vmem:[%s769 + $0x200] sm:$0xff]
        %v835 = vld [vmem:[%s769 + $0x208] sm:$0xff]
        %v836 = vld [vmem:[%s769 + $0x210] sm:$0xff]
        %v837 = vld [vmem:[%s769 + $0x218] sm:$0xff]
        %v838 = vld [vmem:[%s769 + $0x220] sm:$0xff]
        %v839 = vld [vmem:[%s769 + $0x228] sm:$0xff]
        %v840 = vld [vmem:[%s769 + $0x230] sm:$0xff]
        %v841 = vld [vmem:[%s769 + $0x238] sm:$0xff]
        %v842 = vld [vmem:[%s769 + $0x240] sm:$0xff]
        %v843 = vld [vmem:[%s769 + $0x248] sm:$0xff]
        %v844 = vld [vmem:[%s769 + $0x250] sm:$0xff]
        %v845 = vld [vmem:[%s769 + $0x258] sm:$0xff]
        %v846 = vld [vmem:[%s769 + $0x260] sm:$0xff]
        %v847 = vld [vmem:[%s769 + $0x268] sm:$0xff]
        %v848 = vld [vmem:[%s769 + $0x270] sm:$0xff]
        %v849 = vld [vmem:[%s769 + $0x278] sm:$0xff]
        %v850 = vld [vmem:[%s769 + $0x280] sm:$0xff]
        %v851 = vld [vmem:[%s769 + $0x288] sm:$0xff]
        %v852 = vld [vmem:[%s769 + $0x290] sm:$0xff]
        %v853 = vld [vmem:[%s769 + $0x298] sm:$0xff]
        %v854 = vld [vmem:[%s769 + $0x2a0] sm:$0xff]
        %v855 = vld [vmem:[%s769 + $0x2a8] sm:$0xff]
        %v856 = vld [vmem:[%s769 + $0x2b0] sm:$0xff]
        %v857 = vld [vmem:[%s769 + $0x2b8] sm:$0xff]
        %v858 = vld [vmem:[%s769 + $0x2c0] sm:$0xff]
        %v859 = vld [vmem:[%s769 + $0x2c8] sm:$0xff]
        %v860 = vld [vmem:[%s769 + $0x2d0] sm:$0xff]
        %v861 = vld [vmem:[%s769 + $0x2d8] sm:$0xff]
        %v862 = vld [vmem:[%s769 + $0x2e0] sm:$0xff]
        %v863 = vld [vmem:[%s769 + $0x2e8] sm:$0xff]
        %v864 = vld [vmem:[%s769 + $0x2f0] sm:$0xff]
        %v865 = vld [vmem:[%s769 + $0x2f8] sm:$0xff]
        %v866 = vld [vmem:[%s769 + $0x300] sm:$0xff]
        %v867 = vld [vmem:[%s769 + $0x308] sm:$0xff]
        %v868 = vld [vmem:[%s769 + $0x310] sm:$0xff]
        %v869 = vld [vmem:[%s769 + $0x318] sm:$0xff]
        %v870 = vld [vmem:[%s769 + $0x320] sm:$0xff]
        %v871 = vld [vmem:[%s769 + $0x328] sm:$0xff]
        %v872 = vld [vmem:[%s769 + $0x330] sm:$0xff]
        %v873 = vld [vmem:[%s769 + $0x338] sm:$0xff]
        %v874 = vld [vmem:[%s769 + $0x340] sm:$0xff]
        %v875 = vld [vmem:[%s769 + $0x348] sm:$0xff]
        %v876 = vld [vmem:[%s769 + $0x350] sm:$0xff]
        %v877 = vld [vmem:[%s769 + $0x358] sm:$0xff]
        %v878 = vld [vmem:[%s769 + $0x360] sm:$0xff]
        %v879 = vld [vmem:[%s769 + $0x368] sm:$0xff]
        %v880 = vld [vmem:[%s769 + $0x370] sm:$0xff]
        %v881 = vld [vmem:[%s769 + $0x378] sm:$0xff]
        %v882 = vld [vmem:[%s769 + $0x380] sm:$0xff]
        %v883 = vld [vmem:[%s769 + $0x388] sm:$0xff]
        %v884 = vld [vmem:[%s769 + $0x390] sm:$0xff]
        %v885 = vld [vmem:[%s769 + $0x398] sm:$0xff]
        %v886 = vld [vmem:[%s769 + $0x3a0] sm:$0xff]
        %v887 = vld [vmem:[%s769 + $0x3a8] sm:$0xff]
        %v888 = vld [vmem:[%s769 + $0x3b0] sm:$0xff]
        %v889 = vld [vmem:[%s769 + $0x3b8] sm:$0xff]
        %v890 = vld [vmem:[%s769 + $0x3c0] sm:$0xff]
        %v891 = vld [vmem:[%s769 + $0x3c8] sm:$0xff]
        %v892 = vld [vmem:[%s769 + $0x3d0] sm:$0xff]
        %v893 = vld [vmem:[%s769 + $0x3d8] sm:$0xff]
        %v894 = vld [vmem:[%s769 + $0x3e0] sm:$0xff]
        %v895 = vld [vmem:[%s769 + $0x3e8] sm:$0xff]
        %v896 = vld [vmem:[%s769 + $0x3f0] sm:$0xff]
        %v897 = vld [vmem:[%s769 + $0x3f8] sm:$0xff]
        %898 = vmatpush.msra.mxu0 %v800
        %899 = vmatpush.msra.mxu0 %v798
        %900 = vmatpush.msra.mxu0 %v796
        %901 = vmatpush.msra.mxu0 %v794
        %902 = vmatpush.msra.mxu0 %v792
        %903 = vmatpush.msra.mxu0 %v790
        %904 = vmatpush.msra.mxu0 %v788
        %905 = vmatpush.msra.mxu0 %v786
        %906 = vmatpush.msra.mxu0 %v784
        %907 = vmatpush.msra.mxu0 %v782
        %908 = vmatpush.msra.mxu0 %v780
        %909 = vmatpush.msra.mxu0 %v778
        %910 = vmatpush.msra.mxu0 %v776
        %911 = vmatpush.msra.mxu0 %v774
        %912 = vmatpush.msra.mxu0 %v772
        %913 = vmatpush.msra.mxu0 %v770
        %914 = vmatmul.f32.gmra.mxu0 %v507
        %v915 = vpop.f32.mrf.mxu0
        %v916 = vadd.f32 0.0, %v915
        %917 = vmatmul.f32.gmra.mxu0 %v511
        %v918 = vpop.f32.mrf.mxu0
        %v919 = vadd.f32 0.0, %v918
        %920 = vmatmul.f32.gmra.mxu0 %v515
        %v921 = vpop.f32.mrf.mxu0
        %v922 = vadd.f32 0.0, %v921
        %923 = vmatmul.f32.gmra.mxu0 %v519
        %v924 = vpop.f32.mrf.mxu0
        %v925 = vadd.f32 0.0, %v924
        %926 = vmatmul.f32.gmra.mxu0 %v523
        %v927 = vpop.f32.mrf.mxu0
        %v928 = vadd.f32 0.0, %v927
        %929 = vmatmul.f32.gmra.mxu0 %v527
        %v930 = vpop.f32.mrf.mxu0
        %v931 = vadd.f32 0.0, %v930
        %932 = vmatmul.f32.gmra.mxu0 %v531
        %v933 = vpop.f32.mrf.mxu0
        %v934 = vadd.f32 0.0, %v933
        %935 = vmatmul.f32.gmra.mxu0 %v535
        %v936 = vpop.f32.mrf.mxu0
        %v937 = vadd.f32 0.0, %v936
        %938 = vmatmul.f32.gmra.mxu0 %v539
        %v939 = vpop.f32.mrf.mxu0
        %v940 = vadd.f32 0.0, %v939
        %941 = vmatmul.f32.gmra.mxu0 %v543
        %v942 = vpop.f32.mrf.mxu0
        %v943 = vadd.f32 0.0, %v942
        %944 = vmatmul.f32.gmra.mxu0 %v547
        %v945 = vpop.f32.mrf.mxu0
        %v946 = vadd.f32 0.0, %v945
        %947 = vmatmul.f32.gmra.mxu0 %v551
        %v948 = vpop.f32.mrf.mxu0
        %v949 = vadd.f32 0.0, %v948
        %950 = vmatmul.f32.gmra.mxu0 %v555
        %v951 = vpop.f32.mrf.mxu0
        %v952 = vadd.f32 0.0, %v951
        %953 = vmatmul.f32.gmra.mxu0 %v559
        %v954 = vpop.f32.mrf.mxu0
        %v955 = vadd.f32 0.0, %v954
        %956 = vmatmul.f32.gmra.mxu0 %v563
        %v957 = vpop.f32.mrf.mxu0
        %v958 = vadd.f32 0.0, %v957
        %959 = vmatmul.f32.gmra.mxu0 %v567
        %v960 = vpop.f32.mrf.mxu0
        %v961 = vadd.f32 0.0, %v960
        %962 = vmatmul.f32.gmra.mxu0 %v571
        %v963 = vpop.f32.mrf.mxu0
        %v964 = vadd.f32 0.0, %v963
        %965 = vmatmul.f32.gmra.mxu0 %v575
        %v966 = vpop.f32.mrf.mxu0
        %v967 = vadd.f32 0.0, %v966
        %968 = vmatmul.f32.gmra.mxu0 %v579
        %v969 = vpop.f32.mrf.mxu0
        %v970 = vadd.f32 0.0, %v969
        %971 = vmatmul.f32.gmra.mxu0 %v583
        %v972 = vpop.f32.mrf.mxu0
        %v973 = vadd.f32 0.0, %v972
        %974 = vmatmul.f32.gmra.mxu0 %v587
        %v975 = vpop.f32.mrf.mxu0
        %v976 = vadd.f32 0.0, %v975
        %977 = vmatmul.f32.gmra.mxu0 %v591
        %v978 = vpop.f32.mrf.mxu0
        %v979 = vadd.f32 0.0, %v978
        %980 = vmatmul.f32.gmra.mxu0 %v595
        %v981 = vpop.f32.mrf.mxu0
        %v982 = vadd.f32 0.0, %v981
        %983 = vmatmul.f32.gmra.mxu0 %v599
        %v984 = vpop.f32.mrf.mxu0
        %v985 = vadd.f32 0.0, %v984
        %986 = vmatmul.f32.gmra.mxu0 %v603
        %v987 = vpop.f32.mrf.mxu0
        %v988 = vadd.f32 0.0, %v987
        %989 = vmatmul.f32.gmra.mxu0 %v607
        %v990 = vpop.f32.mrf.mxu0
        %v991 = vadd.f32 0.0, %v990
        %992 = vmatmul.f32.gmra.mxu0 %v611
        %v993 = vpop.f32.mrf.mxu0
        %v994 = vadd.f32 0.0, %v993
        %995 = vmatmul.f32.gmra.mxu0 %v615
        %v996 = vpop.f32.mrf.mxu0
        %v997 = vadd.f32 0.0, %v996
        %998 = vmatmul.f32.gmra.mxu0 %v619
        %v999 = vpop.f32.mrf.mxu0
        %v1000 = vadd.f32 0.0, %v999
        %1001 = vmatmul.f32.gmra.mxu0 %v623
        %v1002 = vpop.f32.mrf.mxu0
        %v1003 = vadd.f32 0.0, %v1002
        %1004 = vmatmul.f32.gmra.mxu0 %v627
        %v1005 = vpop.f32.mrf.mxu0
        %v1006 = vadd.f32 0.0, %v1005
        %1007 = vmatmul.f32.gmra.mxu0 %v631
        %v1008 = vpop.f32.mrf.mxu0
        %v1009 = vadd.f32 0.0, %v1008
        %1010 = vmatmul.f32.gmra.mxu0 %v635
        %v1011 = vpop.f32.mrf.mxu0
        %v1012 = vadd.f32 0.0, %v1011
        %1013 = vmatmul.f32.gmra.mxu0 %v639
        %v1014 = vpop.f32.mrf.mxu0
        %v1015 = vadd.f32 0.0, %v1014
        %1016 = vmatmul.f32.gmra.mxu0 %v643
        %v1017 = vpop.f32.mrf.mxu0
        %v1018 = vadd.f32 0.0, %v1017
        %1019 = vmatmul.f32.gmra.mxu0 %v647
        %v1020 = vpop.f32.mrf.mxu0
        %v1021 = vadd.f32 0.0, %v1020
        %1022 = vmatmul.f32.gmra.mxu0 %v651
        %v1023 = vpop.f32.mrf.mxu0
        %v1024 = vadd.f32 0.0, %v1023
        %1025 = vmatmul.f32.gmra.mxu0 %v655
        %v1026 = vpop.f32.mrf.mxu0
        %v1027 = vadd.f32 0.0, %v1026
        %1028 = vmatmul.f32.gmra.mxu0 %v659
        %v1029 = vpop.f32.mrf.mxu0
        %v1030 = vadd.f32 0.0, %v1029
        %1031 = vmatmul.f32.gmra.mxu0 %v663
        %v1032 = vpop.f32.mrf.mxu0
        %v1033 = vadd.f32 0.0, %v1032
        %1034 = vmatmul.f32.gmra.mxu0 %v667
        %v1035 = vpop.f32.mrf.mxu0
        %v1036 = vadd.f32 0.0, %v1035
        %1037 = vmatmul.f32.gmra.mxu0 %v671
        %v1038 = vpop.f32.mrf.mxu0
        %v1039 = vadd.f32 0.0, %v1038
        %1040 = vmatmul.f32.gmra.mxu0 %v675
        %v1041 = vpop.f32.mrf.mxu0
        %v1042 = vadd.f32 0.0, %v1041
        %1043 = vmatmul.f32.gmra.mxu0 %v679
        %v1044 = vpop.f32.mrf.mxu0
        %v1045 = vadd.f32 0.0, %v1044
        %1046 = vmatmul.f32.gmra.mxu0 %v683
        %v1047 = vpop.f32.mrf.mxu0
        %v1048 = vadd.f32 0.0, %v1047
        %1049 = vmatmul.f32.gmra.mxu0 %v687
        %v1050 = vpop.f32.mrf.mxu0
        %v1051 = vadd.f32 0.0, %v1050
        %1052 = vmatmul.f32.gmra.mxu0 %v691
        %v1053 = vpop.f32.mrf.mxu0
        %v1054 = vadd.f32 0.0, %v1053
        %1055 = vmatmul.f32.gmra.mxu0 %v695
        %v1056 = vpop.f32.mrf.mxu0
        %v1057 = vadd.f32 0.0, %v1056
        %1058 = vmatmul.f32.gmra.mxu0 %v699
        %v1059 = vpop.f32.mrf.mxu0
        %v1060 = vadd.f32 0.0, %v1059
        %1061 = vmatmul.f32.gmra.mxu0 %v703
        %v1062 = vpop.f32.mrf.mxu0
        %v1063 = vadd.f32 0.0, %v1062
        %1064 = vmatmul.f32.gmra.mxu0 %v707
        %v1065 = vpop.f32.mrf.mxu0
        %v1066 = vadd.f32 0.0, %v1065
        %1067 = vmatmul.f32.gmra.mxu0 %v711
        %v1068 = vpop.f32.mrf.mxu0
        %v1069 = vadd.f32 0.0, %v1068
        %1070 = vmatmul.f32.gmra.mxu0 %v715
        %v1071 = vpop.f32.mrf.mxu0
        %v1072 = vadd.f32 0.0, %v1071
        %1073 = vmatmul.f32.gmra.mxu0 %v719
        %v1074 = vpop.f32.mrf.mxu0
        %v1075 = vadd.f32 0.0, %v1074
        %1076 = vmatmul.f32.gmra.mxu0 %v723
        %v1077 = vpop.f32.mrf.mxu0
        %v1078 = vadd.f32 0.0, %v1077
        %1079 = vmatmul.f32.gmra.mxu0 %v727
        %v1080 = vpop.f32.mrf.mxu0
        %v1081 = vadd.f32 0.0, %v1080
        %1082 = vmatmul.f32.gmra.mxu0 %v731
        %v1083 = vpop.f32.mrf.mxu0
        %v1084 = vadd.f32 0.0, %v1083
        %1085 = vmatmul.f32.gmra.mxu0 %v735
        %v1086 = vpop.f32.mrf.mxu0
        %v1087 = vadd.f32 0.0, %v1086
        %1088 = vmatmul.f32.gmra.mxu0 %v739
        %v1089 = vpop.f32.mrf.mxu0
        %v1090 = vadd.f32 0.0, %v1089
        %1091 = vmatmul.f32.gmra.mxu0 %v743
        %v1092 = vpop.f32.mrf.mxu0
        %v1093 = vadd.f32 0.0, %v1092
        %1094 = vmatmul.f32.gmra.mxu0 %v747
        %v1095 = vpop.f32.mrf.mxu0
        %v1096 = vadd.f32 0.0, %v1095
        %1097 = vmatmul.f32.gmra.mxu0 %v751
        %v1098 = vpop.f32.mrf.mxu0
        %v1099 = vadd.f32 0.0, %v1098
        %1100 = vmatmul.f32.gmra.mxu0 %v755
        %v1101 = vpop.f32.mrf.mxu0
        %v1102 = vadd.f32 0.0, %v1101
        %1103 = vmatmul.f32.gmra.mxu0 %v759
        %v1104 = vpop.f32.mrf.mxu0
        %v1105 = vadd.f32 0.0, %v1104
        %1106 = vdwg.mxu0
        %1107 = vmatpush.msra.mxu0 %v832
        %1108 = vmatpush.msra.mxu0 %v830
        %1109 = vmatpush.msra.mxu0 %v828
        %1110 = vmatpush.msra.mxu0 %v826
        %1111 = vmatpush.msra.mxu0 %v824
        %1112 = vmatpush.msra.mxu0 %v822
        %1113 = vmatpush.msra.mxu0 %v820
        %1114 = vmatpush.msra.mxu0 %v818
        %1115 = vmatpush.msra.mxu0 %v816
        %1116 = vmatpush.msra.mxu0 %v814
        %1117 = vmatpush.msra.mxu0 %v812
        %1118 = vmatpush.msra.mxu0 %v810
        %1119 = vmatpush.msra.mxu0 %v808
        %1120 = vmatpush.msra.mxu0 %v806
        %1121 = vmatpush.msra.mxu0 %v804
        %1122 = vmatpush.msra.mxu0 %v802
        %1123 = vmatmul.f32.gmra.mxu0 %v508
        %v1124 = vpop.f32.mrf.mxu0
        %v1125 = vadd.f32 %v916, %v1124
        %1126 = vmatmul.f32.gmra.mxu0 %v512
        %v1127 = vpop.f32.mrf.mxu0
        %v1128 = vadd.f32 %v919, %v1127
        %1129 = vmatmul.f32.gmra.mxu0 %v516
        %v1130 = vpop.f32.mrf.mxu0
        %v1131 = vadd.f32 %v922, %v1130
        %1132 = vmatmul.f32.gmra.mxu0 %v520
        %v1133 = vpop.f32.mrf.mxu0
        %v1134 = vadd.f32 %v925, %v1133
        %1135 = vmatmul.f32.gmra.mxu0 %v524
        %v1136 = vpop.f32.mrf.mxu0
        %v1137 = vadd.f32 %v928, %v1136
        %1138 = vmatmul.f32.gmra.mxu0 %v528
        %v1139 = vpop.f32.mrf.mxu0
        %v1140 = vadd.f32 %v931, %v1139
        %1141 = vmatmul.f32.gmra.mxu0 %v532
        %v1142 = vpop.f32.mrf.mxu0
        %v1143 = vadd.f32 %v934, %v1142
        %1144 = vmatmul.f32.gmra.mxu0 %v536
        %v1145 = vpop.f32.mrf.mxu0
        %v1146 = vadd.f32 %v937, %v1145
        %1147 = vmatmul.f32.gmra.mxu0 %v540
        %v1148 = vpop.f32.mrf.mxu0
        %v1149 = vadd.f32 %v940, %v1148
        %1150 = vmatmul.f32.gmra.mxu0 %v544
        %v1151 = vpop.f32.mrf.mxu0
        %v1152 = vadd.f32 %v943, %v1151
        %1153 = vmatmul.f32.gmra.mxu0 %v548
        %v1154 = vpop.f32.mrf.mxu0
        %v1155 = vadd.f32 %v946, %v1154
        %1156 = vmatmul.f32.gmra.mxu0 %v552
        %v1157 = vpop.f32.mrf.mxu0
        %v1158 = vadd.f32 %v949, %v1157
        %1159 = vmatmul.f32.gmra.mxu0 %v556
        %v1160 = vpop.f32.mrf.mxu0
        %v1161 = vadd.f32 %v952, %v1160
        %1162 = vmatmul.f32.gmra.mxu0 %v560
        %v1163 = vpop.f32.mrf.mxu0
        %v1164 = vadd.f32 %v955, %v1163
        %1165 = vmatmul.f32.gmra.mxu0 %v564
        %v1166 = vpop.f32.mrf.mxu0
        %v1167 = vadd.f32 %v958, %v1166
        %1168 = vmatmul.f32.gmra.mxu0 %v568
        %v1169 = vpop.f32.mrf.mxu0
        %v1170 = vadd.f32 %v961, %v1169
        %1171 = vmatmul.f32.gmra.mxu0 %v572
        %v1172 = vpop.f32.mrf.mxu0
        %v1173 = vadd.f32 %v964, %v1172
        %1174 = vmatmul.f32.gmra.mxu0 %v576
        %v1175 = vpop.f32.mrf.mxu0
        %v1176 = vadd.f32 %v967, %v1175
        %1177 = vmatmul.f32.gmra.mxu0 %v580
        %v1178 = vpop.f32.mrf.mxu0
        %v1179 = vadd.f32 %v970, %v1178
        %1180 = vmatmul.f32.gmra.mxu0 %v584
        %v1181 = vpop.f32.mrf.mxu0
        %v1182 = vadd.f32 %v973, %v1181
        %1183 = vmatmul.f32.gmra.mxu0 %v588
        %v1184 = vpop.f32.mrf.mxu0
        %v1185 = vadd.f32 %v976, %v1184
        %1186 = vmatmul.f32.gmra.mxu0 %v592
        %v1187 = vpop.f32.mrf.mxu0
        %v1188 = vadd.f32 %v979, %v1187
        %1189 = vmatmul.f32.gmra.mxu0 %v596
        %v1190 = vpop.f32.mrf.mxu0
        %v1191 = vadd.f32 %v982, %v1190
        %1192 = vmatmul.f32.gmra.mxu0 %v600
        %v1193 = vpop.f32.mrf.mxu0
        %v1194 = vadd.f32 %v985, %v1193
        %1195 = vmatmul.f32.gmra.mxu0 %v604
        %v1196 = vpop.f32.mrf.mxu0
        %v1197 = vadd.f32 %v988, %v1196
        %1198 = vmatmul.f32.gmra.mxu0 %v608
        %v1199 = vpop.f32.mrf.mxu0
        %v1200 = vadd.f32 %v991, %v1199
        %1201 = vmatmul.f32.gmra.mxu0 %v612
        %v1202 = vpop.f32.mrf.mxu0
        %v1203 = vadd.f32 %v994, %v1202
        %1204 = vmatmul.f32.gmra.mxu0 %v616
        %v1205 = vpop.f32.mrf.mxu0
        %v1206 = vadd.f32 %v997, %v1205
        %1207 = vmatmul.f32.gmra.mxu0 %v620
        %v1208 = vpop.f32.mrf.mxu0
        %v1209 = vadd.f32 %v1000, %v1208
        %1210 = vmatmul.f32.gmra.mxu0 %v624
        %v1211 = vpop.f32.mrf.mxu0
        %v1212 = vadd.f32 %v1003, %v1211
        %1213 = vmatmul.f32.gmra.mxu0 %v628
        %v1214 = vpop.f32.mrf.mxu0
        %v1215 = vadd.f32 %v1006, %v1214
        %1216 = vmatmul.f32.gmra.mxu0 %v632
        %v1217 = vpop.f32.mrf.mxu0
        %v1218 = vadd.f32 %v1009, %v1217
        %1219 = vmatmul.f32.gmra.mxu0 %v636
        %v1220 = vpop.f32.mrf.mxu0
        %v1221 = vadd.f32 %v1012, %v1220
        %1222 = vmatmul.f32.gmra.mxu0 %v640
        %v1223 = vpop.f32.mrf.mxu0
        %v1224 = vadd.f32 %v1015, %v1223
        %1225 = vmatmul.f32.gmra.mxu0 %v644
        %v1226 = vpop.f32.mrf.mxu0
        %v1227 = vadd.f32 %v1018, %v1226
        %1228 = vmatmul.f32.gmra.mxu0 %v648
        %v1229 = vpop.f32.mrf.mxu0
        %v1230 = vadd.f32 %v1021, %v1229
        %1231 = vmatmul.f32.gmra.mxu0 %v652
        %v1232 = vpop.f32.mrf.mxu0
        %v1233 = vadd.f32 %v1024, %v1232
        %1234 = vmatmul.f32.gmra.mxu0 %v656
        %v1235 = vpop.f32.mrf.mxu0
        %v1236 = vadd.f32 %v1027, %v1235
        %1237 = vmatmul.f32.gmra.mxu0 %v660
        %v1238 = vpop.f32.mrf.mxu0
        %v1239 = vadd.f32 %v1030, %v1238
        %1240 = vmatmul.f32.gmra.mxu0 %v664
        %v1241 = vpop.f32.mrf.mxu0
        %v1242 = vadd.f32 %v1033, %v1241
        %1243 = vmatmul.f32.gmra.mxu0 %v668
        %v1244 = vpop.f32.mrf.mxu0
        %v1245 = vadd.f32 %v1036, %v1244
        %1246 = vmatmul.f32.gmra.mxu0 %v672
        %v1247 = vpop.f32.mrf.mxu0
        %v1248 = vadd.f32 %v1039, %v1247
        %1249 = vmatmul.f32.gmra.mxu0 %v676
        %v1250 = vpop.f32.mrf.mxu0
        %v1251 = vadd.f32 %v1042, %v1250
        %1252 = vmatmul.f32.gmra.mxu0 %v680
        %v1253 = vpop.f32.mrf.mxu0
        %v1254 = vadd.f32 %v1045, %v1253
        %1255 = vmatmul.f32.gmra.mxu0 %v684
        %v1256 = vpop.f32.mrf.mxu0
        %v1257 = vadd.f32 %v1048, %v1256
        %1258 = vmatmul.f32.gmra.mxu0 %v688
        %v1259 = vpop.f32.mrf.mxu0
        %v1260 = vadd.f32 %v1051, %v1259
        %1261 = vmatmul.f32.gmra.mxu0 %v692
        %v1262 = vpop.f32.mrf.mxu0
        %v1263 = vadd.f32 %v1054, %v1262
        %1264 = vmatmul.f32.gmra.mxu0 %v696
        %v1265 = vpop.f32.mrf.mxu0
        %v1266 = vadd.f32 %v1057, %v1265
        %1267 = vmatmul.f32.gmra.mxu0 %v700
        %v1268 = vpop.f32.mrf.mxu0
        %v1269 = vadd.f32 %v1060, %v1268
        %1270 = vmatmul.f32.gmra.mxu0 %v704
        %v1271 = vpop.f32.mrf.mxu0
        %v1272 = vadd.f32 %v1063, %v1271
        %1273 = vmatmul.f32.gmra.mxu0 %v708
        %v1274 = vpop.f32.mrf.mxu0
        %v1275 = vadd.f32 %v1066, %v1274
        %1276 = vmatmul.f32.gmra.mxu0 %v712
        %v1277 = vpop.f32.mrf.mxu0
        %v1278 = vadd.f32 %v1069, %v1277
        %1279 = vmatmul.f32.gmra.mxu0 %v716
        %v1280 = vpop.f32.mrf.mxu0
        %v1281 = vadd.f32 %v1072, %v1280
        %1282 = vmatmul.f32.gmra.mxu0 %v720
        %v1283 = vpop.f32.mrf.mxu0
        %v1284 = vadd.f32 %v1075, %v1283
        %1285 = vmatmul.f32.gmra.mxu0 %v724
        %v1286 = vpop.f32.mrf.mxu0
        %v1287 = vadd.f32 %v1078, %v1286
        %1288 = vmatmul.f32.gmra.mxu0 %v728
        %v1289 = vpop.f32.mrf.mxu0
        %v1290 = vadd.f32 %v1081, %v1289
        %1291 = vmatmul.f32.gmra.mxu0 %v732
        %v1292 = vpop.f32.mrf.mxu0
        %v1293 = vadd.f32 %v1084, %v1292
        %1294 = vmatmul.f32.gmra.mxu0 %v736
        %v1295 = vpop.f32.mrf.mxu0
        %v1296 = vadd.f32 %v1087, %v1295
        %1297 = vmatmul.f32.gmra.mxu0 %v740
        %v1298 = vpop.f32.mrf.mxu0
        %v1299 = vadd.f32 %v1090, %v1298
        %1300 = vmatmul.f32.gmra.mxu0 %v744
        %v1301 = vpop.f32.mrf.mxu0
        %v1302 = vadd.f32 %v1093, %v1301
        %1303 = vmatmul.f32.gmra.mxu0 %v748
        %v1304 = vpop.f32.mrf.mxu0
        %v1305 = vadd.f32 %v1096, %v1304
        %1306 = vmatmul.f32.gmra.mxu0 %v752
        %v1307 = vpop.f32.mrf.mxu0
        %v1308 = vadd.f32 %v1099, %v1307
        %1309 = vmatmul.f32.gmra.mxu0 %v756
        %v1310 = vpop.f32.mrf.mxu0
        %v1311 = vadd.f32 %v1102, %v1310
        %1312 = vmatmul.f32.gmra.mxu0 %v760
        %v1313 = vpop.f32.mrf.mxu0
        %v1314 = vadd.f32 %v1105, %v1313
        %1315 = vdwg.mxu0
        %1316 = vmatpush.msra.mxu0 %v864
        %1317 = vmatpush.msra.mxu0 %v862
        %1318 = vmatpush.msra.mxu0 %v860
        %1319 = vmatpush.msra.mxu0 %v858
        %1320 = vmatpush.msra.mxu0 %v856
        %1321 = vmatpush.msra.mxu0 %v854
        %1322 = vmatpush.msra.mxu0 %v852
        %1323 = vmatpush.msra.mxu0 %v850
        %1324 = vmatpush.msra.mxu0 %v848
        %1325 = vmatpush.msra.mxu0 %v846
        %1326 = vmatpush.msra.mxu0 %v844
        %1327 = vmatpush.msra.mxu0 %v842
        %1328 = vmatpush.msra.mxu0 %v840
        %1329 = vmatpush.msra.mxu0 %v838
        %1330 = vmatpush.msra.mxu0 %v836
        %1331 = vmatpush.msra.mxu0 %v834
        %1332 = vmatmul.f32.gmra.mxu0 %v509
        %v1333 = vpop.f32.mrf.mxu0
        %v1334 = vadd.f32 %v1125, %v1333
        %1335 = vmatmul.f32.gmra.mxu0 %v513
        %v1336 = vpop.f32.mrf.mxu0
        %v1337 = vadd.f32 %v1128, %v1336
        %1338 = vmatmul.f32.gmra.mxu0 %v517
        %v1339 = vpop.f32.mrf.mxu0
        %v1340 = vadd.f32 %v1131, %v1339
        %1341 = vmatmul.f32.gmra.mxu0 %v521
        %v1342 = vpop.f32.mrf.mxu0
        %v1343 = vadd.f32 %v1134, %v1342
        %1344 = vmatmul.f32.gmra.mxu0 %v525
        %v1345 = vpop.f32.mrf.mxu0
        %v1346 = vadd.f32 %v1137, %v1345
        %1347 = vmatmul.f32.gmra.mxu0 %v529
        %v1348 = vpop.f32.mrf.mxu0
        %v1349 = vadd.f32 %v1140, %v1348
        %1350 = vmatmul.f32.gmra.mxu0 %v533
        %v1351 = vpop.f32.mrf.mxu0
        %v1352 = vadd.f32 %v1143, %v1351
        %1353 = vmatmul.f32.gmra.mxu0 %v537
        %v1354 = vpop.f32.mrf.mxu0
        %v1355 = vadd.f32 %v1146, %v1354
        %1356 = vmatmul.f32.gmra.mxu0 %v541
        %v1357 = vpop.f32.mrf.mxu0
        %v1358 = vadd.f32 %v1149, %v1357
        %1359 = vmatmul.f32.gmra.mxu0 %v545
        %v1360 = vpop.f32.mrf.mxu0
        %v1361 = vadd.f32 %v1152, %v1360
        %1362 = vmatmul.f32.gmra.mxu0 %v549
        %v1363 = vpop.f32.mrf.mxu0
        %v1364 = vadd.f32 %v1155, %v1363
        %1365 = vmatmul.f32.gmra.mxu0 %v553
        %v1366 = vpop.f32.mrf.mxu0
        %v1367 = vadd.f32 %v1158, %v1366
        %1368 = vmatmul.f32.gmra.mxu0 %v557
        %v1369 = vpop.f32.mrf.mxu0
        %v1370 = vadd.f32 %v1161, %v1369
        %1371 = vmatmul.f32.gmra.mxu0 %v561
        %v1372 = vpop.f32.mrf.mxu0
        %v1373 = vadd.f32 %v1164, %v1372
        %1374 = vmatmul.f32.gmra.mxu0 %v565
        %v1375 = vpop.f32.mrf.mxu0
        %v1376 = vadd.f32 %v1167, %v1375
        %1377 = vmatmul.f32.gmra.mxu0 %v569
        %v1378 = vpop.f32.mrf.mxu0
        %v1379 = vadd.f32 %v1170, %v1378
        %1380 = vmatmul.f32.gmra.mxu0 %v573
        %v1381 = vpop.f32.mrf.mxu0
        %v1382 = vadd.f32 %v1173, %v1381
        %1383 = vmatmul.f32.gmra.mxu0 %v577
        %v1384 = vpop.f32.mrf.mxu0
        %v1385 = vadd.f32 %v1176, %v1384
        %1386 = vmatmul.f32.gmra.mxu0 %v581
        %v1387 = vpop.f32.mrf.mxu0
        %v1388 = vadd.f32 %v1179, %v1387
        %1389 = vmatmul.f32.gmra.mxu0 %v585
        %v1390 = vpop.f32.mrf.mxu0
        %v1391 = vadd.f32 %v1182, %v1390
        %1392 = vmatmul.f32.gmra.mxu0 %v589
        %v1393 = vpop.f32.mrf.mxu0
        %v1394 = vadd.f32 %v1185, %v1393
        %1395 = vmatmul.f32.gmra.mxu0 %v593
        %v1396 = vpop.f32.mrf.mxu0
        %v1397 = vadd.f32 %v1188, %v1396
        %1398 = vmatmul.f32.gmra.mxu0 %v597
        %v1399 = vpop.f32.mrf.mxu0
        %v1400 = vadd.f32 %v1191, %v1399
        %1401 = vmatmul.f32.gmra.mxu0 %v601
        %v1402 = vpop.f32.mrf.mxu0
        %v1403 = vadd.f32 %v1194, %v1402
        %1404 = vmatmul.f32.gmra.mxu0 %v605
        %v1405 = vpop.f32.mrf.mxu0
        %v1406 = vadd.f32 %v1197, %v1405
        %1407 = vmatmul.f32.gmra.mxu0 %v609
        %v1408 = vpop.f32.mrf.mxu0
        %v1409 = vadd.f32 %v1200, %v1408
        %1410 = vmatmul.f32.gmra.mxu0 %v613
        %v1411 = vpop.f32.mrf.mxu0
        %v1412 = vadd.f32 %v1203, %v1411
        %1413 = vmatmul.f32.gmra.mxu0 %v617
        %v1414 = vpop.f32.mrf.mxu0
        %v1415 = vadd.f32 %v1206, %v1414
        %1416 = vmatmul.f32.gmra.mxu0 %v621
        %v1417 = vpop.f32.mrf.mxu0
        %v1418 = vadd.f32 %v1209, %v1417
        %1419 = vmatmul.f32.gmra.mxu0 %v625
        %v1420 = vpop.f32.mrf.mxu0
        %v1421 = vadd.f32 %v1212, %v1420
        %1422 = vmatmul.f32.gmra.mxu0 %v629
        %v1423 = vpop.f32.mrf.mxu0
        %v1424 = vadd.f32 %v1215, %v1423
        %1425 = vmatmul.f32.gmra.mxu0 %v633
        %v1426 = vpop.f32.mrf.mxu0
        %v1427 = vadd.f32 %v1218, %v1426
        %1428 = vmatmul.f32.gmra.mxu0 %v637
        %v1429 = vpop.f32.mrf.mxu0
        %v1430 = vadd.f32 %v1221, %v1429
        %1431 = vmatmul.f32.gmra.mxu0 %v641
        %v1432 = vpop.f32.mrf.mxu0
        %v1433 = vadd.f32 %v1224, %v1432
        %1434 = vmatmul.f32.gmra.mxu0 %v645
        %v1435 = vpop.f32.mrf.mxu0
        %v1436 = vadd.f32 %v1227, %v1435
        %1437 = vmatmul.f32.gmra.mxu0 %v649
        %v1438 = vpop.f32.mrf.mxu0
        %v1439 = vadd.f32 %v1230, %v1438
        %1440 = vmatmul.f32.gmra.mxu0 %v653
        %v1441 = vpop.f32.mrf.mxu0
        %v1442 = vadd.f32 %v1233, %v1441
        %1443 = vmatmul.f32.gmra.mxu0 %v657
        %v1444 = vpop.f32.mrf.mxu0
        %v1445 = vadd.f32 %v1236, %v1444
        %1446 = vmatmul.f32.gmra.mxu0 %v661
        %v1447 = vpop.f32.mrf.mxu0
        %v1448 = vadd.f32 %v1239, %v1447
        %1449 = vmatmul.f32.gmra.mxu0 %v665
        %v1450 = vpop.f32.mrf.mxu0
        %v1451 = vadd.f32 %v1242, %v1450
        %1452 = vmatmul.f32.gmra.mxu0 %v669
        %v1453 = vpop.f32.mrf.mxu0
        %v1454 = vadd.f32 %v1245, %v1453
        %1455 = vmatmul.f32.gmra.mxu0 %v673
        %v1456 = vpop.f32.mrf.mxu0
        %v1457 = vadd.f32 %v1248, %v1456
        %1458 = vmatmul.f32.gmra.mxu0 %v677
        %v1459 = vpop.f32.mrf.mxu0
        %v1460 = vadd.f32 %v1251, %v1459
        %1461 = vmatmul.f32.gmra.mxu0 %v681
        %v1462 = vpop.f32.mrf.mxu0
        %v1463 = vadd.f32 %v1254, %v1462
        %1464 = vmatmul.f32.gmra.mxu0 %v685
        %v1465 = vpop.f32.mrf.mxu0
        %v1466 = vadd.f32 %v1257, %v1465
        %1467 = vmatmul.f32.gmra.mxu0 %v689
        %v1468 = vpop.f32.mrf.mxu0
        %v1469 = vadd.f32 %v1260, %v1468
        %1470 = vmatmul.f32.gmra.mxu0 %v693
        %v1471 = vpop.f32.mrf.mxu0
        %v1472 = vadd.f32 %v1263, %v1471
        %1473 = vmatmul.f32.gmra.mxu0 %v697
        %v1474 = vpop.f32.mrf.mxu0
        %v1475 = vadd.f32 %v1266, %v1474
        %1476 = vmatmul.f32.gmra.mxu0 %v701
        %v1477 = vpop.f32.mrf.mxu0
        %v1478 = vadd.f32 %v1269, %v1477
        %1479 = vmatmul.f32.gmra.mxu0 %v705
        %v1480 = vpop.f32.mrf.mxu0
        %v1481 = vadd.f32 %v1272, %v1480
        %1482 = vmatmul.f32.gmra.mxu0 %v709
        %v1483 = vpop.f32.mrf.mxu0
        %v1484 = vadd.f32 %v1275, %v1483
        %1485 = vmatmul.f32.gmra.mxu0 %v713
        %v1486 = vpop.f32.mrf.mxu0
        %v1487 = vadd.f32 %v1278, %v1486
        %1488 = vmatmul.f32.gmra.mxu0 %v717
        %v1489 = vpop.f32.mrf.mxu0
        %v1490 = vadd.f32 %v1281, %v1489
        %1491 = vmatmul.f32.gmra.mxu0 %v721
        %v1492 = vpop.f32.mrf.mxu0
        %v1493 = vadd.f32 %v1284, %v1492
        %1494 = vmatmul.f32.gmra.mxu0 %v725
        %v1495 = vpop.f32.mrf.mxu0
        %v1496 = vadd.f32 %v1287, %v1495
        %1497 = vmatmul.f32.gmra.mxu0 %v729
        %v1498 = vpop.f32.mrf.mxu0
        %v1499 = vadd.f32 %v1290, %v1498
        %1500 = vmatmul.f32.gmra.mxu0 %v733
        %v1501 = vpop.f32.mrf.mxu0
        %v1502 = vadd.f32 %v1293, %v1501
        %1503 = vmatmul.f32.gmra.mxu0 %v737
        %v1504 = vpop.f32.mrf.mxu0
        %v1505 = vadd.f32 %v1296, %v1504
        %1506 = vmatmul.f32.gmra.mxu0 %v741
        %v1507 = vpop.f32.mrf.mxu0
        %v1508 = vadd.f32 %v1299, %v1507
        %1509 = vmatmul.f32.gmra.mxu0 %v745
        %v1510 = vpop.f32.mrf.mxu0
        %v1511 = vadd.f32 %v1302, %v1510
        %1512 = vmatmul.f32.gmra.mxu0 %v749
        %v1513 = vpop.f32.mrf.mxu0
        %v1514 = vadd.f32 %v1305, %v1513
        %1515 = vmatmul.f32.gmra.mxu0 %v753
        %v1516 = vpop.f32.mrf.mxu0
        %v1517 = vadd.f32 %v1308, %v1516
        %1518 = vmatmul.f32.gmra.mxu0 %v757
        %v1519 = vpop.f32.mrf.mxu0
        %v1520 = vadd.f32 %v1311, %v1519
        %1521 = vmatmul.f32.gmra.mxu0 %v761
        %v1522 = vpop.f32.mrf.mxu0
        %v1523 = vadd.f32 %v1314, %v1522
        %1524 = vdwg.mxu0
        %1525 = vmatpush.msra.mxu0 %v896
        %1526 = vmatpush.msra.mxu0 %v894
        %1527 = vmatpush.msra.mxu0 %v892
        %1528 = vmatpush.msra.mxu0 %v890
        %1529 = vmatpush.msra.mxu0 %v888
        %1530 = vmatpush.msra.mxu0 %v886
        %1531 = vmatpush.msra.mxu0 %v884
        %1532 = vmatpush.msra.mxu0 %v882
        %1533 = vmatpush.msra.mxu0 %v880
        %1534 = vmatpush.msra.mxu0 %v878
        %1535 = vmatpush.msra.mxu0 %v876
        %1536 = vmatpush.msra.mxu0 %v874
        %1537 = vmatpush.msra.mxu0 %v872
        %1538 = vmatpush.msra.mxu0 %v870
        %1539 = vmatpush.msra.mxu0 %v868
        %1540 = vmatpush.msra.mxu0 %v866
        %1541 = vmatmul.f32.gmra.mxu0 %v510
        %v1542 = vpop.f32.mrf.mxu0
        %v1543 = vadd.f32 %v1334, %v1542
        %1544 = vmatmul.f32.gmra.mxu0 %v514
        %v1545 = vpop.f32.mrf.mxu0
        %v1546 = vadd.f32 %v1337, %v1545
        %1547 = vmatmul.f32.gmra.mxu0 %v518
        %v1548 = vpop.f32.mrf.mxu0
        %v1549 = vadd.f32 %v1340, %v1548
        %1550 = vmatmul.f32.gmra.mxu0 %v522
        %v1551 = vpop.f32.mrf.mxu0
        %v1552 = vadd.f32 %v1343, %v1551
        %1553 = vmatmul.f32.gmra.mxu0 %v526
        %v1554 = vpop.f32.mrf.mxu0
        %v1555 = vadd.f32 %v1346, %v1554
        %1556 = vmatmul.f32.gmra.mxu0 %v530
        %v1557 = vpop.f32.mrf.mxu0
        %v1558 = vadd.f32 %v1349, %v1557
        %1559 = vmatmul.f32.gmra.mxu0 %v534
        %v1560 = vpop.f32.mrf.mxu0
        %v1561 = vadd.f32 %v1352, %v1560
        %1562 = vmatmul.f32.gmra.mxu0 %v538
        %v1563 = vpop.f32.mrf.mxu0
        %v1564 = vadd.f32 %v1355, %v1563
        %1565 = vmatmul.f32.gmra.mxu0 %v542
        %v1566 = vpop.f32.mrf.mxu0
        %v1567 = vadd.f32 %v1358, %v1566
        %1568 = vmatmul.f32.gmra.mxu0 %v546
        %v1569 = vpop.f32.mrf.mxu0
        %v1570 = vadd.f32 %v1361, %v1569
        %1571 = vmatmul.f32.gmra.mxu0 %v550
        %v1572 = vpop.f32.mrf.mxu0
        %v1573 = vadd.f32 %v1364, %v1572
        %1574 = vmatmul.f32.gmra.mxu0 %v554
        %v1575 = vpop.f32.mrf.mxu0
        %v1576 = vadd.f32 %v1367, %v1575
        %1577 = vmatmul.f32.gmra.mxu0 %v558
        %v1578 = vpop.f32.mrf.mxu0
        %v1579 = vadd.f32 %v1370, %v1578
        %1580 = vmatmul.f32.gmra.mxu0 %v562
        %v1581 = vpop.f32.mrf.mxu0
        %v1582 = vadd.f32 %v1373, %v1581
        %1583 = vmatmul.f32.gmra.mxu0 %v566
        %v1584 = vpop.f32.mrf.mxu0
        %v1585 = vadd.f32 %v1376, %v1584
        %1586 = vmatmul.f32.gmra.mxu0 %v570
        %v1587 = vpop.f32.mrf.mxu0
        %v1588 = vadd.f32 %v1379, %v1587
        %1589 = vmatmul.f32.gmra.mxu0 %v574
        %v1590 = vpop.f32.mrf.mxu0
        %v1591 = vadd.f32 %v1382, %v1590
        %1592 = vmatmul.f32.gmra.mxu0 %v578
        %v1593 = vpop.f32.mrf.mxu0
        %v1594 = vadd.f32 %v1385, %v1593
        %1595 = vmatmul.f32.gmra.mxu0 %v582
        %v1596 = vpop.f32.mrf.mxu0
        %v1597 = vadd.f32 %v1388, %v1596
        %1598 = vmatmul.f32.gmra.mxu0 %v586
        %v1599 = vpop.f32.mrf.mxu0
        %v1600 = vadd.f32 %v1391, %v1599
        %1601 = vmatmul.f32.gmra.mxu0 %v590
        %v1602 = vpop.f32.mrf.mxu0
        %v1603 = vadd.f32 %v1394, %v1602
        %1604 = vmatmul.f32.gmra.mxu0 %v594
        %v1605 = vpop.f32.mrf.mxu0
        %v1606 = vadd.f32 %v1397, %v1605
        %1607 = vmatmul.f32.gmra.mxu0 %v598
        %v1608 = vpop.f32.mrf.mxu0
        %v1609 = vadd.f32 %v1400, %v1608
        %1610 = vmatmul.f32.gmra.mxu0 %v602
        %v1611 = vpop.f32.mrf.mxu0
        %v1612 = vadd.f32 %v1403, %v1611
        %1613 = vmatmul.f32.gmra.mxu0 %v606
        %v1614 = vpop.f32.mrf.mxu0
        %v1615 = vadd.f32 %v1406, %v1614
        %1616 = vmatmul.f32.gmra.mxu0 %v610
        %v1617 = vpop.f32.mrf.mxu0
        %v1618 = vadd.f32 %v1409, %v1617
        %1619 = vmatmul.f32.gmra.mxu0 %v614
        %v1620 = vpop.f32.mrf.mxu0
        %v1621 = vadd.f32 %v1412, %v1620
        %1622 = vmatmul.f32.gmra.mxu0 %v618
        %v1623 = vpop.f32.mrf.mxu0
        %v1624 = vadd.f32 %v1415, %v1623
        %1625 = vmatmul.f32.gmra.mxu0 %v622
        %v1626 = vpop.f32.mrf.mxu0
        %v1627 = vadd.f32 %v1418, %v1626
        %1628 = vmatmul.f32.gmra.mxu0 %v626
        %v1629 = vpop.f32.mrf.mxu0
        %v1630 = vadd.f32 %v1421, %v1629
        %1631 = vmatmul.f32.gmra.mxu0 %v630
        %v1632 = vpop.f32.mrf.mxu0
        %v1633 = vadd.f32 %v1424, %v1632
        %1634 = vmatmul.f32.gmra.mxu0 %v634
        %v1635 = vpop.f32.mrf.mxu0
        %v1636 = vadd.f32 %v1427, %v1635
        %1637 = vmatmul.f32.gmra.mxu0 %v638
        %v1638 = vpop.f32.mrf.mxu0
        %v1639 = vadd.f32 %v1430, %v1638
        %1640 = vmatmul.f32.gmra.mxu0 %v642
        %v1641 = vpop.f32.mrf.mxu0
        %v1642 = vadd.f32 %v1433, %v1641
        %1643 = vmatmul.f32.gmra.mxu0 %v646
        %v1644 = vpop.f32.mrf.mxu0
        %v1645 = vadd.f32 %v1436, %v1644
        %1646 = vmatmul.f32.gmra.mxu0 %v650
        %v1647 = vpop.f32.mrf.mxu0
        %v1648 = vadd.f32 %v1439, %v1647
        %1649 = vmatmul.f32.gmra.mxu0 %v654
        %v1650 = vpop.f32.mrf.mxu0
        %v1651 = vadd.f32 %v1442, %v1650
        %1652 = vmatmul.f32.gmra.mxu0 %v658
        %v1653 = vpop.f32.mrf.mxu0
        %v1654 = vadd.f32 %v1445, %v1653
        %1655 = vmatmul.f32.gmra.mxu0 %v662
        %v1656 = vpop.f32.mrf.mxu0
        %v1657 = vadd.f32 %v1448, %v1656
        %1658 = vmatmul.f32.gmra.mxu0 %v666
        %v1659 = vpop.f32.mrf.mxu0
        %v1660 = vadd.f32 %v1451, %v1659
        %1661 = vmatmul.f32.gmra.mxu0 %v670
        %v1662 = vpop.f32.mrf.mxu0
        %v1663 = vadd.f32 %v1454, %v1662
        %1664 = vmatmul.f32.gmra.mxu0 %v674
        %v1665 = vpop.f32.mrf.mxu0
        %v1666 = vadd.f32 %v1457, %v1665
        %1667 = vmatmul.f32.gmra.mxu0 %v678
        %v1668 = vpop.f32.mrf.mxu0
        %v1669 = vadd.f32 %v1460, %v1668
        %1670 = vmatmul.f32.gmra.mxu0 %v682
        %v1671 = vpop.f32.mrf.mxu0
        %v1672 = vadd.f32 %v1463, %v1671
        %1673 = vmatmul.f32.gmra.mxu0 %v686
        %v1674 = vpop.f32.mrf.mxu0
        %v1675 = vadd.f32 %v1466, %v1674
        %1676 = vmatmul.f32.gmra.mxu0 %v690
        %v1677 = vpop.f32.mrf.mxu0
        %v1678 = vadd.f32 %v1469, %v1677
        %1679 = vmatmul.f32.gmra.mxu0 %v694
        %v1680 = vpop.f32.mrf.mxu0
        %v1681 = vadd.f32 %v1472, %v1680
        %1682 = vmatmul.f32.gmra.mxu0 %v698
        %v1683 = vpop.f32.mrf.mxu0
        %v1684 = vadd.f32 %v1475, %v1683
        %1685 = vmatmul.f32.gmra.mxu0 %v702
        %v1686 = vpop.f32.mrf.mxu0
        %v1687 = vadd.f32 %v1478, %v1686
        %1688 = vmatmul.f32.gmra.mxu0 %v706
        %v1689 = vpop.f32.mrf.mxu0
        %v1690 = vadd.f32 %v1481, %v1689
        %1691 = vmatmul.f32.gmra.mxu0 %v710
        %v1692 = vpop.f32.mrf.mxu0
        %v1693 = vadd.f32 %v1484, %v1692
        %1694 = vmatmul.f32.gmra.mxu0 %v714
        %v1695 = vpop.f32.mrf.mxu0
        %v1696 = vadd.f32 %v1487, %v1695
        %1697 = vmatmul.f32.gmra.mxu0 %v718
        %v1698 = vpop.f32.mrf.mxu0
        %v1699 = vadd.f32 %v1490, %v1698
        %1700 = vmatmul.f32.gmra.mxu0 %v722
        %v1701 = vpop.f32.mrf.mxu0
        %v1702 = vadd.f32 %v1493, %v1701
        %1703 = vmatmul.f32.gmra.mxu0 %v726
        %v1704 = vpop.f32.mrf.mxu0
        %v1705 = vadd.f32 %v1496, %v1704
        %1706 = vmatmul.f32.gmra.mxu0 %v730
        %v1707 = vpop.f32.mrf.mxu0
        %v1708 = vadd.f32 %v1499, %v1707
        %1709 = vmatmul.f32.gmra.mxu0 %v734
        %v1710 = vpop.f32.mrf.mxu0
        %v1711 = vadd.f32 %v1502, %v1710
        %1712 = vmatmul.f32.gmra.mxu0 %v738
        %v1713 = vpop.f32.mrf.mxu0
        %v1714 = vadd.f32 %v1505, %v1713
        %1715 = vmatmul.f32.gmra.mxu0 %v742
        %v1716 = vpop.f32.mrf.mxu0
        %v1717 = vadd.f32 %v1508, %v1716
        %1718 = vmatmul.f32.gmra.mxu0 %v746
        %v1719 = vpop.f32.mrf.mxu0
        %v1720 = vadd.f32 %v1511, %v1719
        %1721 = vmatmul.f32.gmra.mxu0 %v750
        %v1722 = vpop.f32.mrf.mxu0
        %v1723 = vadd.f32 %v1514, %v1722
        %1724 = vmatmul.f32.gmra.mxu0 %v754
        %v1725 = vpop.f32.mrf.mxu0
        %v1726 = vadd.f32 %v1517, %v1725
        %1727 = vmatmul.f32.gmra.mxu0 %v758
        %v1728 = vpop.f32.mrf.mxu0
        %v1729 = vadd.f32 %v1520, %v1728
        %1730 = vmatmul.f32.gmra.mxu0 %v762
        %v1731 = vpop.f32.mrf.mxu0
        %v1732 = vadd.f32 %v1523, %v1731
        %1733 = vdwg.mxu0
        %1734 = vmatpush.msra.mxu0 %v801
        %1735 = vmatpush.msra.mxu0 %v799
        %1736 = vmatpush.msra.mxu0 %v797
        %1737 = vmatpush.msra.mxu0 %v795
        %1738 = vmatpush.msra.mxu0 %v793
        %1739 = vmatpush.msra.mxu0 %v791
        %1740 = vmatpush.msra.mxu0 %v789
        %1741 = vmatpush.msra.mxu0 %v787
        %1742 = vmatpush.msra.mxu0 %v785
        %1743 = vmatpush.msra.mxu0 %v783
        %1744 = vmatpush.msra.mxu0 %v781
        %1745 = vmatpush.msra.mxu0 %v779
        %1746 = vmatpush.msra.mxu0 %v777
        %1747 = vmatpush.msra.mxu0 %v775
        %1748 = vmatpush.msra.mxu0 %v773
        %1749 = vmatpush.msra.mxu0 %v771
        %1750 = vmatmul.f32.gmra.mxu0 %v507
        %v1751 = vpop.f32.mrf.mxu0
        %v1752 = vadd.f32 0.0, %v1751
        %1753 = vmatmul.f32.gmra.mxu0 %v511
        %v1754 = vpop.f32.mrf.mxu0
        %v1755 = vadd.f32 0.0, %v1754
        %1756 = vmatmul.f32.gmra.mxu0 %v515
        %v1757 = vpop.f32.mrf.mxu0
        %v1758 = vadd.f32 0.0, %v1757
        %1759 = vmatmul.f32.gmra.mxu0 %v519
        %v1760 = vpop.f32.mrf.mxu0
        %v1761 = vadd.f32 0.0, %v1760
        %1762 = vmatmul.f32.gmra.mxu0 %v523
        %v1763 = vpop.f32.mrf.mxu0
        %v1764 = vadd.f32 0.0, %v1763
        %1765 = vmatmul.f32.gmra.mxu0 %v527
        %v1766 = vpop.f32.mrf.mxu0
        %v1767 = vadd.f32 0.0, %v1766
        %1768 = vmatmul.f32.gmra.mxu0 %v531
        %v1769 = vpop.f32.mrf.mxu0
        %v1770 = vadd.f32 0.0, %v1769
        %1771 = vmatmul.f32.gmra.mxu0 %v535
        %v1772 = vpop.f32.mrf.mxu0
        %v1773 = vadd.f32 0.0, %v1772
        %1774 = vmatmul.f32.gmra.mxu0 %v539
        %v1775 = vpop.f32.mrf.mxu0
        %v1776 = vadd.f32 0.0, %v1775
        %1777 = vmatmul.f32.gmra.mxu0 %v543
        %v1778 = vpop.f32.mrf.mxu0
        %v1779 = vadd.f32 0.0, %v1778
        %1780 = vmatmul.f32.gmra.mxu0 %v547
        %v1781 = vpop.f32.mrf.mxu0
        %v1782 = vadd.f32 0.0, %v1781
        %1783 = vmatmul.f32.gmra.mxu0 %v551
        %v1784 = vpop.f32.mrf.mxu0
        %v1785 = vadd.f32 0.0, %v1784
        %1786 = vmatmul.f32.gmra.mxu0 %v555
        %v1787 = vpop.f32.mrf.mxu0
        %v1788 = vadd.f32 0.0, %v1787
        %1789 = vmatmul.f32.gmra.mxu0 %v559
        %v1790 = vpop.f32.mrf.mxu0
        %v1791 = vadd.f32 0.0, %v1790
        %1792 = vmatmul.f32.gmra.mxu0 %v563
        %v1793 = vpop.f32.mrf.mxu0
        %v1794 = vadd.f32 0.0, %v1793
        %1795 = vmatmul.f32.gmra.mxu0 %v567
        %v1796 = vpop.f32.mrf.mxu0
        %v1797 = vadd.f32 0.0, %v1796
        %1798 = vmatmul.f32.gmra.mxu0 %v571
        %v1799 = vpop.f32.mrf.mxu0
        %v1800 = vadd.f32 0.0, %v1799
        %1801 = vmatmul.f32.gmra.mxu0 %v575
        %v1802 = vpop.f32.mrf.mxu0
        %v1803 = vadd.f32 0.0, %v1802
        %1804 = vmatmul.f32.gmra.mxu0 %v579
        %v1805 = vpop.f32.mrf.mxu0
        %v1806 = vadd.f32 0.0, %v1805
        %1807 = vmatmul.f32.gmra.mxu0 %v583
        %v1808 = vpop.f32.mrf.mxu0
        %v1809 = vadd.f32 0.0, %v1808
        %1810 = vmatmul.f32.gmra.mxu0 %v587
        %v1811 = vpop.f32.mrf.mxu0
        %v1812 = vadd.f32 0.0, %v1811
        %1813 = vmatmul.f32.gmra.mxu0 %v591
        %v1814 = vpop.f32.mrf.mxu0
        %v1815 = vadd.f32 0.0, %v1814
        %1816 = vmatmul.f32.gmra.mxu0 %v595
        %v1817 = vpop.f32.mrf.mxu0
        %v1818 = vadd.f32 0.0, %v1817
        %1819 = vmatmul.f32.gmra.mxu0 %v599
        %v1820 = vpop.f32.mrf.mxu0
        %v1821 = vadd.f32 0.0, %v1820
        %1822 = vmatmul.f32.gmra.mxu0 %v603
        %v1823 = vpop.f32.mrf.mxu0
        %v1824 = vadd.f32 0.0, %v1823
        %1825 = vmatmul.f32.gmra.mxu0 %v607
        %v1826 = vpop.f32.mrf.mxu0
        %v1827 = vadd.f32 0.0, %v1826
        %1828 = vmatmul.f32.gmra.mxu0 %v611
        %v1829 = vpop.f32.mrf.mxu0
        %v1830 = vadd.f32 0.0, %v1829
        %1831 = vmatmul.f32.gmra.mxu0 %v615
        %v1832 = vpop.f32.mrf.mxu0
        %v1833 = vadd.f32 0.0, %v1832
        %1834 = vmatmul.f32.gmra.mxu0 %v619
        %v1835 = vpop.f32.mrf.mxu0
        %v1836 = vadd.f32 0.0, %v1835
        %1837 = vmatmul.f32.gmra.mxu0 %v623
        %v1838 = vpop.f32.mrf.mxu0
        %v1839 = vadd.f32 0.0, %v1838
        %1840 = vmatmul.f32.gmra.mxu0 %v627
        %v1841 = vpop.f32.mrf.mxu0
        %v1842 = vadd.f32 0.0, %v1841
        %1843 = vmatmul.f32.gmra.mxu0 %v631
        %v1844 = vpop.f32.mrf.mxu0
        %v1845 = vadd.f32 0.0, %v1844
        %1846 = vmatmul.f32.gmra.mxu0 %v635
        %v1847 = vpop.f32.mrf.mxu0
        %v1848 = vadd.f32 0.0, %v1847
        %1849 = vmatmul.f32.gmra.mxu0 %v639
        %v1850 = vpop.f32.mrf.mxu0
        %v1851 = vadd.f32 0.0, %v1850
        %1852 = vmatmul.f32.gmra.mxu0 %v643
        %v1853 = vpop.f32.mrf.mxu0
        %v1854 = vadd.f32 0.0, %v1853
        %1855 = vmatmul.f32.gmra.mxu0 %v647
        %v1856 = vpop.f32.mrf.mxu0
        %v1857 = vadd.f32 0.0, %v1856
        %1858 = vmatmul.f32.gmra.mxu0 %v651
        %v1859 = vpop.f32.mrf.mxu0
        %v1860 = vadd.f32 0.0, %v1859
        %1861 = vmatmul.f32.gmra.mxu0 %v655
        %v1862 = vpop.f32.mrf.mxu0
        %v1863 = vadd.f32 0.0, %v1862
        %1864 = vmatmul.f32.gmra.mxu0 %v659
        %v1865 = vpop.f32.mrf.mxu0
        %v1866 = vadd.f32 0.0, %v1865
        %1867 = vmatmul.f32.gmra.mxu0 %v663
        %v1868 = vpop.f32.mrf.mxu0
        %v1869 = vadd.f32 0.0, %v1868
        %1870 = vmatmul.f32.gmra.mxu0 %v667
        %v1871 = vpop.f32.mrf.mxu0
        %v1872 = vadd.f32 0.0, %v1871
        %1873 = vmatmul.f32.gmra.mxu0 %v671
        %v1874 = vpop.f32.mrf.mxu0
        %v1875 = vadd.f32 0.0, %v1874
        %1876 = vmatmul.f32.gmra.mxu0 %v675
        %v1877 = vpop.f32.mrf.mxu0
        %v1878 = vadd.f32 0.0, %v1877
        %1879 = vmatmul.f32.gmra.mxu0 %v679
        %v1880 = vpop.f32.mrf.mxu0
        %v1881 = vadd.f32 0.0, %v1880
        %1882 = vmatmul.f32.gmra.mxu0 %v683
        %v1883 = vpop.f32.mrf.mxu0
        %v1884 = vadd.f32 0.0, %v1883
        %1885 = vmatmul.f32.gmra.mxu0 %v687
        %v1886 = vpop.f32.mrf.mxu0
        %v1887 = vadd.f32 0.0, %v1886
        %1888 = vmatmul.f32.gmra.mxu0 %v691
        %v1889 = vpop.f32.mrf.mxu0
        %v1890 = vadd.f32 0.0, %v1889
        %1891 = vmatmul.f32.gmra.mxu0 %v695
        %v1892 = vpop.f32.mrf.mxu0
        %v1893 = vadd.f32 0.0, %v1892
        %1894 = vmatmul.f32.gmra.mxu0 %v699
        %v1895 = vpop.f32.mrf.mxu0
        %v1896 = vadd.f32 0.0, %v1895
        %1897 = vmatmul.f32.gmra.mxu0 %v703
        %v1898 = vpop.f32.mrf.mxu0
        %v1899 = vadd.f32 0.0, %v1898
        %1900 = vmatmul.f32.gmra.mxu0 %v707
        %v1901 = vpop.f32.mrf.mxu0
        %v1902 = vadd.f32 0.0, %v1901
        %1903 = vmatmul.f32.gmra.mxu0 %v711
        %v1904 = vpop.f32.mrf.mxu0
        %v1905 = vadd.f32 0.0, %v1904
        %1906 = vmatmul.f32.gmra.mxu0 %v715
        %v1907 = vpop.f32.mrf.mxu0
        %v1908 = vadd.f32 0.0, %v1907
        %1909 = vmatmul.f32.gmra.mxu0 %v719
        %v1910 = vpop.f32.mrf.mxu0
        %v1911 = vadd.f32 0.0, %v1910
        %1912 = vmatmul.f32.gmra.mxu0 %v723
        %v1913 = vpop.f32.mrf.mxu0
        %v1914 = vadd.f32 0.0, %v1913
        %1915 = vmatmul.f32.gmra.mxu0 %v727
        %v1916 = vpop.f32.mrf.mxu0
        %v1917 = vadd.f32 0.0, %v1916
        %1918 = vmatmul.f32.gmra.mxu0 %v731
        %v1919 = vpop.f32.mrf.mxu0
        %v1920 = vadd.f32 0.0, %v1919
        %1921 = vmatmul.f32.gmra.mxu0 %v735
        %v1922 = vpop.f32.mrf.mxu0
        %v1923 = vadd.f32 0.0, %v1922
        %1924 = vmatmul.f32.gmra.mxu0 %v739
        %v1925 = vpop.f32.mrf.mxu0
        %v1926 = vadd.f32 0.0, %v1925
        %1927 = vmatmul.f32.gmra.mxu0 %v743
        %v1928 = vpop.f32.mrf.mxu0
        %v1929 = vadd.f32 0.0, %v1928
        %1930 = vmatmul.f32.gmra.mxu0 %v747
        %v1931 = vpop.f32.mrf.mxu0
        %v1932 = vadd.f32 0.0, %v1931
        %1933 = vmatmul.f32.gmra.mxu0 %v751
        %v1934 = vpop.f32.mrf.mxu0
        %v1935 = vadd.f32 0.0, %v1934
        %1936 = vmatmul.f32.gmra.mxu0 %v755
        %v1937 = vpop.f32.mrf.mxu0
        %v1938 = vadd.f32 0.0, %v1937
        %1939 = vmatmul.f32.gmra.mxu0 %v759
        %v1940 = vpop.f32.mrf.mxu0
        %v1941 = vadd.f32 0.0, %v1940
        %1942 = vdwg.mxu0
        %1943 = vmatpush.msra.mxu0 %v833
        %1944 = vmatpush.msra.mxu0 %v831
        %1945 = vmatpush.msra.mxu0 %v829
        %1946 = vmatpush.msra.mxu0 %v827
        %1947 = vmatpush.msra.mxu0 %v825
        %1948 = vmatpush.msra.mxu0 %v823
        %1949 = vmatpush.msra.mxu0 %v821
        %1950 = vmatpush.msra.mxu0 %v819
        %1951 = vmatpush.msra.mxu0 %v817
        %1952 = vmatpush.msra.mxu0 %v815
        %1953 = vmatpush.msra.mxu0 %v813
        %1954 = vmatpush.msra.mxu0 %v811
        %1955 = vmatpush.msra.mxu0 %v809
        %1956 = vmatpush.msra.mxu0 %v807
        %1957 = vmatpush.msra.mxu0 %v805
        %1958 = vmatpush.msra.mxu0 %v803
        %1959 = vmatmul.f32.gmra.mxu0 %v508
        %v1960 = vpop.f32.mrf.mxu0
        %v1961 = vadd.f32 %v1752, %v1960
        %1962 = vmatmul.f32.gmra.mxu0 %v512
        %v1963 = vpop.f32.mrf.mxu0
        %v1964 = vadd.f32 %v1755, %v1963
        %1965 = vmatmul.f32.gmra.mxu0 %v516
        %v1966 = vpop.f32.mrf.mxu0
        %v1967 = vadd.f32 %v1758, %v1966
        %1968 = vmatmul.f32.gmra.mxu0 %v520
        %v1969 = vpop.f32.mrf.mxu0
        %v1970 = vadd.f32 %v1761, %v1969
        %1971 = vmatmul.f32.gmra.mxu0 %v524
        %v1972 = vpop.f32.mrf.mxu0
        %v1973 = vadd.f32 %v1764, %v1972
        %1974 = vmatmul.f32.gmra.mxu0 %v528
        %v1975 = vpop.f32.mrf.mxu0
        %v1976 = vadd.f32 %v1767, %v1975
        %1977 = vmatmul.f32.gmra.mxu0 %v532
        %v1978 = vpop.f32.mrf.mxu0
        %v1979 = vadd.f32 %v1770, %v1978
        %1980 = vmatmul.f32.gmra.mxu0 %v536
        %v1981 = vpop.f32.mrf.mxu0
        %v1982 = vadd.f32 %v1773, %v1981
        %1983 = vmatmul.f32.gmra.mxu0 %v540
        %v1984 = vpop.f32.mrf.mxu0
        %v1985 = vadd.f32 %v1776, %v1984
        %1986 = vmatmul.f32.gmra.mxu0 %v544
        %v1987 = vpop.f32.mrf.mxu0
        %v1988 = vadd.f32 %v1779, %v1987
        %1989 = vmatmul.f32.gmra.mxu0 %v548
        %v1990 = vpop.f32.mrf.mxu0
        %v1991 = vadd.f32 %v1782, %v1990
        %1992 = vmatmul.f32.gmra.mxu0 %v552
        %v1993 = vpop.f32.mrf.mxu0
        %v1994 = vadd.f32 %v1785, %v1993
        %1995 = vmatmul.f32.gmra.mxu0 %v556
        %v1996 = vpop.f32.mrf.mxu0
        %v1997 = vadd.f32 %v1788, %v1996
        %1998 = vmatmul.f32.gmra.mxu0 %v560
        %v1999 = vpop.f32.mrf.mxu0
        %v2000 = vadd.f32 %v1791, %v1999
        %2001 = vmatmul.f32.gmra.mxu0 %v564
        %v2002 = vpop.f32.mrf.mxu0
        %v2003 = vadd.f32 %v1794, %v2002
        %2004 = vmatmul.f32.gmra.mxu0 %v568
        %v2005 = vpop.f32.mrf.mxu0
        %v2006 = vadd.f32 %v1797, %v2005
        %2007 = vmatmul.f32.gmra.mxu0 %v572
        %v2008 = vpop.f32.mrf.mxu0
        %v2009 = vadd.f32 %v1800, %v2008
        %2010 = vmatmul.f32.gmra.mxu0 %v576
        %v2011 = vpop.f32.mrf.mxu0
        %v2012 = vadd.f32 %v1803, %v2011
        %2013 = vmatmul.f32.gmra.mxu0 %v580
        %v2014 = vpop.f32.mrf.mxu0
        %v2015 = vadd.f32 %v1806, %v2014
        %2016 = vmatmul.f32.gmra.mxu0 %v584
        %v2017 = vpop.f32.mrf.mxu0
        %v2018 = vadd.f32 %v1809, %v2017
        %2019 = vmatmul.f32.gmra.mxu0 %v588
        %v2020 = vpop.f32.mrf.mxu0
        %v2021 = vadd.f32 %v1812, %v2020
        %2022 = vmatmul.f32.gmra.mxu0 %v592
        %v2023 = vpop.f32.mrf.mxu0
        %v2024 = vadd.f32 %v1815, %v2023
        %2025 = vmatmul.f32.gmra.mxu0 %v596
        %v2026 = vpop.f32.mrf.mxu0
        %v2027 = vadd.f32 %v1818, %v2026
        %2028 = vmatmul.f32.gmra.mxu0 %v600
        %v2029 = vpop.f32.mrf.mxu0
        %v2030 = vadd.f32 %v1821, %v2029
        %2031 = vmatmul.f32.gmra.mxu0 %v604
        %v2032 = vpop.f32.mrf.mxu0
        %v2033 = vadd.f32 %v1824, %v2032
        %2034 = vmatmul.f32.gmra.mxu0 %v608
        %v2035 = vpop.f32.mrf.mxu0
        %v2036 = vadd.f32 %v1827, %v2035
        %2037 = vmatmul.f32.gmra.mxu0 %v612
        %v2038 = vpop.f32.mrf.mxu0
        %v2039 = vadd.f32 %v1830, %v2038
        %2040 = vmatmul.f32.gmra.mxu0 %v616
        %v2041 = vpop.f32.mrf.mxu0
        %v2042 = vadd.f32 %v1833, %v2041
        %2043 = vmatmul.f32.gmra.mxu0 %v620
        %v2044 = vpop.f32.mrf.mxu0
        %v2045 = vadd.f32 %v1836, %v2044
        %2046 = vmatmul.f32.gmra.mxu0 %v624
        %v2047 = vpop.f32.mrf.mxu0
        %v2048 = vadd.f32 %v1839, %v2047
        %2049 = vmatmul.f32.gmra.mxu0 %v628
        %v2050 = vpop.f32.mrf.mxu0
        %v2051 = vadd.f32 %v1842, %v2050
        %2052 = vmatmul.f32.gmra.mxu0 %v632
        %v2053 = vpop.f32.mrf.mxu0
        %v2054 = vadd.f32 %v1845, %v2053
        %2055 = vmatmul.f32.gmra.mxu0 %v636
        %v2056 = vpop.f32.mrf.mxu0
        %v2057 = vadd.f32 %v1848, %v2056
        %2058 = vmatmul.f32.gmra.mxu0 %v640
        %v2059 = vpop.f32.mrf.mxu0
        %v2060 = vadd.f32 %v1851, %v2059
        %2061 = vmatmul.f32.gmra.mxu0 %v644
        %v2062 = vpop.f32.mrf.mxu0
        %v2063 = vadd.f32 %v1854, %v2062
        %2064 = vmatmul.f32.gmra.mxu0 %v648
        %v2065 = vpop.f32.mrf.mxu0
        %v2066 = vadd.f32 %v1857, %v2065
        %2067 = vmatmul.f32.gmra.mxu0 %v652
        %v2068 = vpop.f32.mrf.mxu0
        %v2069 = vadd.f32 %v1860, %v2068
        %2070 = vmatmul.f32.gmra.mxu0 %v656
        %v2071 = vpop.f32.mrf.mxu0
        %v2072 = vadd.f32 %v1863, %v2071
        %2073 = vmatmul.f32.gmra.mxu0 %v660
        %v2074 = vpop.f32.mrf.mxu0
        %v2075 = vadd.f32 %v1866, %v2074
        %2076 = vmatmul.f32.gmra.mxu0 %v664
        %v2077 = vpop.f32.mrf.mxu0
        %v2078 = vadd.f32 %v1869, %v2077
        %2079 = vmatmul.f32.gmra.mxu0 %v668
        %v2080 = vpop.f32.mrf.mxu0
        %v2081 = vadd.f32 %v1872, %v2080
        %2082 = vmatmul.f32.gmra.mxu0 %v672
        %v2083 = vpop.f32.mrf.mxu0
        %v2084 = vadd.f32 %v1875, %v2083
        %2085 = vmatmul.f32.gmra.mxu0 %v676
        %v2086 = vpop.f32.mrf.mxu0
        %v2087 = vadd.f32 %v1878, %v2086
        %2088 = vmatmul.f32.gmra.mxu0 %v680
        %v2089 = vpop.f32.mrf.mxu0
        %v2090 = vadd.f32 %v1881, %v2089
        %2091 = vmatmul.f32.gmra.mxu0 %v684
        %v2092 = vpop.f32.mrf.mxu0
        %v2093 = vadd.f32 %v1884, %v2092
        %2094 = vmatmul.f32.gmra.mxu0 %v688
        %v2095 = vpop.f32.mrf.mxu0
        %v2096 = vadd.f32 %v1887, %v2095
        %2097 = vmatmul.f32.gmra.mxu0 %v692
        %v2098 = vpop.f32.mrf.mxu0
        %v2099 = vadd.f32 %v1890, %v2098
        %2100 = vmatmul.f32.gmra.mxu0 %v696
        %v2101 = vpop.f32.mrf.mxu0
        %v2102 = vadd.f32 %v1893, %v2101
        %2103 = vmatmul.f32.gmra.mxu0 %v700
        %v2104 = vpop.f32.mrf.mxu0
        %v2105 = vadd.f32 %v1896, %v2104
        %2106 = vmatmul.f32.gmra.mxu0 %v704
        %v2107 = vpop.f32.mrf.mxu0
        %v2108 = vadd.f32 %v1899, %v2107
        %2109 = vmatmul.f32.gmra.mxu0 %v708
        %v2110 = vpop.f32.mrf.mxu0
        %v2111 = vadd.f32 %v1902, %v2110
        %2112 = vmatmul.f32.gmra.mxu0 %v712
        %v2113 = vpop.f32.mrf.mxu0
        %v2114 = vadd.f32 %v1905, %v2113
        %2115 = vmatmul.f32.gmra.mxu0 %v716
        %v2116 = vpop.f32.mrf.mxu0
        %v2117 = vadd.f32 %v1908, %v2116
        %2118 = vmatmul.f32.gmra.mxu0 %v720
        %v2119 = vpop.f32.mrf.mxu0
        %v2120 = vadd.f32 %v1911, %v2119
        %2121 = vmatmul.f32.gmra.mxu0 %v724
        %v2122 = vpop.f32.mrf.mxu0
        %v2123 = vadd.f32 %v1914, %v2122
        %2124 = vmatmul.f32.gmra.mxu0 %v728
        %v2125 = vpop.f32.mrf.mxu0
        %v2126 = vadd.f32 %v1917, %v2125
        %2127 = vmatmul.f32.gmra.mxu0 %v732
        %v2128 = vpop.f32.mrf.mxu0
        %v2129 = vadd.f32 %v1920, %v2128
        %2130 = vmatmul.f32.gmra.mxu0 %v736
        %v2131 = vpop.f32.mrf.mxu0
        %v2132 = vadd.f32 %v1923, %v2131
        %2133 = vmatmul.f32.gmra.mxu0 %v740
        %v2134 = vpop.f32.mrf.mxu0
        %v2135 = vadd.f32 %v1926, %v2134
        %2136 = vmatmul.f32.gmra.mxu0 %v744
        %v2137 = vpop.f32.mrf.mxu0
        %v2138 = vadd.f32 %v1929, %v2137
        %2139 = vmatmul.f32.gmra.mxu0 %v748
        %v2140 = vpop.f32.mrf.mxu0
        %v2141 = vadd.f32 %v1932, %v2140
        %2142 = vmatmul.f32.gmra.mxu0 %v752
        %v2143 = vpop.f32.mrf.mxu0
        %v2144 = vadd.f32 %v1935, %v2143
        %2145 = vmatmul.f32.gmra.mxu0 %v756
        %v2146 = vpop.f32.mrf.mxu0
        %v2147 = vadd.f32 %v1938, %v2146
        %2148 = vmatmul.f32.gmra.mxu0 %v760
        %v2149 = vpop.f32.mrf.mxu0
        %v2150 = vadd.f32 %v1941, %v2149
        %2151 = vdwg.mxu0
        %2152 = vmatpush.msra.mxu0 %v865
        %2153 = vmatpush.msra.mxu0 %v863
        %2154 = vmatpush.msra.mxu0 %v861
        %2155 = vmatpush.msra.mxu0 %v859
        %2156 = vmatpush.msra.mxu0 %v857
        %2157 = vmatpush.msra.mxu0 %v855
        %2158 = vmatpush.msra.mxu0 %v853
        %2159 = vmatpush.msra.mxu0 %v851
        %2160 = vmatpush.msra.mxu0 %v849
        %2161 = vmatpush.msra.mxu0 %v847
        %2162 = vmatpush.msra.mxu0 %v845
        %2163 = vmatpush.msra.mxu0 %v843
        %2164 = vmatpush.msra.mxu0 %v841
        %2165 = vmatpush.msra.mxu0 %v839
        %2166 = vmatpush.msra.mxu0 %v837
        %2167 = vmatpush.msra.mxu0 %v835
        %2168 = vmatmul.f32.gmra.mxu0 %v509
        %v2169 = vpop.f32.mrf.mxu0
        %v2170 = vadd.f32 %v1961, %v2169
        %2171 = vmatmul.f32.gmra.mxu0 %v513
        %v2172 = vpop.f32.mrf.mxu0
        %v2173 = vadd.f32 %v1964, %v2172
        %2174 = vmatmul.f32.gmra.mxu0 %v517
        %v2175 = vpop.f32.mrf.mxu0
        %v2176 = vadd.f32 %v1967, %v2175
        %2177 = vmatmul.f32.gmra.mxu0 %v521
        %v2178 = vpop.f32.mrf.mxu0
        %v2179 = vadd.f32 %v1970, %v2178
        %2180 = vmatmul.f32.gmra.mxu0 %v525
        %v2181 = vpop.f32.mrf.mxu0
        %v2182 = vadd.f32 %v1973, %v2181
        %2183 = vmatmul.f32.gmra.mxu0 %v529
        %v2184 = vpop.f32.mrf.mxu0
        %v2185 = vadd.f32 %v1976, %v2184
        %2186 = vmatmul.f32.gmra.mxu0 %v533
        %v2187 = vpop.f32.mrf.mxu0
        %v2188 = vadd.f32 %v1979, %v2187
        %2189 = vmatmul.f32.gmra.mxu0 %v537
        %v2190 = vpop.f32.mrf.mxu0
        %v2191 = vadd.f32 %v1982, %v2190
        %2192 = vmatmul.f32.gmra.mxu0 %v541
        %v2193 = vpop.f32.mrf.mxu0
        %v2194 = vadd.f32 %v1985, %v2193
        %2195 = vmatmul.f32.gmra.mxu0 %v545
        %v2196 = vpop.f32.mrf.mxu0
        %v2197 = vadd.f32 %v1988, %v2196
        %2198 = vmatmul.f32.gmra.mxu0 %v549
        %v2199 = vpop.f32.mrf.mxu0
        %v2200 = vadd.f32 %v1991, %v2199
        %2201 = vmatmul.f32.gmra.mxu0 %v553
        %v2202 = vpop.f32.mrf.mxu0
        %v2203 = vadd.f32 %v1994, %v2202
        %2204 = vmatmul.f32.gmra.mxu0 %v557
        %v2205 = vpop.f32.mrf.mxu0
        %v2206 = vadd.f32 %v1997, %v2205
        %2207 = vmatmul.f32.gmra.mxu0 %v561
        %v2208 = vpop.f32.mrf.mxu0
        %v2209 = vadd.f32 %v2000, %v2208
        %2210 = vmatmul.f32.gmra.mxu0 %v565
        %v2211 = vpop.f32.mrf.mxu0
        %v2212 = vadd.f32 %v2003, %v2211
        %2213 = vmatmul.f32.gmra.mxu0 %v569
        %v2214 = vpop.f32.mrf.mxu0
        %v2215 = vadd.f32 %v2006, %v2214
        %2216 = vmatmul.f32.gmra.mxu0 %v573
        %v2217 = vpop.f32.mrf.mxu0
        %v2218 = vadd.f32 %v2009, %v2217
        %2219 = vmatmul.f32.gmra.mxu0 %v577
        %v2220 = vpop.f32.mrf.mxu0
        %v2221 = vadd.f32 %v2012, %v2220
        %2222 = vmatmul.f32.gmra.mxu0 %v581
        %v2223 = vpop.f32.mrf.mxu0
        %v2224 = vadd.f32 %v2015, %v2223
        %2225 = vmatmul.f32.gmra.mxu0 %v585
        %v2226 = vpop.f32.mrf.mxu0
        %v2227 = vadd.f32 %v2018, %v2226
        %2228 = vmatmul.f32.gmra.mxu0 %v589
        %v2229 = vpop.f32.mrf.mxu0
        %v2230 = vadd.f32 %v2021, %v2229
        %2231 = vmatmul.f32.gmra.mxu0 %v593
        %v2232 = vpop.f32.mrf.mxu0
        %v2233 = vadd.f32 %v2024, %v2232
        %2234 = vmatmul.f32.gmra.mxu0 %v597
        %v2235 = vpop.f32.mrf.mxu0
        %v2236 = vadd.f32 %v2027, %v2235
        %2237 = vmatmul.f32.gmra.mxu0 %v601
        %v2238 = vpop.f32.mrf.mxu0
        %v2239 = vadd.f32 %v2030, %v2238
        %2240 = vmatmul.f32.gmra.mxu0 %v605
        %v2241 = vpop.f32.mrf.mxu0
        %v2242 = vadd.f32 %v2033, %v2241
        %2243 = vmatmul.f32.gmra.mxu0 %v609
        %v2244 = vpop.f32.mrf.mxu0
        %v2245 = vadd.f32 %v2036, %v2244
        %2246 = vmatmul.f32.gmra.mxu0 %v613
        %v2247 = vpop.f32.mrf.mxu0
        %v2248 = vadd.f32 %v2039, %v2247
        %2249 = vmatmul.f32.gmra.mxu0 %v617
        %v2250 = vpop.f32.mrf.mxu0
        %v2251 = vadd.f32 %v2042, %v2250
        %2252 = vmatmul.f32.gmra.mxu0 %v621
        %v2253 = vpop.f32.mrf.mxu0
        %v2254 = vadd.f32 %v2045, %v2253
        %2255 = vmatmul.f32.gmra.mxu0 %v625
        %v2256 = vpop.f32.mrf.mxu0
        %v2257 = vadd.f32 %v2048, %v2256
        %2258 = vmatmul.f32.gmra.mxu0 %v629
        %v2259 = vpop.f32.mrf.mxu0
        %v2260 = vadd.f32 %v2051, %v2259
        %2261 = vmatmul.f32.gmra.mxu0 %v633
        %v2262 = vpop.f32.mrf.mxu0
        %v2263 = vadd.f32 %v2054, %v2262
        %2264 = vmatmul.f32.gmra.mxu0 %v637
        %v2265 = vpop.f32.mrf.mxu0
        %v2266 = vadd.f32 %v2057, %v2265
        %2267 = vmatmul.f32.gmra.mxu0 %v641
        %v2268 = vpop.f32.mrf.mxu0
        %v2269 = vadd.f32 %v2060, %v2268
        %2270 = vmatmul.f32.gmra.mxu0 %v645
        %v2271 = vpop.f32.mrf.mxu0
        %v2272 = vadd.f32 %v2063, %v2271
        %2273 = vmatmul.f32.gmra.mxu0 %v649
        %v2274 = vpop.f32.mrf.mxu0
        %v2275 = vadd.f32 %v2066, %v2274
        %2276 = vmatmul.f32.gmra.mxu0 %v653
        %v2277 = vpop.f32.mrf.mxu0
        %v2278 = vadd.f32 %v2069, %v2277
        %2279 = vmatmul.f32.gmra.mxu0 %v657
        %v2280 = vpop.f32.mrf.mxu0
        %v2281 = vadd.f32 %v2072, %v2280
        %2282 = vmatmul.f32.gmra.mxu0 %v661
        %v2283 = vpop.f32.mrf.mxu0
        %v2284 = vadd.f32 %v2075, %v2283
        %2285 = vmatmul.f32.gmra.mxu0 %v665
        %v2286 = vpop.f32.mrf.mxu0
        %v2287 = vadd.f32 %v2078, %v2286
        %2288 = vmatmul.f32.gmra.mxu0 %v669
        %v2289 = vpop.f32.mrf.mxu0
        %v2290 = vadd.f32 %v2081, %v2289
        %2291 = vmatmul.f32.gmra.mxu0 %v673
        %v2292 = vpop.f32.mrf.mxu0
        %v2293 = vadd.f32 %v2084, %v2292
        %2294 = vmatmul.f32.gmra.mxu0 %v677
        %v2295 = vpop.f32.mrf.mxu0
        %v2296 = vadd.f32 %v2087, %v2295
        %2297 = vmatmul.f32.gmra.mxu0 %v681
        %v2298 = vpop.f32.mrf.mxu0
        %v2299 = vadd.f32 %v2090, %v2298
        %2300 = vmatmul.f32.gmra.mxu0 %v685
        %v2301 = vpop.f32.mrf.mxu0
        %v2302 = vadd.f32 %v2093, %v2301
        %2303 = vmatmul.f32.gmra.mxu0 %v689
        %v2304 = vpop.f32.mrf.mxu0
        %v2305 = vadd.f32 %v2096, %v2304
        %2306 = vmatmul.f32.gmra.mxu0 %v693
        %v2307 = vpop.f32.mrf.mxu0
        %v2308 = vadd.f32 %v2099, %v2307
        %2309 = vmatmul.f32.gmra.mxu0 %v697
        %v2310 = vpop.f32.mrf.mxu0
        %v2311 = vadd.f32 %v2102, %v2310
        %2312 = vmatmul.f32.gmra.mxu0 %v701
        %v2313 = vpop.f32.mrf.mxu0
        %v2314 = vadd.f32 %v2105, %v2313
        %2315 = vmatmul.f32.gmra.mxu0 %v705
        %v2316 = vpop.f32.mrf.mxu0
        %v2317 = vadd.f32 %v2108, %v2316
        %2318 = vmatmul.f32.gmra.mxu0 %v709
        %v2319 = vpop.f32.mrf.mxu0
        %v2320 = vadd.f32 %v2111, %v2319
        %2321 = vmatmul.f32.gmra.mxu0 %v713
        %v2322 = vpop.f32.mrf.mxu0
        %v2323 = vadd.f32 %v2114, %v2322
        %2324 = vmatmul.f32.gmra.mxu0 %v717
        %v2325 = vpop.f32.mrf.mxu0
        %v2326 = vadd.f32 %v2117, %v2325
        %2327 = vmatmul.f32.gmra.mxu0 %v721
        %v2328 = vpop.f32.mrf.mxu0
        %v2329 = vadd.f32 %v2120, %v2328
        %2330 = vmatmul.f32.gmra.mxu0 %v725
        %v2331 = vpop.f32.mrf.mxu0
        %v2332 = vadd.f32 %v2123, %v2331
        %2333 = vmatmul.f32.gmra.mxu0 %v729
        %v2334 = vpop.f32.mrf.mxu0
        %v2335 = vadd.f32 %v2126, %v2334
        %2336 = vmatmul.f32.gmra.mxu0 %v733
        %v2337 = vpop.f32.mrf.mxu0
        %v2338 = vadd.f32 %v2129, %v2337
        %2339 = vmatmul.f32.gmra.mxu0 %v737
        %v2340 = vpop.f32.mrf.mxu0
        %v2341 = vadd.f32 %v2132, %v2340
        %2342 = vmatmul.f32.gmra.mxu0 %v741
        %v2343 = vpop.f32.mrf.mxu0
        %v2344 = vadd.f32 %v2135, %v2343
        %2345 = vmatmul.f32.gmra.mxu0 %v745
        %v2346 = vpop.f32.mrf.mxu0
        %v2347 = vadd.f32 %v2138, %v2346
        %2348 = vmatmul.f32.gmra.mxu0 %v749
        %v2349 = vpop.f32.mrf.mxu0
        %v2350 = vadd.f32 %v2141, %v2349
        %2351 = vmatmul.f32.gmra.mxu0 %v753
        %v2352 = vpop.f32.mrf.mxu0
        %v2353 = vadd.f32 %v2144, %v2352
        %2354 = vmatmul.f32.gmra.mxu0 %v757
        %v2355 = vpop.f32.mrf.mxu0
        %v2356 = vadd.f32 %v2147, %v2355
        %2357 = vmatmul.f32.gmra.mxu0 %v761
        %v2358 = vpop.f32.mrf.mxu0
        %v2359 = vadd.f32 %v2150, %v2358
        %2360 = vdwg.mxu0
        %2361 = vmatpush.msra.mxu0 %v897
        %2362 = vmatpush.msra.mxu0 %v895
        %2363 = vmatpush.msra.mxu0 %v893
        %2364 = vmatpush.msra.mxu0 %v891
        %2365 = vmatpush.msra.mxu0 %v889
        %2366 = vmatpush.msra.mxu0 %v887
        %2367 = vmatpush.msra.mxu0 %v885
        %2368 = vmatpush.msra.mxu0 %v883
        %2369 = vmatpush.msra.mxu0 %v881
        %2370 = vmatpush.msra.mxu0 %v879
        %2371 = vmatpush.msra.mxu0 %v877
        %2372 = vmatpush.msra.mxu0 %v875
        %2373 = vmatpush.msra.mxu0 %v873
        %2374 = vmatpush.msra.mxu0 %v871
        %2375 = vmatpush.msra.mxu0 %v869
        %2376 = vmatpush.msra.mxu0 %v867
        %2377 = vmatmul.f32.gmra.mxu0 %v510
        %v2378 = vpop.f32.mrf.mxu0
        %v2379 = vadd.f32 %v2170, %v2378
        %2380 = vmatmul.f32.gmra.mxu0 %v514
        %v2381 = vpop.f32.mrf.mxu0
        %v2382 = vadd.f32 %v2173, %v2381
        %2383 = vmatmul.f32.gmra.mxu0 %v518
        %v2384 = vpop.f32.mrf.mxu0
        %v2385 = vadd.f32 %v2176, %v2384
        %2386 = vmatmul.f32.gmra.mxu0 %v522
        %v2387 = vpop.f32.mrf.mxu0
        %v2388 = vadd.f32 %v2179, %v2387
        %2389 = vmatmul.f32.gmra.mxu0 %v526
        %v2390 = vpop.f32.mrf.mxu0
        %v2391 = vadd.f32 %v2182, %v2390
        %2392 = vmatmul.f32.gmra.mxu0 %v530
        %v2393 = vpop.f32.mrf.mxu0
        %v2394 = vadd.f32 %v2185, %v2393
        %2395 = vmatmul.f32.gmra.mxu0 %v534
        %v2396 = vpop.f32.mrf.mxu0
        %v2397 = vadd.f32 %v2188, %v2396
        %2398 = vmatmul.f32.gmra.mxu0 %v538
        %v2399 = vpop.f32.mrf.mxu0
        %v2400 = vadd.f32 %v2191, %v2399
        %2401 = vmatmul.f32.gmra.mxu0 %v542
        %v2402 = vpop.f32.mrf.mxu0
        %v2403 = vadd.f32 %v2194, %v2402
        %2404 = vmatmul.f32.gmra.mxu0 %v546
        %v2405 = vpop.f32.mrf.mxu0
        %v2406 = vadd.f32 %v2197, %v2405
        %2407 = vmatmul.f32.gmra.mxu0 %v550
        %v2408 = vpop.f32.mrf.mxu0
        %v2409 = vadd.f32 %v2200, %v2408
        %2410 = vmatmul.f32.gmra.mxu0 %v554
        %v2411 = vpop.f32.mrf.mxu0
        %v2412 = vadd.f32 %v2203, %v2411
        %2413 = vmatmul.f32.gmra.mxu0 %v558
        %v2414 = vpop.f32.mrf.mxu0
        %v2415 = vadd.f32 %v2206, %v2414
        %2416 = vmatmul.f32.gmra.mxu0 %v562
        %v2417 = vpop.f32.mrf.mxu0
        %v2418 = vadd.f32 %v2209, %v2417
        %2419 = vmatmul.f32.gmra.mxu0 %v566
        %v2420 = vpop.f32.mrf.mxu0
        %v2421 = vadd.f32 %v2212, %v2420
        %2422 = vmatmul.f32.gmra.mxu0 %v570
        %v2423 = vpop.f32.mrf.mxu0
        %v2424 = vadd.f32 %v2215, %v2423
        %2425 = vmatmul.f32.gmra.mxu0 %v574
        %v2426 = vpop.f32.mrf.mxu0
        %v2427 = vadd.f32 %v2218, %v2426
        %2428 = vmatmul.f32.gmra.mxu0 %v578
        %v2429 = vpop.f32.mrf.mxu0
        %v2430 = vadd.f32 %v2221, %v2429
        %2431 = vmatmul.f32.gmra.mxu0 %v582
        %v2432 = vpop.f32.mrf.mxu0
        %v2433 = vadd.f32 %v2224, %v2432
        %2434 = vmatmul.f32.gmra.mxu0 %v586
        %v2435 = vpop.f32.mrf.mxu0
        %v2436 = vadd.f32 %v2227, %v2435
        %2437 = vmatmul.f32.gmra.mxu0 %v590
        %v2438 = vpop.f32.mrf.mxu0
        %v2439 = vadd.f32 %v2230, %v2438
        %2440 = vmatmul.f32.gmra.mxu0 %v594
        %v2441 = vpop.f32.mrf.mxu0
        %v2442 = vadd.f32 %v2233, %v2441
        %2443 = vmatmul.f32.gmra.mxu0 %v598
        %v2444 = vpop.f32.mrf.mxu0
        %v2445 = vadd.f32 %v2236, %v2444
        %2446 = vmatmul.f32.gmra.mxu0 %v602
        %v2447 = vpop.f32.mrf.mxu0
        %v2448 = vadd.f32 %v2239, %v2447
        %2449 = vmatmul.f32.gmra.mxu0 %v606
        %v2450 = vpop.f32.mrf.mxu0
        %v2451 = vadd.f32 %v2242, %v2450
        %2452 = vmatmul.f32.gmra.mxu0 %v610
        %v2453 = vpop.f32.mrf.mxu0
        %v2454 = vadd.f32 %v2245, %v2453
        %2455 = vmatmul.f32.gmra.mxu0 %v614
        %v2456 = vpop.f32.mrf.mxu0
        %v2457 = vadd.f32 %v2248, %v2456
        %2458 = vmatmul.f32.gmra.mxu0 %v618
        %v2459 = vpop.f32.mrf.mxu0
        %v2460 = vadd.f32 %v2251, %v2459
        %2461 = vmatmul.f32.gmra.mxu0 %v622
        %v2462 = vpop.f32.mrf.mxu0
        %v2463 = vadd.f32 %v2254, %v2462
        %2464 = vmatmul.f32.gmra.mxu0 %v626
        %v2465 = vpop.f32.mrf.mxu0
        %v2466 = vadd.f32 %v2257, %v2465
        %2467 = vmatmul.f32.gmra.mxu0 %v630
        %v2468 = vpop.f32.mrf.mxu0
        %v2469 = vadd.f32 %v2260, %v2468
        %2470 = vmatmul.f32.gmra.mxu0 %v634
        %v2471 = vpop.f32.mrf.mxu0
        %v2472 = vadd.f32 %v2263, %v2471
        %2473 = vmatmul.f32.gmra.mxu0 %v638
        %v2474 = vpop.f32.mrf.mxu0
        %v2475 = vadd.f32 %v2266, %v2474
        %2476 = vmatmul.f32.gmra.mxu0 %v642
        %v2477 = vpop.f32.mrf.mxu0
        %v2478 = vadd.f32 %v2269, %v2477
        %2479 = vmatmul.f32.gmra.mxu0 %v646
        %v2480 = vpop.f32.mrf.mxu0
        %v2481 = vadd.f32 %v2272, %v2480
        %2482 = vmatmul.f32.gmra.mxu0 %v650
        %v2483 = vpop.f32.mrf.mxu0
        %v2484 = vadd.f32 %v2275, %v2483
        %2485 = vmatmul.f32.gmra.mxu0 %v654
        %v2486 = vpop.f32.mrf.mxu0
        %v2487 = vadd.f32 %v2278, %v2486
        %2488 = vmatmul.f32.gmra.mxu0 %v658
        %v2489 = vpop.f32.mrf.mxu0
        %v2490 = vadd.f32 %v2281, %v2489
        %2491 = vmatmul.f32.gmra.mxu0 %v662
        %v2492 = vpop.f32.mrf.mxu0
        %v2493 = vadd.f32 %v2284, %v2492
        %2494 = vmatmul.f32.gmra.mxu0 %v666
        %v2495 = vpop.f32.mrf.mxu0
        %v2496 = vadd.f32 %v2287, %v2495
        %2497 = vmatmul.f32.gmra.mxu0 %v670
        %v2498 = vpop.f32.mrf.mxu0
        %v2499 = vadd.f32 %v2290, %v2498
        %2500 = vmatmul.f32.gmra.mxu0 %v674
        %v2501 = vpop.f32.mrf.mxu0
        %v2502 = vadd.f32 %v2293, %v2501
        %2503 = vmatmul.f32.gmra.mxu0 %v678
        %v2504 = vpop.f32.mrf.mxu0
        %v2505 = vadd.f32 %v2296, %v2504
        %2506 = vmatmul.f32.gmra.mxu0 %v682
        %v2507 = vpop.f32.mrf.mxu0
        %v2508 = vadd.f32 %v2299, %v2507
        %2509 = vmatmul.f32.gmra.mxu0 %v686
        %v2510 = vpop.f32.mrf.mxu0
        %v2511 = vadd.f32 %v2302, %v2510
        %2512 = vmatmul.f32.gmra.mxu0 %v690
        %v2513 = vpop.f32.mrf.mxu0
        %v2514 = vadd.f32 %v2305, %v2513
        %2515 = vmatmul.f32.gmra.mxu0 %v694
        %v2516 = vpop.f32.mrf.mxu0
        %v2517 = vadd.f32 %v2308, %v2516
        %2518 = vmatmul.f32.gmra.mxu0 %v698
        %v2519 = vpop.f32.mrf.mxu0
        %v2520 = vadd.f32 %v2311, %v2519
        %2521 = vmatmul.f32.gmra.mxu0 %v702
        %v2522 = vpop.f32.mrf.mxu0
        %v2523 = vadd.f32 %v2314, %v2522
        %2524 = vmatmul.f32.gmra.mxu0 %v706
        %v2525 = vpop.f32.mrf.mxu0
        %v2526 = vadd.f32 %v2317, %v2525
        %2527 = vmatmul.f32.gmra.mxu0 %v710
        %v2528 = vpop.f32.mrf.mxu0
        %v2529 = vadd.f32 %v2320, %v2528
        %2530 = vmatmul.f32.gmra.mxu0 %v714
        %v2531 = vpop.f32.mrf.mxu0
        %v2532 = vadd.f32 %v2323, %v2531
        %2533 = vmatmul.f32.gmra.mxu0 %v718
        %v2534 = vpop.f32.mrf.mxu0
        %v2535 = vadd.f32 %v2326, %v2534
        %2536 = vmatmul.f32.gmra.mxu0 %v722
        %v2537 = vpop.f32.mrf.mxu0
        %v2538 = vadd.f32 %v2329, %v2537
        %2539 = vmatmul.f32.gmra.mxu0 %v726
        %v2540 = vpop.f32.mrf.mxu0
        %v2541 = vadd.f32 %v2332, %v2540
        %2542 = vmatmul.f32.gmra.mxu0 %v730
        %v2543 = vpop.f32.mrf.mxu0
        %v2544 = vadd.f32 %v2335, %v2543
        %2545 = vmatmul.f32.gmra.mxu0 %v734
        %v2546 = vpop.f32.mrf.mxu0
        %v2547 = vadd.f32 %v2338, %v2546
        %2548 = vmatmul.f32.gmra.mxu0 %v738
        %v2549 = vpop.f32.mrf.mxu0
        %v2550 = vadd.f32 %v2341, %v2549
        %2551 = vmatmul.f32.gmra.mxu0 %v742
        %v2552 = vpop.f32.mrf.mxu0
        %v2553 = vadd.f32 %v2344, %v2552
        %2554 = vmatmul.f32.gmra.mxu0 %v746
        %v2555 = vpop.f32.mrf.mxu0
        %v2556 = vadd.f32 %v2347, %v2555
        %2557 = vmatmul.f32.gmra.mxu0 %v750
        %v2558 = vpop.f32.mrf.mxu0
        %v2559 = vadd.f32 %v2350, %v2558
        %2560 = vmatmul.f32.gmra.mxu0 %v754
        %v2561 = vpop.f32.mrf.mxu0
        %v2562 = vadd.f32 %v2353, %v2561
        %2563 = vmatmul.f32.gmra.mxu0 %v758
        %v2564 = vpop.f32.mrf.mxu0
        %v2565 = vadd.f32 %v2356, %v2564
        %2566 = vmatmul.f32.gmra.mxu0 %v762
        %v2567 = vpop.f32.mrf.mxu0
        %v2568 = vadd.f32 %v2359, %v2567
        %2569 = vdwg.mxu0
        // Predicated region
        $region61: #{appnp_forward.3} parent=31 // pred_check
          %p2570 = pneg %p198
        $region62: #{appnp_forward.3} parent=31 // pred_check_branch
          %2572 = sbr.rel (%p2570) target = $region64
        $region63: #{appnp_forward.3} parent=31 // pred_region
          %2573 = vst [vmem:[#allocation2] sm:$0xff] %v1543
          %2574 = vst [vmem:[#allocation2 + $0x8] sm:$0xff] %v2379
          %2575 = vst [vmem:[#allocation2 + $0x10] sm:$0xff] %v1546
          %2576 = vst [vmem:[#allocation2 + $0x18] sm:$0xff] %v2382
          %2577 = vst [vmem:[#allocation2 + $0x20] sm:$0xff] %v1549
          %2578 = vst [vmem:[#allocation2 + $0x28] sm:$0xff] %v2385
          %2579 = vst [vmem:[#allocation2 + $0x30] sm:$0xff] %v1552
          %2580 = vst [vmem:[#allocation2 + $0x38] sm:$0xff] %v2388
          %2581 = vst [vmem:[#allocation2 + $0x40] sm:$0xff] %v1555
          %2582 = vst [vmem:[#allocation2 + $0x48] sm:$0xff] %v2391
          %2583 = vst [vmem:[#allocation2 + $0x50] sm:$0xff] %v1558
          %2584 = vst [vmem:[#allocation2 + $0x58] sm:$0xff] %v2394
          %2585 = vst [vmem:[#allocation2 + $0x60] sm:$0xff] %v1561
          %2586 = vst [vmem:[#allocation2 + $0x68] sm:$0xff] %v2397
          %2587 = vst [vmem:[#allocation2 + $0x70] sm:$0xff] %v1564
          %2588 = vst [vmem:[#allocation2 + $0x78] sm:$0xff] %v2400
          %2589 = vst [vmem:[#allocation2 + $0x80] sm:$0xff] %v1567
          %2590 = vst [vmem:[#allocation2 + $0x88] sm:$0xff] %v2403
          %2591 = vst [vmem:[#allocation2 + $0x90] sm:$0xff] %v1570
          %2592 = vst [vmem:[#allocation2 + $0x98] sm:$0xff] %v2406
          %2593 = vst [vmem:[#allocation2 + $0xa0] sm:$0xff] %v1573
          %2594 = vst [vmem:[#allocation2 + $0xa8] sm:$0xff] %v2409
          %2595 = vst [vmem:[#allocation2 + $0xb0] sm:$0xff] %v1576
          %2596 = vst [vmem:[#allocation2 + $0xb8] sm:$0xff] %v2412
          %2597 = vst [vmem:[#allocation2 + $0xc0] sm:$0xff] %v1579
          %2598 = vst [vmem:[#allocation2 + $0xc8] sm:$0xff] %v2415
          %2599 = vst [vmem:[#allocation2 + $0xd0] sm:$0xff] %v1582
          %2600 = vst [vmem:[#allocation2 + $0xd8] sm:$0xff] %v2418
          %2601 = vst [vmem:[#allocation2 + $0xe0] sm:$0xff] %v1585
          %2602 = vst [vmem:[#allocation2 + $0xe8] sm:$0xff] %v2421
          %2603 = vst [vmem:[#allocation2 + $0xf0] sm:$0xff] %v1588
          %2604 = vst [vmem:[#allocation2 + $0xf8] sm:$0xff] %v2424
          %2605 = vst [vmem:[#allocation2 + $0x100] sm:$0xff] %v1591
          %2606 = vst [vmem:[#allocation2 + $0x108] sm:$0xff] %v2427
          %2607 = vst [vmem:[#allocation2 + $0x110] sm:$0xff] %v1594
          %2608 = vst [vmem:[#allocation2 + $0x118] sm:$0xff] %v2430
          %2609 = vst [vmem:[#allocation2 + $0x120] sm:$0xff] %v1597
          %2610 = vst [vmem:[#allocation2 + $0x128] sm:$0xff] %v2433
          %2611 = vst [vmem:[#allocation2 + $0x130] sm:$0xff] %v1600
          %2612 = vst [vmem:[#allocation2 + $0x138] sm:$0xff] %v2436
          %2613 = vst [vmem:[#allocation2 + $0x140] sm:$0xff] %v1603
          %2614 = vst [vmem:[#allocation2 + $0x148] sm:$0xff] %v2439
          %2615 = vst [vmem:[#allocation2 + $0x150] sm:$0xff] %v1606
          %2616 = vst [vmem:[#allocation2 + $0x158] sm:$0xff] %v2442
          %2617 = vst [vmem:[#allocation2 + $0x160] sm:$0xff] %v1609
          %2618 = vst [vmem:[#allocation2 + $0x168] sm:$0xff] %v2445
          %2619 = vst [vmem:[#allocation2 + $0x170] sm:$0xff] %v1612
          %2620 = vst [vmem:[#allocation2 + $0x178] sm:$0xff] %v2448
          %2621 = vst [vmem:[#allocation2 + $0x180] sm:$0xff] %v1615
          %2622 = vst [vmem:[#allocation2 + $0x188] sm:$0xff] %v2451
          %2623 = vst [vmem:[#allocation2 + $0x190] sm:$0xff] %v1618
          %2624 = vst [vmem:[#allocation2 + $0x198] sm:$0xff] %v2454
          %2625 = vst [vmem:[#allocation2 + $0x1a0] sm:$0xff] %v1621
          %2626 = vst [vmem:[#allocation2 + $0x1a8] sm:$0xff] %v2457
          %2627 = vst [vmem:[#allocation2 + $0x1b0] sm:$0xff] %v1624
          %2628 = vst [vmem:[#allocation2 + $0x1b8] sm:$0xff] %v2460
          %2629 = vst [vmem:[#allocation2 + $0x1c0] sm:$0xff] %v1627
          %2630 = vst [vmem:[#allocation2 + $0x1c8] sm:$0xff] %v2463
          %2631 = vst [vmem:[#allocation2 + $0x1d0] sm:$0xff] %v1630
          %2632 = vst [vmem:[#allocation2 + $0x1d8] sm:$0xff] %v2466
          %2633 = vst [vmem:[#allocation2 + $0x1e0] sm:$0xff] %v1633
          %2634 = vst [vmem:[#allocation2 + $0x1e8] sm:$0xff] %v2469
          %2635 = vst [vmem:[#allocation2 + $0x1f0] sm:$0xff] %v1636
          %2636 = vst [vmem:[#allocation2 + $0x1f8] sm:$0xff] %v2472
          %2637 = vst [vmem:[#allocation2 + $0x200] sm:$0xff] %v1639
          %2638 = vst [vmem:[#allocation2 + $0x208] sm:$0xff] %v2475
          %2639 = vst [vmem:[#allocation2 + $0x210] sm:$0xff] %v1642
          %2640 = vst [vmem:[#allocation2 + $0x218] sm:$0xff] %v2478
          %2641 = vst [vmem:[#allocation2 + $0x220] sm:$0xff] %v1645
          %2642 = vst [vmem:[#allocation2 + $0x228] sm:$0xff] %v2481
          %2643 = vst [vmem:[#allocation2 + $0x230] sm:$0xff] %v1648
          %2644 = vst [vmem:[#allocation2 + $0x238] sm:$0xff] %v2484
          %2645 = vst [vmem:[#allocation2 + $0x240] sm:$0xff] %v1651
          %2646 = vst [vmem:[#allocation2 + $0x248] sm:$0xff] %v2487
          %2647 = vst [vmem:[#allocation2 + $0x250] sm:$0xff] %v1654
          %2648 = vst [vmem:[#allocation2 + $0x258] sm:$0xff] %v2490
          %2649 = vst [vmem:[#allocation2 + $0x260] sm:$0xff] %v1657
          %2650 = vst [vmem:[#allocation2 + $0x268] sm:$0xff] %v2493
          %2651 = vst [vmem:[#allocation2 + $0x270] sm:$0xff] %v1660
          %2652 = vst [vmem:[#allocation2 + $0x278] sm:$0xff] %v2496
          %2653 = vst [vmem:[#allocation2 + $0x280] sm:$0xff] %v1663
          %2654 = vst [vmem:[#allocation2 + $0x288] sm:$0xff] %v2499
          %2655 = vst [vmem:[#allocation2 + $0x290] sm:$0xff] %v1666
          %2656 = vst [vmem:[#allocation2 + $0x298] sm:$0xff] %v2502
          %2657 = vst [vmem:[#allocation2 + $0x2a0] sm:$0xff] %v1669
          %2658 = vst [vmem:[#allocation2 + $0x2a8] sm:$0xff] %v2505
          %2659 = vst [vmem:[#allocation2 + $0x2b0] sm:$0xff] %v1672
          %2660 = vst [vmem:[#allocation2 + $0x2b8] sm:$0xff] %v2508
          %2661 = vst [vmem:[#allocation2 + $0x2c0] sm:$0xff] %v1675
          %2662 = vst [vmem:[#allocation2 + $0x2c8] sm:$0xff] %v2511
          %2663 = vst [vmem:[#allocation2 + $0x2d0] sm:$0xff] %v1678
          %2664 = vst [vmem:[#allocation2 + $0x2d8] sm:$0xff] %v2514
          %2665 = vst [vmem:[#allocation2 + $0x2e0] sm:$0xff] %v1681
          %2666 = vst [vmem:[#allocation2 + $0x2e8] sm:$0xff] %v2517
          %2667 = vst [vmem:[#allocation2 + $0x2f0] sm:$0xff] %v1684
          %2668 = vst [vmem:[#allocation2 + $0x2f8] sm:$0xff] %v2520
          %2669 = vst [vmem:[#allocation2 + $0x300] sm:$0xff] %v1687
          %2670 = vst [vmem:[#allocation2 + $0x308] sm:$0xff] %v2523
          %2671 = vst [vmem:[#allocation2 + $0x310] sm:$0xff] %v1690
          %2672 = vst [vmem:[#allocation2 + $0x318] sm:$0xff] %v2526
          %2673 = vst [vmem:[#allocation2 + $0x320] sm:$0xff] %v1693
          %2674 = vst [vmem:[#allocation2 + $0x328] sm:$0xff] %v2529
          %2675 = vst [vmem:[#allocation2 + $0x330] sm:$0xff] %v1696
          %2676 = vst [vmem:[#allocation2 + $0x338] sm:$0xff] %v2532
          %2677 = vst [vmem:[#allocation2 + $0x340] sm:$0xff] %v1699
          %2678 = vst [vmem:[#allocation2 + $0x348] sm:$0xff] %v2535
          %2679 = vst [vmem:[#allocation2 + $0x350] sm:$0xff] %v1702
          %2680 = vst [vmem:[#allocation2 + $0x358] sm:$0xff] %v2538
          %2681 = vst [vmem:[#allocation2 + $0x360] sm:$0xff] %v1705
          %2682 = vst [vmem:[#allocation2 + $0x368] sm:$0xff] %v2541
          %2683 = vst [vmem:[#allocation2 + $0x370] sm:$0xff] %v1708
          %2684 = vst [vmem:[#allocation2 + $0x378] sm:$0xff] %v2544
          %2685 = vst [vmem:[#allocation2 + $0x380] sm:$0xff] %v1711
          %2686 = vst [vmem:[#allocation2 + $0x388] sm:$0xff] %v2547
          %2687 = vst [vmem:[#allocation2 + $0x390] sm:$0xff] %v1714
          %2688 = vst [vmem:[#allocation2 + $0x398] sm:$0xff] %v2550
          %2689 = vst [vmem:[#allocation2 + $0x3a0] sm:$0xff] %v1717
          %2690 = vst [vmem:[#allocation2 + $0x3a8] sm:$0xff] %v2553
          %2691 = vst [vmem:[#allocation2 + $0x3b0] sm:$0xff] %v1720
          %2692 = vst [vmem:[#allocation2 + $0x3b8] sm:$0xff] %v2556
          %2693 = vst [vmem:[#allocation2 + $0x3c0] sm:$0xff] %v1723
          %2694 = vst [vmem:[#allocation2 + $0x3c8] sm:$0xff] %v2559
          %2695 = vst [vmem:[#allocation2 + $0x3d0] sm:$0xff] %v1726
          %2696 = vst [vmem:[#allocation2 + $0x3d8] sm:$0xff] %v2562
          %2697 = vst [vmem:[#allocation2 + $0x3e0] sm:$0xff] %v1729
          %2698 = vst [vmem:[#allocation2 + $0x3e8] sm:$0xff] %v2565
          %2699 = vst [vmem:[#allocation2 + $0x3f0] sm:$0xff] %v1732
          %2700 = vst [vmem:[#allocation2 + $0x3f8] sm:$0xff] %v2568
        $region64: #{appnp_forward.3} parent=31 // pred_fallthru
          _
        %p2701 = scmp.gt.s32.totalorder %s23, 0
        // Predicated region
        $region65: #{appnp_forward.3} parent=31 // pred_check
          %p2702 = pneg %p2701
        $region66: #{appnp_forward.3} parent=31 // pred_check_branch
          %2704 = sbr.rel (%p2702) target = $region68
        $region67: #{appnp_forward.3} parent=31 // pred_region
          %v2705 = vld [vmem:[#allocation2] sm:$0xff]
          %v2706 = vld [vmem:[#allocation2 + $0x8] sm:$0xff]
          %v2707 = vld [vmem:[#allocation2 + $0x10] sm:$0xff]
          %v2708 = vld [vmem:[#allocation2 + $0x18] sm:$0xff]
          %v2709 = vld [vmem:[#allocation2 + $0x20] sm:$0xff]
          %v2710 = vld [vmem:[#allocation2 + $0x28] sm:$0xff]
          %v2711 = vld [vmem:[#allocation2 + $0x30] sm:$0xff]
          %v2712 = vld [vmem:[#allocation2 + $0x38] sm:$0xff]
          %v2713 = vld [vmem:[#allocation2 + $0x40] sm:$0xff]
          %v2714 = vld [vmem:[#allocation2 + $0x48] sm:$0xff]
          %v2715 = vld [vmem:[#allocation2 + $0x50] sm:$0xff]
          %v2716 = vld [vmem:[#allocation2 + $0x58] sm:$0xff]
          %v2717 = vld [vmem:[#allocation2 + $0x60] sm:$0xff]
          %v2718 = vld [vmem:[#allocation2 + $0x68] sm:$0xff]
          %v2719 = vld [vmem:[#allocation2 + $0x70] sm:$0xff]
          %v2720 = vld [vmem:[#allocation2 + $0x78] sm:$0xff]
          %v2721 = vld [vmem:[#allocation2 + $0x80] sm:$0xff]
          %v2722 = vld [vmem:[#allocation2 + $0x88] sm:$0xff]
          %v2723 = vld [vmem:[#allocation2 + $0x90] sm:$0xff]
          %v2724 = vld [vmem:[#allocation2 + $0x98] sm:$0xff]
          %v2725 = vld [vmem:[#allocation2 + $0xa0] sm:$0xff]
          %v2726 = vld [vmem:[#allocation2 + $0xa8] sm:$0xff]
          %v2727 = vld [vmem:[#allocation2 + $0xb0] sm:$0xff]
          %v2728 = vld [vmem:[#allocation2 + $0xb8] sm:$0xff]
          %v2729 = vld [vmem:[#allocation2 + $0xc0] sm:$0xff]
          %v2730 = vld [vmem:[#allocation2 + $0xc8] sm:$0xff]
          %v2731 = vld [vmem:[#allocation2 + $0xd0] sm:$0xff]
          %v2732 = vld [vmem:[#allocation2 + $0xd8] sm:$0xff]
          %v2733 = vld [vmem:[#allocation2 + $0xe0] sm:$0xff]
          %v2734 = vld [vmem:[#allocation2 + $0xe8] sm:$0xff]
          %v2735 = vld [vmem:[#allocation2 + $0xf0] sm:$0xff]
          %v2736 = vld [vmem:[#allocation2 + $0xf8] sm:$0xff]
          %v2737 = vld [vmem:[#allocation2 + $0x100] sm:$0xff]
          %v2738 = vld [vmem:[#allocation2 + $0x108] sm:$0xff]
          %v2739 = vld [vmem:[#allocation2 + $0x110] sm:$0xff]
          %v2740 = vld [vmem:[#allocation2 + $0x118] sm:$0xff]
          %v2741 = vld [vmem:[#allocation2 + $0x120] sm:$0xff]
          %v2742 = vld [vmem:[#allocation2 + $0x128] sm:$0xff]
          %v2743 = vld [vmem:[#allocation2 + $0x130] sm:$0xff]
          %v2744 = vld [vmem:[#allocation2 + $0x138] sm:$0xff]
          %v2745 = vld [vmem:[#allocation2 + $0x140] sm:$0xff]
          %v2746 = vld [vmem:[#allocation2 + $0x148] sm:$0xff]
          %v2747 = vld [vmem:[#allocation2 + $0x150] sm:$0xff]
          %v2748 = vld [vmem:[#allocation2 + $0x158] sm:$0xff]
          %v2749 = vld [vmem:[#allocation2 + $0x160] sm:$0xff]
          %v2750 = vld [vmem:[#allocation2 + $0x168] sm:$0xff]
          %v2751 = vld [vmem:[#allocation2 + $0x170] sm:$0xff]
          %v2752 = vld [vmem:[#allocation2 + $0x178] sm:$0xff]
          %v2753 = vld [vmem:[#allocation2 + $0x180] sm:$0xff]
          %v2754 = vld [vmem:[#allocation2 + $0x188] sm:$0xff]
          %v2755 = vld [vmem:[#allocation2 + $0x190] sm:$0xff]
          %v2756 = vld [vmem:[#allocation2 + $0x198] sm:$0xff]
          %v2757 = vld [vmem:[#allocation2 + $0x1a0] sm:$0xff]
          %v2758 = vld [vmem:[#allocation2 + $0x1a8] sm:$0xff]
          %v2759 = vld [vmem:[#allocation2 + $0x1b0] sm:$0xff]
          %v2760 = vld [vmem:[#allocation2 + $0x1b8] sm:$0xff]
          %v2761 = vld [vmem:[#allocation2 + $0x1c0] sm:$0xff]
          %v2762 = vld [vmem:[#allocation2 + $0x1c8] sm:$0xff]
          %v2763 = vld [vmem:[#allocation2 + $0x1d0] sm:$0xff]
          %v2764 = vld [vmem:[#allocation2 + $0x1d8] sm:$0xff]
          %v2765 = vld [vmem:[#allocation2 + $0x1e0] sm:$0xff]
          %v2766 = vld [vmem:[#allocation2 + $0x1e8] sm:$0xff]
          %v2767 = vld [vmem:[#allocation2 + $0x1f0] sm:$0xff]
          %v2768 = vld [vmem:[#allocation2 + $0x1f8] sm:$0xff]
          %v2769 = vld [vmem:[#allocation2 + $0x200] sm:$0xff]
          %v2770 = vld [vmem:[#allocation2 + $0x208] sm:$0xff]
          %v2771 = vld [vmem:[#allocation2 + $0x210] sm:$0xff]
          %v2772 = vld [vmem:[#allocation2 + $0x218] sm:$0xff]
          %v2773 = vld [vmem:[#allocation2 + $0x220] sm:$0xff]
          %v2774 = vld [vmem:[#allocation2 + $0x228] sm:$0xff]
          %v2775 = vld [vmem:[#allocation2 + $0x230] sm:$0xff]
          %v2776 = vld [vmem:[#allocation2 + $0x238] sm:$0xff]
          %v2777 = vld [vmem:[#allocation2 + $0x240] sm:$0xff]
          %v2778 = vld [vmem:[#allocation2 + $0x248] sm:$0xff]
          %v2779 = vld [vmem:[#allocation2 + $0x250] sm:$0xff]
          %v2780 = vld [vmem:[#allocation2 + $0x258] sm:$0xff]
          %v2781 = vld [vmem:[#allocation2 + $0x260] sm:$0xff]
          %v2782 = vld [vmem:[#allocation2 + $0x268] sm:$0xff]
          %v2783 = vld [vmem:[#allocation2 + $0x270] sm:$0xff]
          %v2784 = vld [vmem:[#allocation2 + $0x278] sm:$0xff]
          %v2785 = vld [vmem:[#allocation2 + $0x280] sm:$0xff]
          %v2786 = vld [vmem:[#allocation2 + $0x288] sm:$0xff]
          %v2787 = vld [vmem:[#allocation2 + $0x290] sm:$0xff]
          %v2788 = vld [vmem:[#allocation2 + $0x298] sm:$0xff]
          %v2789 = vld [vmem:[#allocation2 + $0x2a0] sm:$0xff]
          %v2790 = vld [vmem:[#allocation2 + $0x2a8] sm:$0xff]
          %v2791 = vld [vmem:[#allocation2 + $0x2b0] sm:$0xff]
          %v2792 = vld [vmem:[#allocation2 + $0x2b8] sm:$0xff]
          %v2793 = vld [vmem:[#allocation2 + $0x2c0] sm:$0xff]
          %v2794 = vld [vmem:[#allocation2 + $0x2c8] sm:$0xff]
          %v2795 = vld [vmem:[#allocation2 + $0x2d0] sm:$0xff]
          %v2796 = vld [vmem:[#allocation2 + $0x2d8] sm:$0xff]
          %v2797 = vld [vmem:[#allocation2 + $0x2e0] sm:$0xff]
          %v2798 = vld [vmem:[#allocation2 + $0x2e8] sm:$0xff]
          %v2799 = vld [vmem:[#allocation2 + $0x2f0] sm:$0xff]
          %v2800 = vld [vmem:[#allocation2 + $0x2f8] sm:$0xff]
          %v2801 = vld [vmem:[#allocation2 + $0x300] sm:$0xff]
          %v2802 = vld [vmem:[#allocation2 + $0x308] sm:$0xff]
          %v2803 = vld [vmem:[#allocation2 + $0x310] sm:$0xff]
          %v2804 = vld [vmem:[#allocation2 + $0x318] sm:$0xff]
          %v2805 = vld [vmem:[#allocation2 + $0x320] sm:$0xff]
          %v2806 = vld [vmem:[#allocation2 + $0x328] sm:$0xff]
          %v2807 = vld [vmem:[#allocation2 + $0x330] sm:$0xff]
          %v2808 = vld [vmem:[#allocation2 + $0x338] sm:$0xff]
          %v2809 = vld [vmem:[#allocation2 + $0x340] sm:$0xff]
          %v2810 = vld [vmem:[#allocation2 + $0x348] sm:$0xff]
          %v2811 = vld [vmem:[#allocation2 + $0x350] sm:$0xff]
          %v2812 = vld [vmem:[#allocation2 + $0x358] sm:$0xff]
          %v2813 = vld [vmem:[#allocation2 + $0x360] sm:$0xff]
          %v2814 = vld [vmem:[#allocation2 + $0x368] sm:$0xff]
          %v2815 = vld [vmem:[#allocation2 + $0x370] sm:$0xff]
          %v2816 = vld [vmem:[#allocation2 + $0x378] sm:$0xff]
          %v2817 = vld [vmem:[#allocation2 + $0x380] sm:$0xff]
          %v2818 = vld [vmem:[#allocation2 + $0x388] sm:$0xff]
          %v2819 = vld [vmem:[#allocation2 + $0x390] sm:$0xff]
          %v2820 = vld [vmem:[#allocation2 + $0x398] sm:$0xff]
          %v2821 = vld [vmem:[#allocation2 + $0x3a0] sm:$0xff]
          %v2822 = vld [vmem:[#allocation2 + $0x3a8] sm:$0xff]
          %v2823 = vld [vmem:[#allocation2 + $0x3b0] sm:$0xff]
          %v2824 = vld [vmem:[#allocation2 + $0x3b8] sm:$0xff]
          %v2825 = vld [vmem:[#allocation2 + $0x3c0] sm:$0xff]
          %v2826 = vld [vmem:[#allocation2 + $0x3c8] sm:$0xff]
          %v2827 = vld [vmem:[#allocation2 + $0x3d0] sm:$0xff]
          %v2828 = vld [vmem:[#allocation2 + $0x3d8] sm:$0xff]
          %v2829 = vld [vmem:[#allocation2 + $0x3e0] sm:$0xff]
          %v2830 = vld [vmem:[#allocation2 + $0x3e8] sm:$0xff]
          %v2831 = vld [vmem:[#allocation2 + $0x3f0] sm:$0xff]
          %v2832 = vld [vmem:[#allocation2 + $0x3f8] sm:$0xff]
          %v2833 = vadd.f32 %v2705, %v1543
          %v2834 = vadd.f32 %v2706, %v2379
          %v2835 = vadd.f32 %v2707, %v1546
          %v2836 = vadd.f32 %v2708, %v2382
          %v2837 = vadd.f32 %v2709, %v1549
          %v2838 = vadd.f32 %v2710, %v2385
          %v2839 = vadd.f32 %v2711, %v1552
          %v2840 = vadd.f32 %v2712, %v2388
          %v2841 = vadd.f32 %v2713, %v1555
          %v2842 = vadd.f32 %v2714, %v2391
          %v2843 = vadd.f32 %v2715, %v1558
          %v2844 = vadd.f32 %v2716, %v2394
          %v2845 = vadd.f32 %v2717, %v1561
          %v2846 = vadd.f32 %v2718, %v2397
          %v2847 = vadd.f32 %v2719, %v1564
          %v2848 = vadd.f32 %v2720, %v2400
          %v2849 = vadd.f32 %v2721, %v1567
          %v2850 = vadd.f32 %v2722, %v2403
          %v2851 = vadd.f32 %v2723, %v1570
          %v2852 = vadd.f32 %v2724, %v2406
          %v2853 = vadd.f32 %v2725, %v1573
          %v2854 = vadd.f32 %v2726, %v2409
          %v2855 = vadd.f32 %v2727, %v1576
          %v2856 = vadd.f32 %v2728, %v2412
          %v2857 = vadd.f32 %v2729, %v1579
          %v2858 = vadd.f32 %v2730, %v2415
          %v2859 = vadd.f32 %v2731, %v1582
          %v2860 = vadd.f32 %v2732, %v2418
          %v2861 = vadd.f32 %v2733, %v1585
          %v2862 = vadd.f32 %v2734, %v2421
          %v2863 = vadd.f32 %v2735, %v1588
          %v2864 = vadd.f32 %v2736, %v2424
          %v2865 = vadd.f32 %v2737, %v1591
          %v2866 = vadd.f32 %v2738, %v2427
          %v2867 = vadd.f32 %v2739, %v1594
          %v2868 = vadd.f32 %v2740, %v2430
          %v2869 = vadd.f32 %v2741, %v1597
          %v2870 = vadd.f32 %v2742, %v2433
          %v2871 = vadd.f32 %v2743, %v1600
          %v2872 = vadd.f32 %v2744, %v2436
          %v2873 = vadd.f32 %v2745, %v1603
          %v2874 = vadd.f32 %v2746, %v2439
          %v2875 = vadd.f32 %v2747, %v1606
          %v2876 = vadd.f32 %v2748, %v2442
          %v2877 = vadd.f32 %v2749, %v1609
          %v2878 = vadd.f32 %v2750, %v2445
          %v2879 = vadd.f32 %v2751, %v1612
          %v2880 = vadd.f32 %v2752, %v2448
          %v2881 = vadd.f32 %v2753, %v1615
          %v2882 = vadd.f32 %v2754, %v2451
          %v2883 = vadd.f32 %v2755, %v1618
          %v2884 = vadd.f32 %v2756, %v2454
          %v2885 = vadd.f32 %v2757, %v1621
          %v2886 = vadd.f32 %v2758, %v2457
          %v2887 = vadd.f32 %v2759, %v1624
          %v2888 = vadd.f32 %v2760, %v2460
          %v2889 = vadd.f32 %v2761, %v1627
          %v2890 = vadd.f32 %v2762, %v2463
          %v2891 = vadd.f32 %v2763, %v1630
          %v2892 = vadd.f32 %v2764, %v2466
          %v2893 = vadd.f32 %v2765, %v1633
          %v2894 = vadd.f32 %v2766, %v2469
          %v2895 = vadd.f32 %v2767, %v1636
          %v2896 = vadd.f32 %v2768, %v2472
          %v2897 = vadd.f32 %v2769, %v1639
          %v2898 = vadd.f32 %v2770, %v2475
          %v2899 = vadd.f32 %v2771, %v1642
          %v2900 = vadd.f32 %v2772, %v2478
          %v2901 = vadd.f32 %v2773, %v1645
          %v2902 = vadd.f32 %v2774, %v2481
          %v2903 = vadd.f32 %v2775, %v1648
          %v2904 = vadd.f32 %v2776, %v2484
          %v2905 = vadd.f32 %v2777, %v1651
          %v2906 = vadd.f32 %v2778, %v2487
          %v2907 = vadd.f32 %v2779, %v1654
          %v2908 = vadd.f32 %v2780, %v2490
          %v2909 = vadd.f32 %v2781, %v1657
          %v2910 = vadd.f32 %v2782, %v2493
          %v2911 = vadd.f32 %v2783, %v1660
          %v2912 = vadd.f32 %v2784, %v2496
          %v2913 = vadd.f32 %v2785, %v1663
          %v2914 = vadd.f32 %v2786, %v2499
          %v2915 = vadd.f32 %v2787, %v1666
          %v2916 = vadd.f32 %v2788, %v2502
          %v2917 = vadd.f32 %v2789, %v1669
          %v2918 = vadd.f32 %v2790, %v2505
          %v2919 = vadd.f32 %v2791, %v1672
          %v2920 = vadd.f32 %v2792, %v2508
          %v2921 = vadd.f32 %v2793, %v1675
          %v2922 = vadd.f32 %v2794, %v2511
          %v2923 = vadd.f32 %v2795, %v1678
          %v2924 = vadd.f32 %v2796, %v2514
          %v2925 = vadd.f32 %v2797, %v1681
          %v2926 = vadd.f32 %v2798, %v2517
          %v2927 = vadd.f32 %v2799, %v1684
          %v2928 = vadd.f32 %v2800, %v2520
          %v2929 = vadd.f32 %v2801, %v1687
          %v2930 = vadd.f32 %v2802, %v2523
          %v2931 = vadd.f32 %v2803, %v1690
          %v2932 = vadd.f32 %v2804, %v2526
          %v2933 = vadd.f32 %v2805, %v1693
          %v2934 = vadd.f32 %v2806, %v2529
          %v2935 = vadd.f32 %v2807, %v1696
          %v2936 = vadd.f32 %v2808, %v2532
          %v2937 = vadd.f32 %v2809, %v1699
          %v2938 = vadd.f32 %v2810, %v2535
          %v2939 = vadd.f32 %v2811, %v1702
          %v2940 = vadd.f32 %v2812, %v2538
          %v2941 = vadd.f32 %v2813, %v1705
          %v2942 = vadd.f32 %v2814, %v2541
          %v2943 = vadd.f32 %v2815, %v1708
          %v2944 = vadd.f32 %v2816, %v2544
          %v2945 = vadd.f32 %v2817, %v1711
          %v2946 = vadd.f32 %v2818, %v2547
          %v2947 = vadd.f32 %v2819, %v1714
          %v2948 = vadd.f32 %v2820, %v2550
          %v2949 = vadd.f32 %v2821, %v1717
          %v2950 = vadd.f32 %v2822, %v2553
          %v2951 = vadd.f32 %v2823, %v1720
          %v2952 = vadd.f32 %v2824, %v2556
          %v2953 = vadd.f32 %v2825, %v1723
          %v2954 = vadd.f32 %v2826, %v2559
          %v2955 = vadd.f32 %v2827, %v1726
          %v2956 = vadd.f32 %v2828, %v2562
          %v2957 = vadd.f32 %v2829, %v1729
          %v2958 = vadd.f32 %v2830, %v2565
          %v2959 = vadd.f32 %v2831, %v1732
          %v2960 = vadd.f32 %v2832, %v2568
          %2961 = vst [vmem:[#allocation2] sm:$0xff] %v2833
          %2962 = vst [vmem:[#allocation2 + $0x8] sm:$0xff] %v2834
          %2963 = vst [vmem:[#allocation2 + $0x10] sm:$0xff] %v2835
          %2964 = vst [vmem:[#allocation2 + $0x18] sm:$0xff] %v2836
          %2965 = vst [vmem:[#allocation2 + $0x20] sm:$0xff] %v2837
          %2966 = vst [vmem:[#allocation2 + $0x28] sm:$0xff] %v2838
          %2967 = vst [vmem:[#allocation2 + $0x30] sm:$0xff] %v2839
          %2968 = vst [vmem:[#allocation2 + $0x38] sm:$0xff] %v2840
          %2969 = vst [vmem:[#allocation2 + $0x40] sm:$0xff] %v2841
          %2970 = vst [vmem:[#allocation2 + $0x48] sm:$0xff] %v2842
          %2971 = vst [vmem:[#allocation2 + $0x50] sm:$0xff] %v2843
          %2972 = vst [vmem:[#allocation2 + $0x58] sm:$0xff] %v2844
          %2973 = vst [vmem:[#allocation2 + $0x60] sm:$0xff] %v2845
          %2974 = vst [vmem:[#allocation2 + $0x68] sm:$0xff] %v2846
          %2975 = vst [vmem:[#allocation2 + $0x70] sm:$0xff] %v2847
          %2976 = vst [vmem:[#allocation2 + $0x78] sm:$0xff] %v2848
          %2977 = vst [vmem:[#allocation2 + $0x80] sm:$0xff] %v2849
          %2978 = vst [vmem:[#allocation2 + $0x88] sm:$0xff] %v2850
          %2979 = vst [vmem:[#allocation2 + $0x90] sm:$0xff] %v2851
          %2980 = vst [vmem:[#allocation2 + $0x98] sm:$0xff] %v2852
          %2981 = vst [vmem:[#allocation2 + $0xa0] sm:$0xff] %v2853
          %2982 = vst [vmem:[#allocation2 + $0xa8] sm:$0xff] %v2854
          %2983 = vst [vmem:[#allocation2 + $0xb0] sm:$0xff] %v2855
          %2984 = vst [vmem:[#allocation2 + $0xb8] sm:$0xff] %v2856
          %2985 = vst [vmem:[#allocation2 + $0xc0] sm:$0xff] %v2857
          %2986 = vst [vmem:[#allocation2 + $0xc8] sm:$0xff] %v2858
          %2987 = vst [vmem:[#allocation2 + $0xd0] sm:$0xff] %v2859
          %2988 = vst [vmem:[#allocation2 + $0xd8] sm:$0xff] %v2860
          %2989 = vst [vmem:[#allocation2 + $0xe0] sm:$0xff] %v2861
          %2990 = vst [vmem:[#allocation2 + $0xe8] sm:$0xff] %v2862
          %2991 = vst [vmem:[#allocation2 + $0xf0] sm:$0xff] %v2863
          %2992 = vst [vmem:[#allocation2 + $0xf8] sm:$0xff] %v2864
          %2993 = vst [vmem:[#allocation2 + $0x100] sm:$0xff] %v2865
          %2994 = vst [vmem:[#allocation2 + $0x108] sm:$0xff] %v2866
          %2995 = vst [vmem:[#allocation2 + $0x110] sm:$0xff] %v2867
          %2996 = vst [vmem:[#allocation2 + $0x118] sm:$0xff] %v2868
          %2997 = vst [vmem:[#allocation2 + $0x120] sm:$0xff] %v2869
          %2998 = vst [vmem:[#allocation2 + $0x128] sm:$0xff] %v2870
          %2999 = vst [vmem:[#allocation2 + $0x130] sm:$0xff] %v2871
          %3000 = vst [vmem:[#allocation2 + $0x138] sm:$0xff] %v2872
          %3001 = vst [vmem:[#allocation2 + $0x140] sm:$0xff] %v2873
          %3002 = vst [vmem:[#allocation2 + $0x148] sm:$0xff] %v2874
          %3003 = vst [vmem:[#allocation2 + $0x150] sm:$0xff] %v2875
          %3004 = vst [vmem:[#allocation2 + $0x158] sm:$0xff] %v2876
          %3005 = vst [vmem:[#allocation2 + $0x160] sm:$0xff] %v2877
          %3006 = vst [vmem:[#allocation2 + $0x168] sm:$0xff] %v2878
          %3007 = vst [vmem:[#allocation2 + $0x170] sm:$0xff] %v2879
          %3008 = vst [vmem:[#allocation2 + $0x178] sm:$0xff] %v2880
          %3009 = vst [vmem:[#allocation2 + $0x180] sm:$0xff] %v2881
          %3010 = vst [vmem:[#allocation2 + $0x188] sm:$0xff] %v2882
          %3011 = vst [vmem:[#allocation2 + $0x190] sm:$0xff] %v2883
          %3012 = vst [vmem:[#allocation2 + $0x198] sm:$0xff] %v2884
          %3013 = vst [vmem:[#allocation2 + $0x1a0] sm:$0xff] %v2885
          %3014 = vst [vmem:[#allocation2 + $0x1a8] sm:$0xff] %v2886
          %3015 = vst [vmem:[#allocation2 + $0x1b0] sm:$0xff] %v2887
          %3016 = vst [vmem:[#allocation2 + $0x1b8] sm:$0xff] %v2888
          %3017 = vst [vmem:[#allocation2 + $0x1c0] sm:$0xff] %v2889
          %3018 = vst [vmem:[#allocation2 + $0x1c8] sm:$0xff] %v2890
          %3019 = vst [vmem:[#allocation2 + $0x1d0] sm:$0xff] %v2891
          %3020 = vst [vmem:[#allocation2 + $0x1d8] sm:$0xff] %v2892
          %3021 = vst [vmem:[#allocation2 + $0x1e0] sm:$0xff] %v2893
          %3022 = vst [vmem:[#allocation2 + $0x1e8] sm:$0xff] %v2894
          %3023 = vst [vmem:[#allocation2 + $0x1f0] sm:$0xff] %v2895
          %3024 = vst [vmem:[#allocation2 + $0x1f8] sm:$0xff] %v2896
          %3025 = vst [vmem:[#allocation2 + $0x200] sm:$0xff] %v2897
          %3026 = vst [vmem:[#allocation2 + $0x208] sm:$0xff] %v2898
          %3027 = vst [vmem:[#allocation2 + $0x210] sm:$0xff] %v2899
          %3028 = vst [vmem:[#allocation2 + $0x218] sm:$0xff] %v2900
          %3029 = vst [vmem:[#allocation2 + $0x220] sm:$0xff] %v2901
          %3030 = vst [vmem:[#allocation2 + $0x228] sm:$0xff] %v2902
          %3031 = vst [vmem:[#allocation2 + $0x230] sm:$0xff] %v2903
          %3032 = vst [vmem:[#allocation2 + $0x238] sm:$0xff] %v2904
          %3033 = vst [vmem:[#allocation2 + $0x240] sm:$0xff] %v2905
          %3034 = vst [vmem:[#allocation2 + $0x248] sm:$0xff] %v2906
          %3035 = vst [vmem:[#allocation2 + $0x250] sm:$0xff] %v2907
          %3036 = vst [vmem:[#allocation2 + $0x258] sm:$0xff] %v2908
          %3037 = vst [vmem:[#allocation2 + $0x260] sm:$0xff] %v2909
          %3038 = vst [vmem:[#allocation2 + $0x268] sm:$0xff] %v2910
          %3039 = vst [vmem:[#allocation2 + $0x270] sm:$0xff] %v2911
          %3040 = vst [vmem:[#allocation2 + $0x278] sm:$0xff] %v2912
          %3041 = vst [vmem:[#allocation2 + $0x280] sm:$0xff] %v2913
          %3042 = vst [vmem:[#allocation2 + $0x288] sm:$0xff] %v2914
          %3043 = vst [vmem:[#allocation2 + $0x290] sm:$0xff] %v2915
          %3044 = vst [vmem:[#allocation2 + $0x298] sm:$0xff] %v2916
          %3045 = vst [vmem:[#allocation2 + $0x2a0] sm:$0xff] %v2917
          %3046 = vst [vmem:[#allocation2 + $0x2a8] sm:$0xff] %v2918
          %3047 = vst [vmem:[#allocation2 + $0x2b0] sm:$0xff] %v2919
          %3048 = vst [vmem:[#allocation2 + $0x2b8] sm:$0xff] %v2920
          %3049 = vst [vmem:[#allocation2 + $0x2c0] sm:$0xff] %v2921
          %3050 = vst [vmem:[#allocation2 + $0x2c8] sm:$0xff] %v2922
          %3051 = vst [vmem:[#allocation2 + $0x2d0] sm:$0xff] %v2923
          %3052 = vst [vmem:[#allocation2 + $0x2d8] sm:$0xff] %v2924
          %3053 = vst [vmem:[#allocation2 + $0x2e0] sm:$0xff] %v2925
          %3054 = vst [vmem:[#allocation2 + $0x2e8] sm:$0xff] %v2926
          %3055 = vst [vmem:[#allocation2 + $0x2f0] sm:$0xff] %v2927
          %3056 = vst [vmem:[#allocation2 + $0x2f8] sm:$0xff] %v2928
          %3057 = vst [vmem:[#allocation2 + $0x300] sm:$0xff] %v2929
          %3058 = vst [vmem:[#allocation2 + $0x308] sm:$0xff] %v2930
          %3059 = vst [vmem:[#allocation2 + $0x310] sm:$0xff] %v2931
          %3060 = vst [vmem:[#allocation2 + $0x318] sm:$0xff] %v2932
          %3061 = vst [vmem:[#allocation2 + $0x320] sm:$0xff] %v2933
          %3062 = vst [vmem:[#allocation2 + $0x328] sm:$0xff] %v2934
          %3063 = vst [vmem:[#allocation2 + $0x330] sm:$0xff] %v2935
          %3064 = vst [vmem:[#allocation2 + $0x338] sm:$0xff] %v2936
          %3065 = vst [vmem:[#allocation2 + $0x340] sm:$0xff] %v2937
          %3066 = vst [vmem:[#allocation2 + $0x348] sm:$0xff] %v2938
          %3067 = vst [vmem:[#allocation2 + $0x350] sm:$0xff] %v2939
          %3068 = vst [vmem:[#allocation2 + $0x358] sm:$0xff] %v2940
          %3069 = vst [vmem:[#allocation2 + $0x360] sm:$0xff] %v2941
          %3070 = vst [vmem:[#allocation2 + $0x368] sm:$0xff] %v2942
          %3071 = vst [vmem:[#allocation2 + $0x370] sm:$0xff] %v2943
          %3072 = vst [vmem:[#allocation2 + $0x378] sm:$0xff] %v2944
          %3073 = vst [vmem:[#allocation2 + $0x380] sm:$0xff] %v2945
          %3074 = vst [vmem:[#allocation2 + $0x388] sm:$0xff] %v2946
          %3075 = vst [vmem:[#allocation2 + $0x390] sm:$0xff] %v2947
          %3076 = vst [vmem:[#allocation2 + $0x398] sm:$0xff] %v2948
          %3077 = vst [vmem:[#allocation2 + $0x3a0] sm:$0xff] %v2949
          %3078 = vst [vmem:[#allocation2 + $0x3a8] sm:$0xff] %v2950
          %3079 = vst [vmem:[#allocation2 + $0x3b0] sm:$0xff] %v2951
          %3080 = vst [vmem:[#allocation2 + $0x3b8] sm:$0xff] %v2952
          %3081 = vst [vmem:[#allocation2 + $0x3c0] sm:$0xff] %v2953
          %3082 = vst [vmem:[#allocation2 + $0x3c8] sm:$0xff] %v2954
          %3083 = vst [vmem:[#allocation2 + $0x3d0] sm:$0xff] %v2955
          %3084 = vst [vmem:[#allocation2 + $0x3d8] sm:$0xff] %v2956
          %3085 = vst [vmem:[#allocation2 + $0x3e0] sm:$0xff] %v2957
          %3086 = vst [vmem:[#allocation2 + $0x3e8] sm:$0xff] %v2958
          %3087 = vst [vmem:[#allocation2 + $0x3f0] sm:$0xff] %v2959
          %3088 = vst [vmem:[#allocation2 + $0x3f8] sm:$0xff] %v2960
        $region68: #{appnp_forward.3} parent=31 // pred_fallthru
          _
        // Predicated region
        $region69: #{appnp_forward.3} parent=31 // pred_check
          %p3089 = pneg %p198
        $region70: #{appnp_forward.3} parent=31 // pred_check_branch
          %3091 = sbr.rel (%p3089) target = $region72
        $region71: #{appnp_forward.3} parent=31 // pred_region
          %s3092 = smul.u32 %s22, 512
          %s3093 = sshra.s32 %s3092, 3
          %s3094 = sand.u32 %s3092, 7
          %s3095 = smul.u32 %s3093, 2
          %s3096 = smul.addr %s3095, 8
          %s3097 = scalar_lea.vmem %s2, %s3096
          %v3098 = vld [vmem:[%s3097] sm:$0xff]
          %v3099 = vld [vmem:[%s3097 + $0x8] sm:$0xff]
          %v3100 = vld [vmem:[%s3097 + $0x10] sm:$0xff]
          %v3101 = vld [vmem:[%s3097 + $0x18] sm:$0xff]
          %v3102 = vld [vmem:[%s3097 + $0x20] sm:$0xff]
          %v3103 = vld [vmem:[%s3097 + $0x28] sm:$0xff]
          %v3104 = vld [vmem:[%s3097 + $0x30] sm:$0xff]
          %v3105 = vld [vmem:[%s3097 + $0x38] sm:$0xff]
          %v3106 = vld [vmem:[%s3097 + $0x40] sm:$0xff]
          %v3107 = vld [vmem:[%s3097 + $0x48] sm:$0xff]
          %v3108 = vld [vmem:[%s3097 + $0x50] sm:$0xff]
          %v3109 = vld [vmem:[%s3097 + $0x58] sm:$0xff]
          %v3110 = vld [vmem:[%s3097 + $0x60] sm:$0xff]
          %v3111 = vld [vmem:[%s3097 + $0x68] sm:$0xff]
          %v3112 = vld [vmem:[%s3097 + $0x70] sm:$0xff]
          %v3113 = vld [vmem:[%s3097 + $0x78] sm:$0xff]
          %v3114 = vld [vmem:[%s3097 + $0x80] sm:$0xff]
          %v3115 = vld [vmem:[%s3097 + $0x88] sm:$0xff]
          %v3116 = vld [vmem:[%s3097 + $0x90] sm:$0xff]
          %v3117 = vld [vmem:[%s3097 + $0x98] sm:$0xff]
          %v3118 = vld [vmem:[%s3097 + $0xa0] sm:$0xff]
          %v3119 = vld [vmem:[%s3097 + $0xa8] sm:$0xff]
          %v3120 = vld [vmem:[%s3097 + $0xb0] sm:$0xff]
          %v3121 = vld [vmem:[%s3097 + $0xb8] sm:$0xff]
          %v3122 = vld [vmem:[%s3097 + $0xc0] sm:$0xff]
          %v3123 = vld [vmem:[%s3097 + $0xc8] sm:$0xff]
          %v3124 = vld [vmem:[%s3097 + $0xd0] sm:$0xff]
          %v3125 = vld [vmem:[%s3097 + $0xd8] sm:$0xff]
          %v3126 = vld [vmem:[%s3097 + $0xe0] sm:$0xff]
          %v3127 = vld [vmem:[%s3097 + $0xe8] sm:$0xff]
          %v3128 = vld [vmem:[%s3097 + $0xf0] sm:$0xff]
          %v3129 = vld [vmem:[%s3097 + $0xf8] sm:$0xff]
          %v3130 = vld [vmem:[%s3097 + $0x100] sm:$0xff]
          %v3131 = vld [vmem:[%s3097 + $0x108] sm:$0xff]
          %v3132 = vld [vmem:[%s3097 + $0x110] sm:$0xff]
          %v3133 = vld [vmem:[%s3097 + $0x118] sm:$0xff]
          %v3134 = vld [vmem:[%s3097 + $0x120] sm:$0xff]
          %v3135 = vld [vmem:[%s3097 + $0x128] sm:$0xff]
          %v3136 = vld [vmem:[%s3097 + $0x130] sm:$0xff]
          %v3137 = vld [vmem:[%s3097 + $0x138] sm:$0xff]
          %v3138 = vld [vmem:[%s3097 + $0x140] sm:$0xff]
          %v3139 = vld [vmem:[%s3097 + $0x148] sm:$0xff]
          %v3140 = vld [vmem:[%s3097 + $0x150] sm:$0xff]
          %v3141 = vld [vmem:[%s3097 + $0x158] sm:$0xff]
          %v3142 = vld [vmem:[%s3097 + $0x160] sm:$0xff]
          %v3143 = vld [vmem:[%s3097 + $0x168] sm:$0xff]
          %v3144 = vld [vmem:[%s3097 + $0x170] sm:$0xff]
          %v3145 = vld [vmem:[%s3097 + $0x178] sm:$0xff]
          %v3146 = vld [vmem:[%s3097 + $0x180] sm:$0xff]
          %v3147 = vld [vmem:[%s3097 + $0x188] sm:$0xff]
          %v3148 = vld [vmem:[%s3097 + $0x190] sm:$0xff]
          %v3149 = vld [vmem:[%s3097 + $0x198] sm:$0xff]
          %v3150 = vld [vmem:[%s3097 + $0x1a0] sm:$0xff]
          %v3151 = vld [vmem:[%s3097 + $0x1a8] sm:$0xff]
          %v3152 = vld [vmem:[%s3097 + $0x1b0] sm:$0xff]
          %v3153 = vld [vmem:[%s3097 + $0x1b8] sm:$0xff]
          %v3154 = vld [vmem:[%s3097 + $0x1c0] sm:$0xff]
          %v3155 = vld [vmem:[%s3097 + $0x1c8] sm:$0xff]
          %v3156 = vld [vmem:[%s3097 + $0x1d0] sm:$0xff]
          %v3157 = vld [vmem:[%s3097 + $0x1d8] sm:$0xff]
          %v3158 = vld [vmem:[%s3097 + $0x1e0] sm:$0xff]
          %v3159 = vld [vmem:[%s3097 + $0x1e8] sm:$0xff]
          %v3160 = vld [vmem:[%s3097 + $0x1f0] sm:$0xff]
          %v3161 = vld [vmem:[%s3097 + $0x1f8] sm:$0xff]
          %v3162 = vld [vmem:[%s3097 + $0x200] sm:$0xff]
          %v3163 = vld [vmem:[%s3097 + $0x208] sm:$0xff]
          %v3164 = vld [vmem:[%s3097 + $0x210] sm:$0xff]
          %v3165 = vld [vmem:[%s3097 + $0x218] sm:$0xff]
          %v3166 = vld [vmem:[%s3097 + $0x220] sm:$0xff]
          %v3167 = vld [vmem:[%s3097 + $0x228] sm:$0xff]
          %v3168 = vld [vmem:[%s3097 + $0x230] sm:$0xff]
          %v3169 = vld [vmem:[%s3097 + $0x238] sm:$0xff]
          %v3170 = vld [vmem:[%s3097 + $0x240] sm:$0xff]
          %v3171 = vld [vmem:[%s3097 + $0x248] sm:$0xff]
          %v3172 = vld [vmem:[%s3097 + $0x250] sm:$0xff]
          %v3173 = vld [vmem:[%s3097 + $0x258] sm:$0xff]
          %v3174 = vld [vmem:[%s3097 + $0x260] sm:$0xff]
          %v3175 = vld [vmem:[%s3097 + $0x268] sm:$0xff]
          %v3176 = vld [vmem:[%s3097 + $0x270] sm:$0xff]
          %v3177 = vld [vmem:[%s3097 + $0x278] sm:$0xff]
          %v3178 = vld [vmem:[%s3097 + $0x280] sm:$0xff]
          %v3179 = vld [vmem:[%s3097 + $0x288] sm:$0xff]
          %v3180 = vld [vmem:[%s3097 + $0x290] sm:$0xff]
          %v3181 = vld [vmem:[%s3097 + $0x298] sm:$0xff]
          %v3182 = vld [vmem:[%s3097 + $0x2a0] sm:$0xff]
          %v3183 = vld [vmem:[%s3097 + $0x2a8] sm:$0xff]
          %v3184 = vld [vmem:[%s3097 + $0x2b0] sm:$0xff]
          %v3185 = vld [vmem:[%s3097 + $0x2b8] sm:$0xff]
          %v3186 = vld [vmem:[%s3097 + $0x2c0] sm:$0xff]
          %v3187 = vld [vmem:[%s3097 + $0x2c8] sm:$0xff]
          %v3188 = vld [vmem:[%s3097 + $0x2d0] sm:$0xff]
          %v3189 = vld [vmem:[%s3097 + $0x2d8] sm:$0xff]
          %v3190 = vld [vmem:[%s3097 + $0x2e0] sm:$0xff]
          %v3191 = vld [vmem:[%s3097 + $0x2e8] sm:$0xff]
          %v3192 = vld [vmem:[%s3097 + $0x2f0] sm:$0xff]
          %v3193 = vld [vmem:[%s3097 + $0x2f8] sm:$0xff]
          %v3194 = vld [vmem:[%s3097 + $0x300] sm:$0xff]
          %v3195 = vld [vmem:[%s3097 + $0x308] sm:$0xff]
          %v3196 = vld [vmem:[%s3097 + $0x310] sm:$0xff]
          %v3197 = vld [vmem:[%s3097 + $0x318] sm:$0xff]
          %v3198 = vld [vmem:[%s3097 + $0x320] sm:$0xff]
          %v3199 = vld [vmem:[%s3097 + $0x328] sm:$0xff]
          %v3200 = vld [vmem:[%s3097 + $0x330] sm:$0xff]
          %v3201 = vld [vmem:[%s3097 + $0x338] sm:$0xff]
          %v3202 = vld [vmem:[%s3097 + $0x340] sm:$0xff]
          %v3203 = vld [vmem:[%s3097 + $0x348] sm:$0xff]
          %v3204 = vld [vmem:[%s3097 + $0x350] sm:$0xff]
          %v3205 = vld [vmem:[%s3097 + $0x358] sm:$0xff]
          %v3206 = vld [vmem:[%s3097 + $0x360] sm:$0xff]
          %v3207 = vld [vmem:[%s3097 + $0x368] sm:$0xff]
          %v3208 = vld [vmem:[%s3097 + $0x370] sm:$0xff]
          %v3209 = vld [vmem:[%s3097 + $0x378] sm:$0xff]
          %v3210 = vld [vmem:[%s3097 + $0x380] sm:$0xff]
          %v3211 = vld [vmem:[%s3097 + $0x388] sm:$0xff]
          %v3212 = vld [vmem:[%s3097 + $0x390] sm:$0xff]
          %v3213 = vld [vmem:[%s3097 + $0x398] sm:$0xff]
          %v3214 = vld [vmem:[%s3097 + $0x3a0] sm:$0xff]
          %v3215 = vld [vmem:[%s3097 + $0x3a8] sm:$0xff]
          %v3216 = vld [vmem:[%s3097 + $0x3b0] sm:$0xff]
          %v3217 = vld [vmem:[%s3097 + $0x3b8] sm:$0xff]
          %v3218 = vld [vmem:[%s3097 + $0x3c0] sm:$0xff]
          %v3219 = vld [vmem:[%s3097 + $0x3c8] sm:$0xff]
          %v3220 = vld [vmem:[%s3097 + $0x3d0] sm:$0xff]
          %v3221 = vld [vmem:[%s3097 + $0x3d8] sm:$0xff]
          %v3222 = vld [vmem:[%s3097 + $0x3e0] sm:$0xff]
          %v3223 = vld [vmem:[%s3097 + $0x3e8] sm:$0xff]
          %v3224 = vld [vmem:[%s3097 + $0x3f0] sm:$0xff]
          %v3225 = vld [vmem:[%s3097 + $0x3f8] sm:$0xff]
          %v3226 = vld [vmem:[#allocation2] sm:$0xff]
          %v3227 = vld [vmem:[#allocation2 + $0x8] sm:$0xff]
          %v3228 = vld [vmem:[#allocation2 + $0x10] sm:$0xff]
          %v3229 = vld [vmem:[#allocation2 + $0x18] sm:$0xff]
          %v3230 = vld [vmem:[#allocation2 + $0x20] sm:$0xff]
          %v3231 = vld [vmem:[#allocation2 + $0x28] sm:$0xff]
          %v3232 = vld [vmem:[#allocation2 + $0x30] sm:$0xff]
          %v3233 = vld [vmem:[#allocation2 + $0x38] sm:$0xff]
          %v3234 = vld [vmem:[#allocation2 + $0x40] sm:$0xff]
          %v3235 = vld [vmem:[#allocation2 + $0x48] sm:$0xff]
          %v3236 = vld [vmem:[#allocation2 + $0x50] sm:$0xff]
          %v3237 = vld [vmem:[#allocation2 + $0x58] sm:$0xff]
          %v3238 = vld [vmem:[#allocation2 + $0x60] sm:$0xff]
          %v3239 = vld [vmem:[#allocation2 + $0x68] sm:$0xff]
          %v3240 = vld [vmem:[#allocation2 + $0x70] sm:$0xff]
          %v3241 = vld [vmem:[#allocation2 + $0x78] sm:$0xff]
          %v3242 = vld [vmem:[#allocation2 + $0x80] sm:$0xff]
          %v3243 = vld [vmem:[#allocation2 + $0x88] sm:$0xff]
          %v3244 = vld [vmem:[#allocation2 + $0x90] sm:$0xff]
          %v3245 = vld [vmem:[#allocation2 + $0x98] sm:$0xff]
          %v3246 = vld [vmem:[#allocation2 + $0xa0] sm:$0xff]
          %v3247 = vld [vmem:[#allocation2 + $0xa8] sm:$0xff]
          %v3248 = vld [vmem:[#allocation2 + $0xb0] sm:$0xff]
          %v3249 = vld [vmem:[#allocation2 + $0xb8] sm:$0xff]
          %v3250 = vld [vmem:[#allocation2 + $0xc0] sm:$0xff]
          %v3251 = vld [vmem:[#allocation2 + $0xc8] sm:$0xff]
          %v3252 = vld [vmem:[#allocation2 + $0xd0] sm:$0xff]
          %v3253 = vld [vmem:[#allocation2 + $0xd8] sm:$0xff]
          %v3254 = vld [vmem:[#allocation2 + $0xe0] sm:$0xff]
          %v3255 = vld [vmem:[#allocation2 + $0xe8] sm:$0xff]
          %v3256 = vld [vmem:[#allocation2 + $0xf0] sm:$0xff]
          %v3257 = vld [vmem:[#allocation2 + $0xf8] sm:$0xff]
          %v3258 = vld [vmem:[#allocation2 + $0x100] sm:$0xff]
          %v3259 = vld [vmem:[#allocation2 + $0x108] sm:$0xff]
          %v3260 = vld [vmem:[#allocation2 + $0x110] sm:$0xff]
          %v3261 = vld [vmem:[#allocation2 + $0x118] sm:$0xff]
          %v3262 = vld [vmem:[#allocation2 + $0x120] sm:$0xff]
          %v3263 = vld [vmem:[#allocation2 + $0x128] sm:$0xff]
          %v3264 = vld [vmem:[#allocation2 + $0x130] sm:$0xff]
          %v3265 = vld [vmem:[#allocation2 + $0x138] sm:$0xff]
          %v3266 = vld [vmem:[#allocation2 + $0x140] sm:$0xff]
          %v3267 = vld [vmem:[#allocation2 + $0x148] sm:$0xff]
          %v3268 = vld [vmem:[#allocation2 + $0x150] sm:$0xff]
          %v3269 = vld [vmem:[#allocation2 + $0x158] sm:$0xff]
          %v3270 = vld [vmem:[#allocation2 + $0x160] sm:$0xff]
          %v3271 = vld [vmem:[#allocation2 + $0x168] sm:$0xff]
          %v3272 = vld [vmem:[#allocation2 + $0x170] sm:$0xff]
          %v3273 = vld [vmem:[#allocation2 + $0x178] sm:$0xff]
          %v3274 = vld [vmem:[#allocation2 + $0x180] sm:$0xff]
          %v3275 = vld [vmem:[#allocation2 + $0x188] sm:$0xff]
          %v3276 = vld [vmem:[#allocation2 + $0x190] sm:$0xff]
          %v3277 = vld [vmem:[#allocation2 + $0x198] sm:$0xff]
          %v3278 = vld [vmem:[#allocation2 + $0x1a0] sm:$0xff]
          %v3279 = vld [vmem:[#allocation2 + $0x1a8] sm:$0xff]
          %v3280 = vld [vmem:[#allocation2 + $0x1b0] sm:$0xff]
          %v3281 = vld [vmem:[#allocation2 + $0x1b8] sm:$0xff]
          %v3282 = vld [vmem:[#allocation2 + $0x1c0] sm:$0xff]
          %v3283 = vld [vmem:[#allocation2 + $0x1c8] sm:$0xff]
          %v3284 = vld [vmem:[#allocation2 + $0x1d0] sm:$0xff]
          %v3285 = vld [vmem:[#allocation2 + $0x1d8] sm:$0xff]
          %v3286 = vld [vmem:[#allocation2 + $0x1e0] sm:$0xff]
          %v3287 = vld [vmem:[#allocation2 + $0x1e8] sm:$0xff]
          %v3288 = vld [vmem:[#allocation2 + $0x1f0] sm:$0xff]
          %v3289 = vld [vmem:[#allocation2 + $0x1f8] sm:$0xff]
          %v3290 = vld [vmem:[#allocation2 + $0x200] sm:$0xff]
          %v3291 = vld [vmem:[#allocation2 + $0x208] sm:$0xff]
          %v3292 = vld [vmem:[#allocation2 + $0x210] sm:$0xff]
          %v3293 = vld [vmem:[#allocation2 + $0x218] sm:$0xff]
          %v3294 = vld [vmem:[#allocation2 + $0x220] sm:$0xff]
          %v3295 = vld [vmem:[#allocation2 + $0x228] sm:$0xff]
          %v3296 = vld [vmem:[#allocation2 + $0x230] sm:$0xff]
          %v3297 = vld [vmem:[#allocation2 + $0x238] sm:$0xff]
          %v3298 = vld [vmem:[#allocation2 + $0x240] sm:$0xff]
          %v3299 = vld [vmem:[#allocation2 + $0x248] sm:$0xff]
          %v3300 = vld [vmem:[#allocation2 + $0x250] sm:$0xff]
          %v3301 = vld [vmem:[#allocation2 + $0x258] sm:$0xff]
          %v3302 = vld [vmem:[#allocation2 + $0x260] sm:$0xff]
          %v3303 = vld [vmem:[#allocation2 + $0x268] sm:$0xff]
          %v3304 = vld [vmem:[#allocation2 + $0x270] sm:$0xff]
          %v3305 = vld [vmem:[#allocation2 + $0x278] sm:$0xff]
          %v3306 = vld [vmem:[#allocation2 + $0x280] sm:$0xff]
          %v3307 = vld [vmem:[#allocation2 + $0x288] sm:$0xff]
          %v3308 = vld [vmem:[#allocation2 + $0x290] sm:$0xff]
          %v3309 = vld [vmem:[#allocation2 + $0x298] sm:$0xff]
          %v3310 = vld [vmem:[#allocation2 + $0x2a0] sm:$0xff]
          %v3311 = vld [vmem:[#allocation2 + $0x2a8] sm:$0xff]
          %v3312 = vld [vmem:[#allocation2 + $0x2b0] sm:$0xff]
          %v3313 = vld [vmem:[#allocation2 + $0x2b8] sm:$0xff]
          %v3314 = vld [vmem:[#allocation2 + $0x2c0] sm:$0xff]
          %v3315 = vld [vmem:[#allocation2 + $0x2c8] sm:$0xff]
          %v3316 = vld [vmem:[#allocation2 + $0x2d0] sm:$0xff]
          %v3317 = vld [vmem:[#allocation2 + $0x2d8] sm:$0xff]
          %v3318 = vld [vmem:[#allocation2 + $0x2e0] sm:$0xff]
          %v3319 = vld [vmem:[#allocation2 + $0x2e8] sm:$0xff]
          %v3320 = vld [vmem:[#allocation2 + $0x2f0] sm:$0xff]
          %v3321 = vld [vmem:[#allocation2 + $0x2f8] sm:$0xff]
          %v3322 = vld [vmem:[#allocation2 + $0x300] sm:$0xff]
          %v3323 = vld [vmem:[#allocation2 + $0x308] sm:$0xff]
          %v3324 = vld [vmem:[#allocation2 + $0x310] sm:$0xff]
          %v3325 = vld [vmem:[#allocation2 + $0x318] sm:$0xff]
          %v3326 = vld [vmem:[#allocation2 + $0x320] sm:$0xff]
          %v3327 = vld [vmem:[#allocation2 + $0x328] sm:$0xff]
          %v3328 = vld [vmem:[#allocation2 + $0x330] sm:$0xff]
          %v3329 = vld [vmem:[#allocation2 + $0x338] sm:$0xff]
          %v3330 = vld [vmem:[#allocation2 + $0x340] sm:$0xff]
          %v3331 = vld [vmem:[#allocation2 + $0x348] sm:$0xff]
          %v3332 = vld [vmem:[#allocation2 + $0x350] sm:$0xff]
          %v3333 = vld [vmem:[#allocation2 + $0x358] sm:$0xff]
          %v3334 = vld [vmem:[#allocation2 + $0x360] sm:$0xff]
          %v3335 = vld [vmem:[#allocation2 + $0x368] sm:$0xff]
          %v3336 = vld [vmem:[#allocation2 + $0x370] sm:$0xff]
          %v3337 = vld [vmem:[#allocation2 + $0x378] sm:$0xff]
          %v3338 = vld [vmem:[#allocation2 + $0x380] sm:$0xff]
          %v3339 = vld [vmem:[#allocation2 + $0x388] sm:$0xff]
          %v3340 = vld [vmem:[#allocation2 + $0x390] sm:$0xff]
          %v3341 = vld [vmem:[#allocation2 + $0x398] sm:$0xff]
          %v3342 = vld [vmem:[#allocation2 + $0x3a0] sm:$0xff]
          %v3343 = vld [vmem:[#allocation2 + $0x3a8] sm:$0xff]
          %v3344 = vld [vmem:[#allocation2 + $0x3b0] sm:$0xff]
          %v3345 = vld [vmem:[#allocation2 + $0x3b8] sm:$0xff]
          %v3346 = vld [vmem:[#allocation2 + $0x3c0] sm:$0xff]
          %v3347 = vld [vmem:[#allocation2 + $0x3c8] sm:$0xff]
          %v3348 = vld [vmem:[#allocation2 + $0x3d0] sm:$0xff]
          %v3349 = vld [vmem:[#allocation2 + $0x3d8] sm:$0xff]
          %v3350 = vld [vmem:[#allocation2 + $0x3e0] sm:$0xff]
          %v3351 = vld [vmem:[#allocation2 + $0x3e8] sm:$0xff]
          %v3352 = vld [vmem:[#allocation2 + $0x3f0] sm:$0xff]
          %v3353 = vld [vmem:[#allocation2 + $0x3f8] sm:$0xff]
          %v3354 = vmul.f32 %v3226, 0.9
          %v3355 = vmul.f32 %v3227, 0.9
          %v3356 = vmul.f32 %v3228, 0.9
          %v3357 = vmul.f32 %v3229, 0.9
          %v3358 = vmul.f32 %v3230, 0.9
          %v3359 = vmul.f32 %v3231, 0.9
          %v3360 = vmul.f32 %v3232, 0.9
          %v3361 = vmul.f32 %v3233, 0.9
          %v3362 = vmul.f32 %v3234, 0.9
          %v3363 = vmul.f32 %v3235, 0.9
          %v3364 = vmul.f32 %v3236, 0.9
          %v3365 = vmul.f32 %v3237, 0.9
          %v3366 = vmul.f32 %v3238, 0.9
          %v3367 = vmul.f32 %v3239, 0.9
          %v3368 = vmul.f32 %v3240, 0.9
          %v3369 = vmul.f32 %v3241, 0.9
          %v3370 = vmul.f32 %v3242, 0.9
          %v3371 = vmul.f32 %v3243, 0.9
          %v3372 = vmul.f32 %v3244, 0.9
          %v3373 = vmul.f32 %v3245, 0.9
          %v3374 = vmul.f32 %v3246, 0.9
          %v3375 = vmul.f32 %v3247, 0.9
          %v3376 = vmul.f32 %v3248, 0.9
          %v3377 = vmul.f32 %v3249, 0.9
          %v3378 = vmul.f32 %v3250, 0.9
          %v3379 = vmul.f32 %v3251, 0.9
          %v3380 = vmul.f32 %v3252, 0.9
          %v3381 = vmul.f32 %v3253, 0.9
          %v3382 = vmul.f32 %v3254, 0.9
          %v3383 = vmul.f32 %v3255, 0.9
          %v3384 = vmul.f32 %v3256, 0.9
          %v3385 = vmul.f32 %v3257, 0.9
          %v3386 = vmul.f32 %v3258, 0.9
          %v3387 = vmul.f32 %v3259, 0.9
          %v3388 = vmul.f32 %v3260, 0.9
          %v3389 = vmul.f32 %v3261, 0.9
          %v3390 = vmul.f32 %v3262, 0.9
          %v3391 = vmul.f32 %v3263, 0.9
          %v3392 = vmul.f32 %v3264, 0.9
          %v3393 = vmul.f32 %v3265, 0.9
          %v3394 = vmul.f32 %v3266, 0.9
          %v3395 = vmul.f32 %v3267, 0.9
          %v3396 = vmul.f32 %v3268, 0.9
          %v3397 = vmul.f32 %v3269, 0.9
          %v3398 = vmul.f32 %v3270, 0.9
          %v3399 = vmul.f32 %v3271, 0.9
          %v3400 = vmul.f32 %v3272, 0.9
          %v3401 = vmul.f32 %v3273, 0.9
          %v3402 = vmul.f32 %v3274, 0.9
          %v3403 = vmul.f32 %v3275, 0.9
          %v3404 = vmul.f32 %v3276, 0.9
          %v3405 = vmul.f32 %v3277, 0.9
          %v3406 = vmul.f32 %v3278, 0.9
          %v3407 = vmul.f32 %v3279, 0.9
          %v3408 = vmul.f32 %v3280, 0.9
          %v3409 = vmul.f32 %v3281, 0.9
          %v3410 = vmul.f32 %v3282, 0.9
          %v3411 = vmul.f32 %v3283, 0.9
          %v3412 = vmul.f32 %v3284, 0.9
          %v3413 = vmul.f32 %v3285, 0.9
          %v3414 = vmul.f32 %v3286, 0.9
          %v3415 = vmul.f32 %v3287, 0.9
          %v3416 = vmul.f32 %v3288, 0.9
          %v3417 = vmul.f32 %v3289, 0.9
          %v3418 = vmul.f32 %v3290, 0.9
          %v3419 = vmul.f32 %v3291, 0.9
          %v3420 = vmul.f32 %v3292, 0.9
          %v3421 = vmul.f32 %v3293, 0.9
          %v3422 = vmul.f32 %v3294, 0.9
          %v3423 = vmul.f32 %v3295, 0.9
          %v3424 = vmul.f32 %v3296, 0.9
          %v3425 = vmul.f32 %v3297, 0.9
          %v3426 = vmul.f32 %v3298, 0.9
          %v3427 = vmul.f32 %v3299, 0.9
          %v3428 = vmul.f32 %v3300, 0.9
          %v3429 = vmul.f32 %v3301, 0.9
          %v3430 = vmul.f32 %v3302, 0.9
          %v3431 = vmul.f32 %v3303, 0.9
          %v3432 = vmul.f32 %v3304, 0.9
          %v3433 = vmul.f32 %v3305, 0.9
          %v3434 = vmul.f32 %v3306, 0.9
          %v3435 = vmul.f32 %v3307, 0.9
          %v3436 = vmul.f32 %v3308, 0.9
          %v3437 = vmul.f32 %v3309, 0.9
          %v3438 = vmul.f32 %v3310, 0.9
          %v3439 = vmul.f32 %v3311, 0.9
          %v3440 = vmul.f32 %v3312, 0.9
          %v3441 = vmul.f32 %v3313, 0.9
          %v3442 = vmul.f32 %v3314, 0.9
          %v3443 = vmul.f32 %v3315, 0.9
          %v3444 = vmul.f32 %v3316, 0.9
          %v3445 = vmul.f32 %v3317, 0.9
          %v3446 = vmul.f32 %v3318, 0.9
          %v3447 = vmul.f32 %v3319, 0.9
          %v3448 = vmul.f32 %v3320, 0.9
          %v3449 = vmul.f32 %v3321, 0.9
          %v3450 = vmul.f32 %v3322, 0.9
          %v3451 = vmul.f32 %v3323, 0.9
          %v3452 = vmul.f32 %v3324, 0.9
          %v3453 = vmul.f32 %v3325, 0.9
          %v3454 = vmul.f32 %v3326, 0.9
          %v3455 = vmul.f32 %v3327, 0.9
          %v3456 = vmul.f32 %v3328, 0.9
          %v3457 = vmul.f32 %v3329, 0.9
          %v3458 = vmul.f32 %v3330, 0.9
          %v3459 = vmul.f32 %v3331, 0.9
          %v3460 = vmul.f32 %v3332, 0.9
          %v3461 = vmul.f32 %v3333, 0.9
          %v3462 = vmul.f32 %v3334, 0.9
          %v3463 = vmul.f32 %v3335, 0.9
          %v3464 = vmul.f32 %v3336, 0.9
          %v3465 = vmul.f32 %v3337, 0.9
          %v3466 = vmul.f32 %v3338, 0.9
          %v3467 = vmul.f32 %v3339, 0.9
          %v3468 = vmul.f32 %v3340, 0.9
          %v3469 = vmul.f32 %v3341, 0.9
          %v3470 = vmul.f32 %v3342, 0.9
          %v3471 = vmul.f32 %v3343, 0.9
          %v3472 = vmul.f32 %v3344, 0.9
          %v3473 = vmul.f32 %v3345, 0.9
          %v3474 = vmul.f32 %v3346, 0.9
          %v3475 = vmul.f32 %v3347, 0.9
          %v3476 = vmul.f32 %v3348, 0.9
          %v3477 = vmul.f32 %v3349, 0.9
          %v3478 = vmul.f32 %v3350, 0.9
          %v3479 = vmul.f32 %v3351, 0.9
          %v3480 = vmul.f32 %v3352, 0.9
          %v3481 = vmul.f32 %v3353, 0.9
          %v3482 = vmul.f32 %v3098, 0.1
          %v3483 = vmul.f32 %v3099, 0.1
          %v3484 = vmul.f32 %v3100, 0.1
          %v3485 = vmul.f32 %v3101, 0.1
          %v3486 = vmul.f32 %v3102, 0.1
          %v3487 = vmul.f32 %v3103, 0.1
          %v3488 = vmul.f32 %v3104, 0.1
          %v3489 = vmul.f32 %v3105, 0.1
          %v3490 = vmul.f32 %v3106, 0.1
          %v3491 = vmul.f32 %v3107, 0.1
          %v3492 = vmul.f32 %v3108, 0.1
          %v3493 = vmul.f32 %v3109, 0.1
          %v3494 = vmul.f32 %v3110, 0.1
          %v3495 = vmul.f32 %v3111, 0.1
          %v3496 = vmul.f32 %v3112, 0.1
          %v3497 = vmul.f32 %v3113, 0.1
          %v3498 = vmul.f32 %v3114, 0.1
          %v3499 = vmul.f32 %v3115, 0.1
          %v3500 = vmul.f32 %v3116, 0.1
          %v3501 = vmul.f32 %v3117, 0.1
          %v3502 = vmul.f32 %v3118, 0.1
          %v3503 = vmul.f32 %v3119, 0.1
          %v3504 = vmul.f32 %v3120, 0.1
          %v3505 = vmul.f32 %v3121, 0.1
          %v3506 = vmul.f32 %v3122, 0.1
          %v3507 = vmul.f32 %v3123, 0.1
          %v3508 = vmul.f32 %v3124, 0.1
          %v3509 = vmul.f32 %v3125, 0.1
          %v3510 = vmul.f32 %v3126, 0.1
          %v3511 = vmul.f32 %v3127, 0.1
          %v3512 = vmul.f32 %v3128, 0.1
          %v3513 = vmul.f32 %v3129, 0.1
          %v3514 = vmul.f32 %v3130, 0.1
          %v3515 = vmul.f32 %v3131, 0.1
          %v3516 = vmul.f32 %v3132, 0.1
          %v3517 = vmul.f32 %v3133, 0.1
          %v3518 = vmul.f32 %v3134, 0.1
          %v3519 = vmul.f32 %v3135, 0.1
          %v3520 = vmul.f32 %v3136, 0.1
          %v3521 = vmul.f32 %v3137, 0.1
          %v3522 = vmul.f32 %v3138, 0.1
          %v3523 = vmul.f32 %v3139, 0.1
          %v3524 = vmul.f32 %v3140, 0.1
          %v3525 = vmul.f32 %v3141, 0.1
          %v3526 = vmul.f32 %v3142, 0.1
          %v3527 = vmul.f32 %v3143, 0.1
          %v3528 = vmul.f32 %v3144, 0.1
          %v3529 = vmul.f32 %v3145, 0.1
          %v3530 = vmul.f32 %v3146, 0.1
          %v3531 = vmul.f32 %v3147, 0.1
          %v3532 = vmul.f32 %v3148, 0.1
          %v3533 = vmul.f32 %v3149, 0.1
          %v3534 = vmul.f32 %v3150, 0.1
          %v3535 = vmul.f32 %v3151, 0.1
          %v3536 = vmul.f32 %v3152, 0.1
          %v3537 = vmul.f32 %v3153, 0.1
          %v3538 = vmul.f32 %v3154, 0.1
          %v3539 = vmul.f32 %v3155, 0.1
          %v3540 = vmul.f32 %v3156, 0.1
          %v3541 = vmul.f32 %v3157, 0.1
          %v3542 = vmul.f32 %v3158, 0.1
          %v3543 = vmul.f32 %v3159, 0.1
          %v3544 = vmul.f32 %v3160, 0.1
          %v3545 = vmul.f32 %v3161, 0.1
          %v3546 = vmul.f32 %v3162, 0.1
          %v3547 = vmul.f32 %v3163, 0.1
          %v3548 = vmul.f32 %v3164, 0.1
          %v3549 = vmul.f32 %v3165, 0.1
          %v3550 = vmul.f32 %v3166, 0.1
          %v3551 = vmul.f32 %v3167, 0.1
          %v3552 = vmul.f32 %v3168, 0.1
          %v3553 = vmul.f32 %v3169, 0.1
          %v3554 = vmul.f32 %v3170, 0.1
          %v3555 = vmul.f32 %v3171, 0.1
          %v3556 = vmul.f32 %v3172, 0.1
          %v3557 = vmul.f32 %v3173, 0.1
          %v3558 = vmul.f32 %v3174, 0.1
          %v3559 = vmul.f32 %v3175, 0.1
          %v3560 = vmul.f32 %v3176, 0.1
          %v3561 = vmul.f32 %v3177, 0.1
          %v3562 = vmul.f32 %v3178, 0.1
          %v3563 = vmul.f32 %v3179, 0.1
          %v3564 = vmul.f32 %v3180, 0.1
          %v3565 = vmul.f32 %v3181, 0.1
          %v3566 = vmul.f32 %v3182, 0.1
          %v3567 = vmul.f32 %v3183, 0.1
          %v3568 = vmul.f32 %v3184, 0.1
          %v3569 = vmul.f32 %v3185, 0.1
          %v3570 = vmul.f32 %v3186, 0.1
          %v3571 = vmul.f32 %v3187, 0.1
          %v3572 = vmul.f32 %v3188, 0.1
          %v3573 = vmul.f32 %v3189, 0.1
          %v3574 = vmul.f32 %v3190, 0.1
          %v3575 = vmul.f32 %v3191, 0.1
          %v3576 = vmul.f32 %v3192, 0.1
          %v3577 = vmul.f32 %v3193, 0.1
          %v3578 = vmul.f32 %v3194, 0.1
          %v3579 = vmul.f32 %v3195, 0.1
          %v3580 = vmul.f32 %v3196, 0.1
          %v3581 = vmul.f32 %v3197, 0.1
          %v3582 = vmul.f32 %v3198, 0.1
          %v3583 = vmul.f32 %v3199, 0.1
          %v3584 = vmul.f32 %v3200, 0.1
          %v3585 = vmul.f32 %v3201, 0.1
          %v3586 = vmul.f32 %v3202, 0.1
          %v3587 = vmul.f32 %v3203, 0.1
          %v3588 = vmul.f32 %v3204, 0.1
          %v3589 = vmul.f32 %v3205, 0.1
          %v3590 = vmul.f32 %v3206, 0.1
          %v3591 = vmul.f32 %v3207, 0.1
          %v3592 = vmul.f32 %v3208, 0.1
          %v3593 = vmul.f32 %v3209, 0.1
          %v3594 = vmul.f32 %v3210, 0.1
          %v3595 = vmul.f32 %v3211, 0.1
          %v3596 = vmul.f32 %v3212, 0.1
          %v3597 = vmul.f32 %v3213, 0.1
          %v3598 = vmul.f32 %v3214, 0.1
          %v3599 = vmul.f32 %v3215, 0.1
          %v3600 = vmul.f32 %v3216, 0.1
          %v3601 = vmul.f32 %v3217, 0.1
          %v3602 = vmul.f32 %v3218, 0.1
          %v3603 = vmul.f32 %v3219, 0.1
          %v3604 = vmul.f32 %v3220, 0.1
          %v3605 = vmul.f32 %v3221, 0.1
          %v3606 = vmul.f32 %v3222, 0.1
          %v3607 = vmul.f32 %v3223, 0.1
          %v3608 = vmul.f32 %v3224, 0.1
          %v3609 = vmul.f32 %v3225, 0.1
          %v3610 = vadd.f32 %v3354, %v3482
          %v3611 = vadd.f32 %v3355, %v3483
          %v3612 = vadd.f32 %v3356, %v3484
          %v3613 = vadd.f32 %v3357, %v3485
          %v3614 = vadd.f32 %v3358, %v3486
          %v3615 = vadd.f32 %v3359, %v3487
          %v3616 = vadd.f32 %v3360, %v3488
          %v3617 = vadd.f32 %v3361, %v3489
          %v3618 = vadd.f32 %v3362, %v3490
          %v3619 = vadd.f32 %v3363, %v3491
          %v3620 = vadd.f32 %v3364, %v3492
          %v3621 = vadd.f32 %v3365, %v3493
          %v3622 = vadd.f32 %v3366, %v3494
          %v3623 = vadd.f32 %v3367, %v3495
          %v3624 = vadd.f32 %v3368, %v3496
          %v3625 = vadd.f32 %v3369, %v3497
          %v3626 = vadd.f32 %v3370, %v3498
          %v3627 = vadd.f32 %v3371, %v3499
          %v3628 = vadd.f32 %v3372, %v3500
          %v3629 = vadd.f32 %v3373, %v3501
          %v3630 = vadd.f32 %v3374, %v3502
          %v3631 = vadd.f32 %v3375, %v3503
          %v3632 = vadd.f32 %v3376, %v3504
          %v3633 = vadd.f32 %v3377, %v3505
          %v3634 = vadd.f32 %v3378, %v3506
          %v3635 = vadd.f32 %v3379, %v3507
          %v3636 = vadd.f32 %v3380, %v3508
          %v3637 = vadd.f32 %v3381, %v3509
          %v3638 = vadd.f32 %v3382, %v3510
          %v3639 = vadd.f32 %v3383, %v3511
          %v3640 = vadd.f32 %v3384, %v3512
          %v3641 = vadd.f32 %v3385, %v3513
          %v3642 = vadd.f32 %v3386, %v3514
          %v3643 = vadd.f32 %v3387, %v3515
          %v3644 = vadd.f32 %v3388, %v3516
          %v3645 = vadd.f32 %v3389, %v3517
          %v3646 = vadd.f32 %v3390, %v3518
          %v3647 = vadd.f32 %v3391, %v3519
          %v3648 = vadd.f32 %v3392, %v3520
          %v3649 = vadd.f32 %v3393, %v3521
          %v3650 = vadd.f32 %v3394, %v3522
          %v3651 = vadd.f32 %v3395, %v3523
          %v3652 = vadd.f32 %v3396, %v3524
          %v3653 = vadd.f32 %v3397, %v3525
          %v3654 = vadd.f32 %v3398, %v3526
          %v3655 = vadd.f32 %v3399, %v3527
          %v3656 = vadd.f32 %v3400, %v3528
          %v3657 = vadd.f32 %v3401, %v3529
          %v3658 = vadd.f32 %v3402, %v3530
          %v3659 = vadd.f32 %v3403, %v3531
          %v3660 = vadd.f32 %v3404, %v3532
          %v3661 = vadd.f32 %v3405, %v3533
          %v3662 = vadd.f32 %v3406, %v3534
          %v3663 = vadd.f32 %v3407, %v3535
          %v3664 = vadd.f32 %v3408, %v3536
          %v3665 = vadd.f32 %v3409, %v3537
          %v3666 = vadd.f32 %v3410, %v3538
          %v3667 = vadd.f32 %v3411, %v3539
          %v3668 = vadd.f32 %v3412, %v3540
          %v3669 = vadd.f32 %v3413, %v3541
          %v3670 = vadd.f32 %v3414, %v3542
          %v3671 = vadd.f32 %v3415, %v3543
          %v3672 = vadd.f32 %v3416, %v3544
          %v3673 = vadd.f32 %v3417, %v3545
          %v3674 = vadd.f32 %v3418, %v3546
          %v3675 = vadd.f32 %v3419, %v3547
          %v3676 = vadd.f32 %v3420, %v3548
          %v3677 = vadd.f32 %v3421, %v3549
          %v3678 = vadd.f32 %v3422, %v3550
          %v3679 = vadd.f32 %v3423, %v3551
          %v3680 = vadd.f32 %v3424, %v3552
          %v3681 = vadd.f32 %v3425, %v3553
          %v3682 = vadd.f32 %v3426, %v3554
          %v3683 = vadd.f32 %v3427, %v3555
          %v3684 = vadd.f32 %v3428, %v3556
          %v3685 = vadd.f32 %v3429, %v3557
          %v3686 = vadd.f32 %v3430, %v3558
          %v3687 = vadd.f32 %v3431, %v3559
          %v3688 = vadd.f32 %v3432, %v3560
          %v3689 = vadd.f32 %v3433, %v3561
          %v3690 = vadd.f32 %v3434, %v3562
          %v3691 = vadd.f32 %v3435, %v3563
          %v3692 = vadd.f32 %v3436, %v3564
          %v3693 = vadd.f32 %v3437, %v3565
          %v3694 = vadd.f32 %v3438, %v3566
          %v3695 = vadd.f32 %v3439, %v3567
          %v3696 = vadd.f32 %v3440, %v3568
          %v3697 = vadd.f32 %v3441, %v3569
          %v3698 = vadd.f32 %v3442, %v3570
          %v3699 = vadd.f32 %v3443, %v3571
          %v3700 = vadd.f32 %v3444, %v3572
          %v3701 = vadd.f32 %v3445, %v3573
          %v3702 = vadd.f32 %v3446, %v3574
          %v3703 = vadd.f32 %v3447, %v3575
          %v3704 = vadd.f32 %v3448, %v3576
          %v3705 = vadd.f32 %v3449, %v3577
          %v3706 = vadd.f32 %v3450, %v3578
          %v3707 = vadd.f32 %v3451, %v3579
          %v3708 = vadd.f32 %v3452, %v3580
          %v3709 = vadd.f32 %v3453, %v3581
          %v3710 = vadd.f32 %v3454, %v3582
          %v3711 = vadd.f32 %v3455, %v3583
          %v3712 = vadd.f32 %v3456, %v3584
          %v3713 = vadd.f32 %v3457, %v3585
          %v3714 = vadd.f32 %v3458, %v3586
          %v3715 = vadd.f32 %v3459, %v3587
          %v3716 = vadd.f32 %v3460, %v3588
          %v3717 = vadd.f32 %v3461, %v3589
          %v3718 = vadd.f32 %v3462, %v3590
          %v3719 = vadd.f32 %v3463, %v3591
          %v3720 = vadd.f32 %v3464, %v3592
          %v3721 = vadd.f32 %v3465, %v3593
          %v3722 = vadd.f32 %v3466, %v3594
          %v3723 = vadd.f32 %v3467, %v3595
          %v3724 = vadd.f32 %v3468, %v3596
          %v3725 = vadd.f32 %v3469, %v3597
          %v3726 = vadd.f32 %v3470, %v3598
          %v3727 = vadd.f32 %v3471, %v3599
          %v3728 = vadd.f32 %v3472, %v3600
          %v3729 = vadd.f32 %v3473, %v3601
          %v3730 = vadd.f32 %v3474, %v3602
          %v3731 = vadd.f32 %v3475, %v3603
          %v3732 = vadd.f32 %v3476, %v3604
          %v3733 = vadd.f32 %v3477, %v3605
          %v3734 = vadd.f32 %v3478, %v3606
          %v3735 = vadd.f32 %v3479, %v3607
          %v3736 = vadd.f32 %v3480, %v3608
          %v3737 = vadd.f32 %v3481, %v3609
          %v3738 = vmax.f32 %v3610, 0.0
          %v3739 = vmax.f32 %v3611, 0.0
          %v3740 = vmax.f32 %v3612, 0.0
          %v3741 = vmax.f32 %v3613, 0.0
          %v3742 = vmax.f32 %v3614, 0.0
          %v3743 = vmax.f32 %v3615, 0.0
          %v3744 = vmax.f32 %v3616, 0.0
          %v3745 = vmax.f32 %v3617, 0.0
          %v3746 = vmax.f32 %v3618, 0.0
          %v3747 = vmax.f32 %v3619, 0.0
          %v3748 = vmax.f32 %v3620, 0.0
          %v3749 = vmax.f32 %v3621, 0.0
          %v3750 = vmax.f32 %v3622, 0.0
          %v3751 = vmax.f32 %v3623, 0.0
          %v3752 = vmax.f32 %v3624, 0.0
          %v3753 = vmax.f32 %v3625, 0.0
          %v3754 = vmax.f32 %v3626, 0.0
          %v3755 = vmax.f32 %v3627, 0.0
          %v3756 = vmax.f32 %v3628, 0.0
          %v3757 = vmax.f32 %v3629, 0.0
          %v3758 = vmax.f32 %v3630, 0.0
          %v3759 = vmax.f32 %v3631, 0.0
          %v3760 = vmax.f32 %v3632, 0.0
          %v3761 = vmax.f32 %v3633, 0.0
          %v3762 = vmax.f32 %v3634, 0.0
          %v3763 = vmax.f32 %v3635, 0.0
          %v3764 = vmax.f32 %v3636, 0.0
          %v3765 = vmax.f32 %v3637, 0.0
          %v3766 = vmax.f32 %v3638, 0.0
          %v3767 = vmax.f32 %v3639, 0.0
          %v3768 = vmax.f32 %v3640, 0.0
          %v3769 = vmax.f32 %v3641, 0.0
          %v3770 = vmax.f32 %v3642, 0.0
          %v3771 = vmax.f32 %v3643, 0.0
          %v3772 = vmax.f32 %v3644, 0.0
          %v3773 = vmax.f32 %v3645, 0.0
          %v3774 = vmax.f32 %v3646, 0.0
          %v3775 = vmax.f32 %v3647, 0.0
          %v3776 = vmax.f32 %v3648, 0.0
          %v3777 = vmax.f32 %v3649, 0.0
          %v3778 = vmax.f32 %v3650, 0.0
          %v3779 = vmax.f32 %v3651, 0.0
          %v3780 = vmax.f32 %v3652, 0.0
          %v3781 = vmax.f32 %v3653, 0.0
          %v3782 = vmax.f32 %v3654, 0.0
          %v3783 = vmax.f32 %v3655, 0.0
          %v3784 = vmax.f32 %v3656, 0.0
          %v3785 = vmax.f32 %v3657, 0.0
          %v3786 = vmax.f32 %v3658, 0.0
          %v3787 = vmax.f32 %v3659, 0.0
          %v3788 = vmax.f32 %v3660, 0.0
          %v3789 = vmax.f32 %v3661, 0.0
          %v3790 = vmax.f32 %v3662, 0.0
          %v3791 = vmax.f32 %v3663, 0.0
          %v3792 = vmax.f32 %v3664, 0.0
          %v3793 = vmax.f32 %v3665, 0.0
          %v3794 = vmax.f32 %v3666, 0.0
          %v3795 = vmax.f32 %v3667, 0.0
          %v3796 = vmax.f32 %v3668, 0.0
          %v3797 = vmax.f32 %v3669, 0.0
          %v3798 = vmax.f32 %v3670, 0.0
          %v3799 = vmax.f32 %v3671, 0.0
          %v3800 = vmax.f32 %v3672, 0.0
          %v3801 = vmax.f32 %v3673, 0.0
          %v3802 = vmax.f32 %v3674, 0.0
          %v3803 = vmax.f32 %v3675, 0.0
          %v3804 = vmax.f32 %v3676, 0.0
          %v3805 = vmax.f32 %v3677, 0.0
          %v3806 = vmax.f32 %v3678, 0.0
          %v3807 = vmax.f32 %v3679, 0.0
          %v3808 = vmax.f32 %v3680, 0.0
          %v3809 = vmax.f32 %v3681, 0.0
          %v3810 = vmax.f32 %v3682, 0.0
          %v3811 = vmax.f32 %v3683, 0.0
          %v3812 = vmax.f32 %v3684, 0.0
          %v3813 = vmax.f32 %v3685, 0.0
          %v3814 = vmax.f32 %v3686, 0.0
          %v3815 = vmax.f32 %v3687, 0.0
          %v3816 = vmax.f32 %v3688, 0.0
          %v3817 = vmax.f32 %v3689, 0.0
          %v3818 = vmax.f32 %v3690, 0.0
          %v3819 = vmax.f32 %v3691, 0.0
          %v3820 = vmax.f32 %v3692, 0.0
          %v3821 = vmax.f32 %v3693, 0.0
          %v3822 = vmax.f32 %v3694, 0.0
          %v3823 = vmax.f32 %v3695, 0.0
          %v3824 = vmax.f32 %v3696, 0.0
          %v3825 = vmax.f32 %v3697, 0.0
          %v3826 = vmax.f32 %v3698, 0.0
          %v3827 = vmax.f32 %v3699, 0.0
          %v3828 = vmax.f32 %v3700, 0.0
          %v3829 = vmax.f32 %v3701, 0.0
          %v3830 = vmax.f32 %v3702, 0.0
          %v3831 = vmax.f32 %v3703, 0.0
          %v3832 = vmax.f32 %v3704, 0.0
          %v3833 = vmax.f32 %v3705, 0.0
          %v3834 = vmax.f32 %v3706, 0.0
          %v3835 = vmax.f32 %v3707, 0.0
          %v3836 = vmax.f32 %v3708, 0.0
          %v3837 = vmax.f32 %v3709, 0.0
          %v3838 = vmax.f32 %v3710, 0.0
          %v3839 = vmax.f32 %v3711, 0.0
          %v3840 = vmax.f32 %v3712, 0.0
          %v3841 = vmax.f32 %v3713, 0.0
          %v3842 = vmax.f32 %v3714, 0.0
          %v3843 = vmax.f32 %v3715, 0.0
          %v3844 = vmax.f32 %v3716, 0.0
          %v3845 = vmax.f32 %v3717, 0.0
          %v3846 = vmax.f32 %v3718, 0.0
          %v3847 = vmax.f32 %v3719, 0.0
          %v3848 = vmax.f32 %v3720, 0.0
          %v3849 = vmax.f32 %v3721, 0.0
          %v3850 = vmax.f32 %v3722, 0.0
          %v3851 = vmax.f32 %v3723, 0.0
          %v3852 = vmax.f32 %v3724, 0.0
          %v3853 = vmax.f32 %v3725, 0.0
          %v3854 = vmax.f32 %v3726, 0.0
          %v3855 = vmax.f32 %v3727, 0.0
          %v3856 = vmax.f32 %v3728, 0.0
          %v3857 = vmax.f32 %v3729, 0.0
          %v3858 = vmax.f32 %v3730, 0.0
          %v3859 = vmax.f32 %v3731, 0.0
          %v3860 = vmax.f32 %v3732, 0.0
          %v3861 = vmax.f32 %v3733, 0.0
          %v3862 = vmax.f32 %v3734, 0.0
          %v3863 = vmax.f32 %v3735, 0.0
          %v3864 = vmax.f32 %v3736, 0.0
          %v3865 = vmax.f32 %v3737, 0.0
          %s3866 = sadd.s32 %s506, %s3092
          %s3867 = sshra.s32 %s3866, 3
          %s3868 = sand.u32 %s3866, 7
          %s3869 = smul.u32 %s3867, 2
          %s3870 = smul.addr %s3869, 8
          %s3871 = scalar_lea.vmem [#allocation3], %s3870
          %3872 = vst [vmem:[%s3871] sm:$0xff] %v3738
          %3873 = vst [vmem:[%s3871 + $0x8] sm:$0xff] %v3739
          %3874 = vst [vmem:[%s3871 + $0x10] sm:$0xff] %v3740
          %3875 = vst [vmem:[%s3871 + $0x18] sm:$0xff] %v3741
          %3876 = vst [vmem:[%s3871 + $0x20] sm:$0xff] %v3742
          %3877 = vst [vmem:[%s3871 + $0x28] sm:$0xff] %v3743
          %3878 = vst [vmem:[%s3871 + $0x30] sm:$0xff] %v3744
          %3879 = vst [vmem:[%s3871 + $0x38] sm:$0xff] %v3745
          %3880 = vst [vmem:[%s3871 + $0x40] sm:$0xff] %v3746
          %3881 = vst [vmem:[%s3871 + $0x48] sm:$0xff] %v3747
          %3882 = vst [vmem:[%s3871 + $0x50] sm:$0xff] %v3748
          %3883 = vst [vmem:[%s3871 + $0x58] sm:$0xff] %v3749
          %3884 = vst [vmem:[%s3871 + $0x60] sm:$0xff] %v3750
          %3885 = vst [vmem:[%s3871 + $0x68] sm:$0xff] %v3751
          %3886 = vst [vmem:[%s3871 + $0x70] sm:$0xff] %v3752
          %3887 = vst [vmem:[%s3871 + $0x78] sm:$0xff] %v3753
          %3888 = vst [vmem:[%s3871 + $0x80] sm:$0xff] %v3754
          %3889 = vst [vmem:[%s3871 + $0x88] sm:$0xff] %v3755
          %3890 = vst [vmem:[%s3871 + $0x90] sm:$0xff] %v3756
          %3891 = vst [vmem:[%s3871 + $0x98] sm:$0xff] %v3757
          %3892 = vst [vmem:[%s3871 + $0xa0] sm:$0xff] %v3758
          %3893 = vst [vmem:[%s3871 + $0xa8] sm:$0xff] %v3759
          %3894 = vst [vmem:[%s3871 + $0xb0] sm:$0xff] %v3760
          %3895 = vst [vmem:[%s3871 + $0xb8] sm:$0xff] %v3761
          %3896 = vst [vmem:[%s3871 + $0xc0] sm:$0xff] %v3762
          %3897 = vst [vmem:[%s3871 + $0xc8] sm:$0xff] %v3763
          %3898 = vst [vmem:[%s3871 + $0xd0] sm:$0xff] %v3764
          %3899 = vst [vmem:[%s3871 + $0xd8] sm:$0xff] %v3765
          %3900 = vst [vmem:[%s3871 + $0xe0] sm:$0xff] %v3766
          %3901 = vst [vmem:[%s3871 + $0xe8] sm:$0xff] %v3767
          %3902 = vst [vmem:[%s3871 + $0xf0] sm:$0xff] %v3768
          %3903 = vst [vmem:[%s3871 + $0xf8] sm:$0xff] %v3769
          %3904 = vst [vmem:[%s3871 + $0x100] sm:$0xff] %v3770
          %3905 = vst [vmem:[%s3871 + $0x108] sm:$0xff] %v3771
          %3906 = vst [vmem:[%s3871 + $0x110] sm:$0xff] %v3772
          %3907 = vst [vmem:[%s3871 + $0x118] sm:$0xff] %v3773
          %3908 = vst [vmem:[%s3871 + $0x120] sm:$0xff] %v3774
          %3909 = vst [vmem:[%s3871 + $0x128] sm:$0xff] %v3775
          %3910 = vst [vmem:[%s3871 + $0x130] sm:$0xff] %v3776
          %3911 = vst [vmem:[%s3871 + $0x138] sm:$0xff] %v3777
          %3912 = vst [vmem:[%s3871 + $0x140] sm:$0xff] %v3778
          %3913 = vst [vmem:[%s3871 + $0x148] sm:$0xff] %v3779
          %3914 = vst [vmem:[%s3871 + $0x150] sm:$0xff] %v3780
          %3915 = vst [vmem:[%s3871 + $0x158] sm:$0xff] %v3781
          %3916 = vst [vmem:[%s3871 + $0x160] sm:$0xff] %v3782
          %3917 = vst [vmem:[%s3871 + $0x168] sm:$0xff] %v3783
          %3918 = vst [vmem:[%s3871 + $0x170] sm:$0xff] %v3784
          %3919 = vst [vmem:[%s3871 + $0x178] sm:$0xff] %v3785
          %3920 = vst [vmem:[%s3871 + $0x180] sm:$0xff] %v3786
          %3921 = vst [vmem:[%s3871 + $0x188] sm:$0xff] %v3787
          %3922 = vst [vmem:[%s3871 + $0x190] sm:$0xff] %v3788
          %3923 = vst [vmem:[%s3871 + $0x198] sm:$0xff] %v3789
          %3924 = vst [vmem:[%s3871 + $0x1a0] sm:$0xff] %v3790
          %3925 = vst [vmem:[%s3871 + $0x1a8] sm:$0xff] %v3791
          %3926 = vst [vmem:[%s3871 + $0x1b0] sm:$0xff] %v3792
          %3927 = vst [vmem:[%s3871 + $0x1b8] sm:$0xff] %v3793
          %3928 = vst [vmem:[%s3871 + $0x1c0] sm:$0xff] %v3794
          %3929 = vst [vmem:[%s3871 + $0x1c8] sm:$0xff] %v3795
          %3930 = vst [vmem:[%s3871 + $0x1d0] sm:$0xff] %v3796
          %3931 = vst [vmem:[%s3871 + $0x1d8] sm:$0xff] %v3797
          %3932 = vst [vmem:[%s3871 + $0x1e0] sm:$0xff] %v3798
          %3933 = vst [vmem:[%s3871 + $0x1e8] sm:$0xff] %v3799
          %3934 = vst [vmem:[%s3871 + $0x1f0] sm:$0xff] %v3800
          %3935 = vst [vmem:[%s3871 + $0x1f8] sm:$0xff] %v3801
          %3936 = vst [vmem:[%s3871 + $0x200] sm:$0xff] %v3802
          %3937 = vst [vmem:[%s3871 + $0x208] sm:$0xff] %v3803
          %3938 = vst [vmem:[%s3871 + $0x210] sm:$0xff] %v3804
          %3939 = vst [vmem:[%s3871 + $0x218] sm:$0xff] %v3805
          %3940 = vst [vmem:[%s3871 + $0x220] sm:$0xff] %v3806
          %3941 = vst [vmem:[%s3871 + $0x228] sm:$0xff] %v3807
          %3942 = vst [vmem:[%s3871 + $0x230] sm:$0xff] %v3808
          %3943 = vst [vmem:[%s3871 + $0x238] sm:$0xff] %v3809
          %3944 = vst [vmem:[%s3871 + $0x240] sm:$0xff] %v3810
          %3945 = vst [vmem:[%s3871 + $0x248] sm:$0xff] %v3811
          %3946 = vst [vmem:[%s3871 + $0x250] sm:$0xff] %v3812
          %3947 = vst [vmem:[%s3871 + $0x258] sm:$0xff] %v3813
          %3948 = vst [vmem:[%s3871 + $0x260] sm:$0xff] %v3814
          %3949 = vst [vmem:[%s3871 + $0x268] sm:$0xff] %v3815
          %3950 = vst [vmem:[%s3871 + $0x270] sm:$0xff] %v3816
          %3951 = vst [vmem:[%s3871 + $0x278] sm:$0xff] %v3817
          %3952 = vst [vmem:[%s3871 + $0x280] sm:$0xff] %v3818
          %3953 = vst [vmem:[%s3871 + $0x288] sm:$0xff] %v3819
          %3954 = vst [vmem:[%s3871 + $0x290] sm:$0xff] %v3820
          %3955 = vst [vmem:[%s3871 + $0x298] sm:$0xff] %v3821
          %3956 = vst [vmem:[%s3871 + $0x2a0] sm:$0xff] %v3822
          %3957 = vst [vmem:[%s3871 + $0x2a8] sm:$0xff] %v3823
          %3958 = vst [vmem:[%s3871 + $0x2b0] sm:$0xff] %v3824
          %3959 = vst [vmem:[%s3871 + $0x2b8] sm:$0xff] %v3825
          %3960 = vst [vmem:[%s3871 + $0x2c0] sm:$0xff] %v3826
          %3961 = vst [vmem:[%s3871 + $0x2c8] sm:$0xff] %v3827
          %3962 = vst [vmem:[%s3871 + $0x2d0] sm:$0xff] %v3828
          %3963 = vst [vmem:[%s3871 + $0x2d8] sm:$0xff] %v3829
          %3964 = vst [vmem:[%s3871 + $0x2e0] sm:$0xff] %v3830
          %3965 = vst [vmem:[%s3871 + $0x2e8] sm:$0xff] %v3831
          %3966 = vst [vmem:[%s3871 + $0x2f0] sm:$0xff] %v3832
          %3967 = vst [vmem:[%s3871 + $0x2f8] sm:$0xff] %v3833
          %3968 = vst [vmem:[%s3871 + $0x300] sm:$0xff] %v3834
          %3969 = vst [vmem:[%s3871 + $0x308] sm:$0xff] %v3835
          %3970 = vst [vmem:[%s3871 + $0x310] sm:$0xff] %v3836
          %3971 = vst [vmem:[%s3871 + $0x318] sm:$0xff] %v3837
          %3972 = vst [vmem:[%s3871 + $0x320] sm:$0xff] %v3838
          %3973 = vst [vmem:[%s3871 + $0x328] sm:$0xff] %v3839
          %3974 = vst [vmem:[%s3871 + $0x330] sm:$0xff] %v3840
          %3975 = vst [vmem:[%s3871 + $0x338] sm:$0xff] %v3841
          %3976 = vst [vmem:[%s3871 + $0x340] sm:$0xff] %v3842
          %3977 = vst [vmem:[%s3871 + $0x348] sm:$0xff] %v3843
          %3978 = vst [vmem:[%s3871 + $0x350] sm:$0xff] %v3844
          %3979 = vst [vmem:[%s3871 + $0x358] sm:$0xff] %v3845
          %3980 = vst [vmem:[%s3871 + $0x360] sm:$0xff] %v3846
          %3981 = vst [vmem:[%s3871 + $0x368] sm:$0xff] %v3847
          %3982 = vst [vmem:[%s3871 + $0x370] sm:$0xff] %v3848
          %3983 = vst [vmem:[%s3871 + $0x378] sm:$0xff] %v3849
          %3984 = vst [vmem:[%s3871 + $0x380] sm:$0xff] %v3850
          %3985 = vst [vmem:[%s3871 + $0x388] sm:$0xff] %v3851
          %3986 = vst [vmem:[%s3871 + $0x390] sm:$0xff] %v3852
          %3987 = vst [vmem:[%s3871 + $0x398] sm:$0xff] %v3853
          %3988 = vst [vmem:[%s3871 + $0x3a0] sm:$0xff] %v3854
          %3989 = vst [vmem:[%s3871 + $0x3a8] sm:$0xff] %v3855
          %3990 = vst [vmem:[%s3871 + $0x3b0] sm:$0xff] %v3856
          %3991 = vst [vmem:[%s3871 + $0x3b8] sm:$0xff] %v3857
          %3992 = vst [vmem:[%s3871 + $0x3c0] sm:$0xff] %v3858
          %3993 = vst [vmem:[%s3871 + $0x3c8] sm:$0xff] %v3859
          %3994 = vst [vmem:[%s3871 + $0x3d0] sm:$0xff] %v3860
          %3995 = vst [vmem:[%s3871 + $0x3d8] sm:$0xff] %v3861
          %3996 = vst [vmem:[%s3871 + $0x3e0] sm:$0xff] %v3862
          %3997 = vst [vmem:[%s3871 + $0x3e8] sm:$0xff] %v3863
          %3998 = vst [vmem:[%s3871 + $0x3f0] sm:$0xff] %v3864
          %3999 = vst [vmem:[%s3871 + $0x3f8] sm:$0xff] %v3865
          %4000 = vst [vmem:[#allocation7] sm:$0xff] %v3738
          %4001 = vst [vmem:[#allocation7 + $0x8] sm:$0xff] %v3739
          %4002 = vst [vmem:[#allocation7 + $0x10] sm:$0xff] %v3740
          %4003 = vst [vmem:[#allocation7 + $0x18] sm:$0xff] %v3741
          %4004 = vst [vmem:[#allocation7 + $0x20] sm:$0xff] %v3742
          %4005 = vst [vmem:[#allocation7 + $0x28] sm:$0xff] %v3743
          %4006 = vst [vmem:[#allocation7 + $0x30] sm:$0xff] %v3744
          %4007 = vst [vmem:[#allocation7 + $0x38] sm:$0xff] %v3745
          %4008 = vst [vmem:[#allocation7 + $0x40] sm:$0xff] %v3746
          %4009 = vst [vmem:[#allocation7 + $0x48] sm:$0xff] %v3747
          %4010 = vst [vmem:[#allocation7 + $0x50] sm:$0xff] %v3748
          %4011 = vst [vmem:[#allocation7 + $0x58] sm:$0xff] %v3749
          %4012 = vst [vmem:[#allocation7 + $0x60] sm:$0xff] %v3750
          %4013 = vst [vmem:[#allocation7 + $0x68] sm:$0xff] %v3751
          %4014 = vst [vmem:[#allocation7 + $0x70] sm:$0xff] %v3752
          %4015 = vst [vmem:[#allocation7 + $0x78] sm:$0xff] %v3753
          %4016 = vst [vmem:[#allocation7 + $0x80] sm:$0xff] %v3754
          %4017 = vst [vmem:[#allocation7 + $0x88] sm:$0xff] %v3755
          %4018 = vst [vmem:[#allocation7 + $0x90] sm:$0xff] %v3756
          %4019 = vst [vmem:[#allocation7 + $0x98] sm:$0xff] %v3757
          %4020 = vst [vmem:[#allocation7 + $0xa0] sm:$0xff] %v3758
          %4021 = vst [vmem:[#allocation7 + $0xa8] sm:$0xff] %v3759
          %4022 = vst [vmem:[#allocation7 + $0xb0] sm:$0xff] %v3760
          %4023 = vst [vmem:[#allocation7 + $0xb8] sm:$0xff] %v3761
          %4024 = vst [vmem:[#allocation7 + $0xc0] sm:$0xff] %v3762
          %4025 = vst [vmem:[#allocation7 + $0xc8] sm:$0xff] %v3763
          %4026 = vst [vmem:[#allocation7 + $0xd0] sm:$0xff] %v3764
          %4027 = vst [vmem:[#allocation7 + $0xd8] sm:$0xff] %v3765
          %4028 = vst [vmem:[#allocation7 + $0xe0] sm:$0xff] %v3766
          %4029 = vst [vmem:[#allocation7 + $0xe8] sm:$0xff] %v3767
          %4030 = vst [vmem:[#allocation7 + $0xf0] sm:$0xff] %v3768
          %4031 = vst [vmem:[#allocation7 + $0xf8] sm:$0xff] %v3769
          %4032 = vst [vmem:[#allocation7 + $0x100] sm:$0xff] %v3770
          %4033 = vst [vmem:[#allocation7 + $0x108] sm:$0xff] %v3771
          %4034 = vst [vmem:[#allocation7 + $0x110] sm:$0xff] %v3772
          %4035 = vst [vmem:[#allocation7 + $0x118] sm:$0xff] %v3773
          %4036 = vst [vmem:[#allocation7 + $0x120] sm:$0xff] %v3774
          %4037 = vst [vmem:[#allocation7 + $0x128] sm:$0xff] %v3775
          %4038 = vst [vmem:[#allocation7 + $0x130] sm:$0xff] %v3776
          %4039 = vst [vmem:[#allocation7 + $0x138] sm:$0xff] %v3777
          %4040 = vst [vmem:[#allocation7 + $0x140] sm:$0xff] %v3778
          %4041 = vst [vmem:[#allocation7 + $0x148] sm:$0xff] %v3779
          %4042 = vst [vmem:[#allocation7 + $0x150] sm:$0xff] %v3780
          %4043 = vst [vmem:[#allocation7 + $0x158] sm:$0xff] %v3781
          %4044 = vst [vmem:[#allocation7 + $0x160] sm:$0xff] %v3782
          %4045 = vst [vmem:[#allocation7 + $0x168] sm:$0xff] %v3783
          %4046 = vst [vmem:[#allocation7 + $0x170] sm:$0xff] %v3784
          %4047 = vst [vmem:[#allocation7 + $0x178] sm:$0xff] %v3785
          %4048 = vst [vmem:[#allocation7 + $0x180] sm:$0xff] %v3786
          %4049 = vst [vmem:[#allocation7 + $0x188] sm:$0xff] %v3787
          %4050 = vst [vmem:[#allocation7 + $0x190] sm:$0xff] %v3788
          %4051 = vst [vmem:[#allocation7 + $0x198] sm:$0xff] %v3789
          %4052 = vst [vmem:[#allocation7 + $0x1a0] sm:$0xff] %v3790
          %4053 = vst [vmem:[#allocation7 + $0x1a8] sm:$0xff] %v3791
          %4054 = vst [vmem:[#allocation7 + $0x1b0] sm:$0xff] %v3792
          %4055 = vst [vmem:[#allocation7 + $0x1b8] sm:$0xff] %v3793
          %4056 = vst [vmem:[#allocation7 + $0x1c0] sm:$0xff] %v3794
          %4057 = vst [vmem:[#allocation7 + $0x1c8] sm:$0xff] %v3795
          %4058 = vst [vmem:[#allocation7 + $0x1d0] sm:$0xff] %v3796
          %4059 = vst [vmem:[#allocation7 + $0x1d8] sm:$0xff] %v3797
          %4060 = vst [vmem:[#allocation7 + $0x1e0] sm:$0xff] %v3798
          %4061 = vst [vmem:[#allocation7 + $0x1e8] sm:$0xff] %v3799
          %4062 = vst [vmem:[#allocation7 + $0x1f0] sm:$0xff] %v3800
          %4063 = vst [vmem:[#allocation7 + $0x1f8] sm:$0xff] %v3801
          %4064 = vst [vmem:[#allocation7 + $0x200] sm:$0xff] %v3802
          %4065 = vst [vmem:[#allocation7 + $0x208] sm:$0xff] %v3803
          %4066 = vst [vmem:[#allocation7 + $0x210] sm:$0xff] %v3804
          %4067 = vst [vmem:[#allocation7 + $0x218] sm:$0xff] %v3805
          %4068 = vst [vmem:[#allocation7 + $0x220] sm:$0xff] %v3806
          %4069 = vst [vmem:[#allocation7 + $0x228] sm:$0xff] %v3807
          %4070 = vst [vmem:[#allocation7 + $0x230] sm:$0xff] %v3808
          %4071 = vst [vmem:[#allocation7 + $0x238] sm:$0xff] %v3809
          %4072 = vst [vmem:[#allocation7 + $0x240] sm:$0xff] %v3810
          %4073 = vst [vmem:[#allocation7 + $0x248] sm:$0xff] %v3811
          %4074 = vst [vmem:[#allocation7 + $0x250] sm:$0xff] %v3812
          %4075 = vst [vmem:[#allocation7 + $0x258] sm:$0xff] %v3813
          %4076 = vst [vmem:[#allocation7 + $0x260] sm:$0xff] %v3814
          %4077 = vst [vmem:[#allocation7 + $0x268] sm:$0xff] %v3815
          %4078 = vst [vmem:[#allocation7 + $0x270] sm:$0xff] %v3816
          %4079 = vst [vmem:[#allocation7 + $0x278] sm:$0xff] %v3817
          %4080 = vst [vmem:[#allocation7 + $0x280] sm:$0xff] %v3818
          %4081 = vst [vmem:[#allocation7 + $0x288] sm:$0xff] %v3819
          %4082 = vst [vmem:[#allocation7 + $0x290] sm:$0xff] %v3820
          %4083 = vst [vmem:[#allocation7 + $0x298] sm:$0xff] %v3821
          %4084 = vst [vmem:[#allocation7 + $0x2a0] sm:$0xff] %v3822
          %4085 = vst [vmem:[#allocation7 + $0x2a8] sm:$0xff] %v3823
          %4086 = vst [vmem:[#allocation7 + $0x2b0] sm:$0xff] %v3824
          %4087 = vst [vmem:[#allocation7 + $0x2b8] sm:$0xff] %v3825
          %4088 = vst [vmem:[#allocation7 + $0x2c0] sm:$0xff] %v3826
          %4089 = vst [vmem:[#allocation7 + $0x2c8] sm:$0xff] %v3827
          %4090 = vst [vmem:[#allocation7 + $0x2d0] sm:$0xff] %v3828
          %4091 = vst [vmem:[#allocation7 + $0x2d8] sm:$0xff] %v3829
          %4092 = vst [vmem:[#allocation7 + $0x2e0] sm:$0xff] %v3830
          %4093 = vst [vmem:[#allocation7 + $0x2e8] sm:$0xff] %v3831
          %4094 = vst [vmem:[#allocation7 + $0x2f0] sm:$0xff] %v3832
          %4095 = vst [vmem:[#allocation7 + $0x2f8] sm:$0xff] %v3833
          %4096 = vst [vmem:[#allocation7 + $0x300] sm:$0xff] %v3834
          %4097 = vst [vmem:[#allocation7 + $0x308] sm:$0xff] %v3835
          %4098 = vst [vmem:[#allocation7 + $0x310] sm:$0xff] %v3836
          %4099 = vst [vmem:[#allocation7 + $0x318] sm:$0xff] %v3837
          %4100 = vst [vmem:[#allocation7 + $0x320] sm:$0xff] %v3838
          %4101 = vst [vmem:[#allocation7 + $0x328] sm:$0xff] %v3839
          %4102 = vst [vmem:[#allocation7 + $0x330] sm:$0xff] %v3840
          %4103 = vst [vmem:[#allocation7 + $0x338] sm:$0xff] %v3841
          %4104 = vst [vmem:[#allocation7 + $0x340] sm:$0xff] %v3842
          %4105 = vst [vmem:[#allocation7 + $0x348] sm:$0xff] %v3843
          %4106 = vst [vmem:[#allocation7 + $0x350] sm:$0xff] %v3844
          %4107 = vst [vmem:[#allocation7 + $0x358] sm:$0xff] %v3845
          %4108 = vst [vmem:[#allocation7 + $0x360] sm:$0xff] %v3846
          %4109 = vst [vmem:[#allocation7 + $0x368] sm:$0xff] %v3847
          %4110 = vst [vmem:[#allocation7 + $0x370] sm:$0xff] %v3848
          %4111 = vst [vmem:[#allocation7 + $0x378] sm:$0xff] %v3849
          %4112 = vst [vmem:[#allocation7 + $0x380] sm:$0xff] %v3850
          %4113 = vst [vmem:[#allocation7 + $0x388] sm:$0xff] %v3851
          %4114 = vst [vmem:[#allocation7 + $0x390] sm:$0xff] %v3852
          %4115 = vst [vmem:[#allocation7 + $0x398] sm:$0xff] %v3853
          %4116 = vst [vmem:[#allocation7 + $0x3a0] sm:$0xff] %v3854
          %4117 = vst [vmem:[#allocation7 + $0x3a8] sm:$0xff] %v3855
          %4118 = vst [vmem:[#allocation7 + $0x3b0] sm:$0xff] %v3856
          %4119 = vst [vmem:[#allocation7 + $0x3b8] sm:$0xff] %v3857
          %4120 = vst [vmem:[#allocation7 + $0x3c0] sm:$0xff] %v3858
          %4121 = vst [vmem:[#allocation7 + $0x3c8] sm:$0xff] %v3859
          %4122 = vst [vmem:[#allocation7 + $0x3d0] sm:$0xff] %v3860
          %4123 = vst [vmem:[#allocation7 + $0x3d8] sm:$0xff] %v3861
          %4124 = vst [vmem:[#allocation7 + $0x3e0] sm:$0xff] %v3862
          %4125 = vst [vmem:[#allocation7 + $0x3e8] sm:$0xff] %v3863
          %4126 = vst [vmem:[#allocation7 + $0x3f0] sm:$0xff] %v3864
          %4127 = vst [vmem:[#allocation7 + $0x3f8] sm:$0xff] %v3865
        $region72: #{appnp_forward.3} parent=31 // pred_fallthru
          _
        // Predicated region
        $region73: #{appnp_forward.3} parent=31 // pred_check
          %p4128 = pneg %p123
        $region74: #{appnp_forward.3} parent=31 // pred_check_branch
          %4130 = sbr.rel (%p4128) target = $region76
        $region75: #{appnp_forward.3} parent=31 // pred_region
          %s4131 = smul.u32 64, %s22
          %4133 = vsyncadd [#allocation6], 0
          %s4134 = smul.addr %s4131, 2
          %s4135 = smul.addr %s4134, 8
          %s4136 = scalar_lea.hbm %s3, %s4135
          %s4137 = sshll.u32 [#allocation7], 4
          %s4138 = int_to_ptr.vmem [resolvable:$true] %s4137
          %s4139 = sshll.u32 %s4136, 4
          %s4140 = int_to_ptr.hbm [resolvable:$true] %s4139
          %4145 = dma.vmem_to_hbm [thread:$0]  %s4138, 16384, %s4140, [#allocation6], 256, 256, 16
        $region76: #{appnp_forward.3} parent=31 // pred_fallthru
          _
        // Predicated region
        $region77: #{appnp_forward.3} parent=31 // pred_check
          %p4146 = pneg %p123
        $region78: #{appnp_forward.3} parent=31 // pred_check_branch
          %4148 = sbr.rel (%p4146) target = $region80
        $region79: #{appnp_forward.3} parent=31 // pred_region
          %4150 = dma.done [#allocation6], 16384
        $region80: #{appnp_forward.3} parent=31 // pred_fallthru
          _
      $region32: #{appnp_forward.3} parent=5 // pred_fallthru
        _
      %p4151 = scmp.le.s32.totalorder 2, %s11
      // Predicated region
      $region81: #{appnp_forward.3} parent=5 // pred_check
        %p4152 = pneg %p4151
      $region82: #{appnp_forward.3} parent=5 // pred_check_branch
        %4154 = sbr.rel (%p4152) target = $region84
      $region83: #{appnp_forward.3} parent=5 // pred_region
        %s4155 = ssub.s32 %s11, 2
      $region84: #{appnp_forward.3} parent=5 // pred_fallthru
        _
    $region6: #{appnp_forward.3} parent=1 // loop_footer
      %s15 = sadd.s32 1, %s11
    $region7: #{appnp_forward.3} parent=1 // loop_footer_branch
      %10 = sbr.rel target = $region3
    $region8: #{appnp_forward.3} parent=1 // loop_exit
      _
    %4156 = vsyncpa [#allocation5], 1
    %s4157 = scalar_lea.sflag [#allocation5], 1
    %4158 = vsyncpa %s4157, 1
    %4159 = vsyncpa [#allocation6], 1
    %s4160 = scalar_lea.sflag [#allocation6], 1
    %4161 = vsyncpa %s4160, 1

</llo_original>
